<compile_context>
chip_gen: v5e
topology: v5e:2x2
jax: 0.10.0
libtpu: 0.0.40
codegen_flags: <defaults>
</compile_context>

<pallas_src>
import functools

import jax
import jax.numpy as jnp
from jax.experimental import pallas as pl
from jax.experimental.pallas import tpu as pltpu


_VMEM_LIMIT_BYTES = 48 * 1024 * 1024    # safe on v5e/v6e (128 MiB) and v7x (64 MiB)
_VMEM_BUDGET_BYTES = 40 * 1024 * 1024   # headroom for vregs / compiler scratch


def _bilinear_weights(src_coords, in_size):
    """Rows of a bilinear interpolation matrix (zero padding outside [0, in_size-1]).

    out[i, :] puts weight (1 - frac) on floor(src_coords[i]) and frac on
    floor(src_coords[i]) + 1, matching grid_sample(padding_mode='zeros',
    align_corners=True) as used by kornia's warp_affine / crop_and_resize.
    """
    x0 = jnp.floor(src_coords)
    frac = src_coords - x0
    idx = jnp.arange(in_size, dtype=jnp.float32)[None, :]
    x0c = x0[:, None]
    fr = frac[:, None]
    w = jnp.where(idx == x0c, 1.0 - fr, 0.0) + jnp.where(idx == x0c + 1.0, fr, 0.0)
    return w.astype(jnp.float32)


def _resample_matrices(rows, cols, M_tune, k):
    """Host-side constant folding of warp_affine + crop_and_resize + center paste.

    Returns Ay_pad (H, H) and AxT_pad (W, W) such that for one plane `img`
        Ay_pad @ img @ AxT_pad
    equals the (rows-k, cols-k) crop pasted into the center of an HxW zero
    canvas (zero rows/cols of the padded matrices produce exact zeros).
    """
    H, W = rows, cols
    hc, wc = rows - k, cols - k
    c0 = rows // 2 - hc // 2

    mask = jnp.array([[0.0, 0.0, 1.0], [0.0, 0.0, 1.0]], jnp.float32)
    M_fixed = jnp.array([[1.0, 0.0, 0.0], [0.0, 1.0, 0.0]], jnp.float32)
    M = mask * M_tune.astype(jnp.float32) + (1.0 - mask) * M_fixed     # (2, 3)
    tx, ty = M[0, 2], M[1, 2]

    # warp_affine: 2x2 part is identity -> pure translation; kornia samples
    # src = dst - t with zero padding.
    wy = _bilinear_weights(jnp.arange(H, dtype=jnp.float32) - ty, H)   # (H, H)
    wx = _bilinear_weights(jnp.arange(W, dtype=jnp.float32) - tx, W)   # (W, W)

    # crop_and_resize, box [[0,0],[2048,0],[2048,2048],[0,2048]] -> (hc, wc),
    # align_corners semantics: src = i * 2048 / (out - 1).
    ys = jnp.arange(hc, dtype=jnp.float32) * (2048.0 / (hc - 1))
    xs = jnp.arange(wc, dtype=jnp.float32) * (2048.0 / (wc - 1))
    cy = _bilinear_weights(ys, H)                                      # (hc, H)
    cx = _bilinear_weights(xs, W)                                      # (wc, W)

    hp = jax.lax.Precision.HIGHEST
    ay = jnp.dot(cy, wy, precision=hp)                                 # (hc, H)
    axt = jnp.dot(cx, wx, precision=hp).T                              # (W, wc)

    ay_pad = jnp.zeros((H, H), jnp.float32).at[c0:c0 + hc, :].set(ay)
    axt_pad = jnp.zeros((W, W), jnp.float32).at[:, c0:c0 + wc].set(axt)
    return ay_pad, axt_pad


def _largest_proper_divisor(n):
    for d in range(n // 2, 0, -1):
        if n % d == 0:
            return d
    return 1


def _pick_planes_per_block(n_planes, plane_bytes, const_bytes, budget_bytes):
    """Largest divisor of n_planes whose pipeline working set fits the budget.

    Working set per grid step: double-buffered input block (2x) +
    double-buffered output block (2x) + the `t` intermediate (1x), each of
    NP * plane_bytes, plus the (double-buffered) constant matrices.
    """
    best = 1
    for d in range(1, n_planes + 1):
        if n_planes % d == 0 and 5 * d * plane_bytes + const_bytes <= budget_bytes:
            best = d
    return best


def model_forward(front, back, left, right, *, rows, cols, M_tune, n_param, k=50):
    assert rows == cols, "module's index arithmetic assumes square images"
    B, C, H, W = front.shape
    assert (H, W) == (rows, cols)
    hc, wc = rows - k, cols - k
    assert hc > 1 and wc > 1, "rows/cols must exceed k + 1"
    assert hc % 2 == 0, "module's paste slice assumes an even crop size"

    ay_pad, axt_pad = _resample_matrices(rows, cols, M_tune, k)       # (H,H), (W,W)

    stacked = jnp.stack([front, back, left, right], axis=0)           # (4, B, C, H, W)
    imgs = stacked.reshape(4 * B * C, H, W).astype(jnp.float32)       # (N, H, W)
    n1 = jnp.reshape(n_param.astype(jnp.float32), (1,))               # scalar -> SMEM

    N = imgs.shape[0]
    plane_bytes = H * W * 4
    const_bytes = 2 * (H * H + W * W) * 4     # ay_pad + axt_pad, double-buffered
    NP = _pick_planes_per_block(N, plane_bytes, const_bytes, _VMEM_BUDGET_BYTES)
    # Keep at least 2 grid steps so the "parallel" axis can shard across the
    # two TensorCores of a v7x chip (no-op on single-core v5e/v6e).
    if NP == N and N >= 2:
        NP = _largest_proper_divisor(N)
    G = N // NP

    hp = jax.lax.Precision.HIGHEST   # demo-size fidelity; see production TODO above

    def _proj_kernel(img_ref, ayp_ref, axtp_ref, n_ref, out_ref):
        n = n_ref[0]
        ayp = ayp_ref[...]                                            # (H, H)
        axtp = axtp_ref[...]                                          # (W, W)
        x = img_ref[...]                                              # (NP, H, W)
        # Column resample + paste for all planes at once: (NP*H, W) @ (W, W).
        t = jnp.dot(x.reshape(NP * H, W), axtp, precision=hp)
        t = t.reshape(NP, H, W)
        # Row resample + paste: one full (H,H)@(H,W) matmul per plane (NP is
        # small by construction), reusing the same resident Ay_pad operand.
        # Each store is a full lane-dense (H, W) plane -- no masked stores.
        for p in range(NP):
            y = jnp.dot(ayp, t[p], precision=hp)
            out_ref[p] = ((y + n) - n).astype(out_ref.dtype)          # x + n - n

    out = pl.pallas_call(
        _proj_kernel,
        out_shape=jax.ShapeDtypeStruct((N, H, W), jnp.float32),
        grid=(G,),
        in_specs=[
            pl.BlockSpec((NP, H, W), lambda i: (i, 0, 0)),            # image planes
            pl.BlockSpec((H, H), lambda i: (0, 0)),                   # Ay_pad  (grid-invariant)
            pl.BlockSpec((W, W), lambda i: (0, 0)),                   # AxT_pad (grid-invariant)
            pl.BlockSpec(memory_space=pltpu.MemorySpace.SMEM),        # scalar n
        ],
        out_specs=pl.BlockSpec((NP, H, W), lambda i: (i, 0, 0)),
        compiler_params=pltpu.CompilerParams(
            dimension_semantics=("parallel",),
            vmem_limit_bytes=_VMEM_LIMIT_BYTES),
    )(imgs, ay_pad, axt_pad, n1)

    out = out.reshape(4, B, C, H, W)
    return out[0], out[1], out[2], out[3]


def reference_forward(front, back, left, right, *, rows, cols, M_tune, n_param, k=50):
    """Pure-JAX (non-Pallas) reference mirroring the torch module op-by-op."""
    B, C, H, W = front.shape
    hc, wc = rows - k, cols - k
    c0 = rows // 2 - hc // 2
    hp = jax.lax.Precision.HIGHEST

    mask = jnp.array([[0.0, 0.0, 1.0], [0.0, 0.0, 1.0]], jnp.float32)
    M_fixed = jnp.array([[1.0, 0.0, 0.0], [0.0, 1.0, 0.0]], jnp.float32)
    M = mask * M_tune.astype(jnp.float32) + (1.0 - mask) * M_fixed
    tx, ty = M[0, 2], M[1, 2]
    wy = _bilinear_weights(jnp.arange(H, dtype=jnp.float32) - ty, H)
    wx = _bilinear_weights(jnp.arange(W, dtype=jnp.float32) - tx, W)
    ys = jnp.arange(hc, dtype=jnp.float32) * (2048.0 / (hc - 1))
    xs = jnp.arange(wc, dtype=jnp.float32) * (2048.0 / (wc - 1))
    cy = _bilinear_weights(ys, H)
    cx = _bilinear_weights(xs, W)
    n = n_param.astype(jnp.float32)[0]

    def one(img):
        x = img.astype(jnp.float32)
        warped = jnp.einsum("ih,bchw->bciw", wy, x, precision=hp)
        warped = jnp.einsum("bciw,jw->bcij", warped, wx, precision=hp)
        crop = jnp.einsum("ri,bcij->bcrj", cy, warped, precision=hp)
        crop = jnp.einsum("bcrj,sj->bcrs", crop, cx, precision=hp)
        crop = crop + n - n
        out = jnp.zeros((B, C, H, W), jnp.float32)
        return out.at[:, :, c0:c0 + hc, c0:c0 + wc].set(crop)

    return tuple(one(p) for p in (front, back, left, right))


if __name__ == "__main__":
    rows = cols = 64          # must exceed k=50 (module hard-codes k=50)
    B, C = 1, 3

    key = jax.random.PRNGKey(0)
    k1, k2, k3, k4 = jax.random.split(key, 4)
    shape = (B, C, rows, cols)
    front = jax.random.uniform(k1, shape, dtype=jnp.float32)
    back = jax.random.uniform(k2, shape, dtype=jnp.float32)
    left = jax.random.uniform(k3, shape, dtype=jnp.float32)
    right = jax.random.uniform(k4, shape, dtype=jnp.float32)

    # deterministic parameters, matching Model.__init__ defaults
    M_tune = jnp.array([[1.0, 0.0, 0.0], [0.0, 1.0, 0.0]], jnp.float32)
    n_param = jnp.array([50.0], jnp.float32)

    fwd = jax.jit(functools.partial(model_forward, rows=rows, cols=cols, k=50))
    outs = fwd(front, back, left, right, M_tune=M_tune, n_param=n_param)
    outs = jax.block_until_ready(outs)

    refs = reference_forward(front, back, left, right, rows=rows, cols=cols,
                             M_tune=M_tune, n_param=n_param, k=50)

    for o, r in zip(outs, refs):
        assert o.shape == (B, C, rows, cols)
        assert bool(jnp.all(jnp.isfinite(o)))
        assert bool(jnp.allclose(o, r, atol=1e-4, rtol=1e-4)), \
            float(jnp.max(jnp.abs(o - r)))
    print("KERNEL_OK")
</pallas_src>

<mosaic_0001>
module attributes {stable_mosaic.version = 11 : i64} {
  func.func @_proj_kernel(%arg0: i32, %arg1: memref<6x64x64xf32, #tpu.memory_space<vmem>>, %arg2: memref<64x64xf32, #tpu.memory_space<vmem>>, %arg3: memref<64x64xf32, #tpu.memory_space<vmem>>, %arg4: memref<1xf32, #tpu.memory_space<smem>>, %arg5: memref<6x64x64xf32, #tpu.memory_space<vmem>>) attributes {dimension_semantics = [#tpu.dimension_semantics<parallel>], iteration_bounds = array<i64: 2>, scalar_prefetch = 0 : i64, scratch_operands = 0 : i64, tpu.core_type = #tpu.core_type<tc>, window_params = [{transform_indices = @transform_0, window_bounds = array<i64: 6, 64, 64>}, {pipeline_mode = #tpu.pipeline_mode<synchronous>, transform_indices = @transform_1, window_bounds = array<i64: 64, 64>}, {pipeline_mode = #tpu.pipeline_mode<synchronous>, transform_indices = @transform_2, window_bounds = array<i64: 64, 64>}, {transform_indices = @transform_3, window_bounds = array<i64: 1>}, {transform_indices = @transform_4, window_bounds = array<i64: 6, 64, 64>}]} {
    %c0 = arith.constant 0 : index
    %0 = memref.load %arg4[%c0] : memref<1xf32, #tpu.memory_space<smem>>
    %c0_0 = arith.constant 0 : index
    %c0_1 = arith.constant 0 : index
    %1 = vector.load %arg2[%c0_0, %c0_1] : memref<64x64xf32, #tpu.memory_space<vmem>>, vector<64x64xf32>
    %c0_2 = arith.constant 0 : index
    %c0_3 = arith.constant 0 : index
    %2 = vector.load %arg3[%c0_2, %c0_3] : memref<64x64xf32, #tpu.memory_space<vmem>>, vector<64x64xf32>
    %c0_4 = arith.constant 0 : index
    %c0_5 = arith.constant 0 : index
    %c0_6 = arith.constant 0 : index
    %3 = vector.load %arg1[%c0_4, %c0_5, %c0_6] : memref<6x64x64xf32, #tpu.memory_space<vmem>>, vector<6x64x64xf32>
    %4 = vector.shape_cast %3 : vector<6x64x64xf32> to vector<384x64xf32>
    %cst = arith.constant dense<0.000000e+00> : vector<384x64xf32>
    %5 = tpu.matmul %4, %2, %cst {dimension_numbers = #tpu.dot_dimension_numbers<[1], [0], [0], [1], [0, 0, 1, 1], [], []>, precision = #tpu.contract_precision<fp32>} : vector<384x64xf32>, vector<64x64xf32>, vector<384x64xf32> -> vector<384x64xf32>
    %6 = vector.shape_cast %5 : vector<384x64xf32> to vector<6x64x64xf32>
    %7 = vector.extract_strided_slice %6 {offsets = [0, 0, 0], sizes = [1, 64, 64], strides = [1, 1, 1]} : vector<6x64x64xf32> to vector<1x64x64xf32>
    %8 = vector.shape_cast %7 : vector<1x64x64xf32> to vector<64x64xf32>
    %cst_7 = arith.constant dense<0.000000e+00> : vector<64x64xf32>
    %9 = tpu.matmul %1, %8, %cst_7 {dimension_numbers = #tpu.dot_dimension_numbers<[1], [0], [0], [1], [0, 0, 1, 1], [], []>, precision = #tpu.contract_precision<fp32>} : vector<64x64xf32>, vector<64x64xf32>, vector<64x64xf32> -> vector<64x64xf32>
    %10 = vector.broadcast %0 : f32 to vector<64x64xf32>
    %11 = arith.addf %9, %10 : vector<64x64xf32>
    %12 = vector.broadcast %0 : f32 to vector<64x64xf32>
    %13 = arith.subf %11, %12 : vector<64x64xf32>
    %c0_8 = arith.constant 0 : index
    %c0_9 = arith.constant 0 : index
    %c0_10 = arith.constant 0 : index
    %14 = vector.load %arg5[%c0_8, %c0_9, %c0_10] : memref<6x64x64xf32, #tpu.memory_space<vmem>>, vector<1x64x64xf32>
    %15 = vector.shape_cast %14 : vector<1x64x64xf32> to vector<64x64xf32>
    %16 = vector.shape_cast %13 : vector<64x64xf32> to vector<1x64x64xf32>
    tpu.vector_store %arg5[%c0_8, %c0_9, %c0_10], %16 {strides = array<i32>} : memref<6x64x64xf32, #tpu.memory_space<vmem>>, vector<1x64x64xf32>,
    %17 = vector.extract_strided_slice %6 {offsets = [1, 0, 0], sizes = [1, 64, 64], strides = [1, 1, 1]} : vector<6x64x64xf32> to vector<1x64x64xf32>
    %18 = vector.shape_cast %17 : vector<1x64x64xf32> to vector<64x64xf32>
    %cst_11 = arith.constant dense<0.000000e+00> : vector<64x64xf32>
    %19 = tpu.matmul %1, %18, %cst_11 {dimension_numbers = #tpu.dot_dimension_numbers<[1], [0], [0], [1], [0, 0, 1, 1], [], []>, precision = #tpu.contract_precision<fp32>} : vector<64x64xf32>, vector<64x64xf32>, vector<64x64xf32> -> vector<64x64xf32>
    %20 = vector.broadcast %0 : f32 to vector<64x64xf32>
    %21 = arith.addf %19, %20 : vector<64x64xf32>
    %22 = vector.broadcast %0 : f32 to vector<64x64xf32>
    %23 = arith.subf %21, %22 : vector<64x64xf32>
    %c1 = arith.constant 1 : index
    %c0_12 = arith.constant 0 : index
    %c0_13 = arith.constant 0 : index
    %24 = vector.load %arg5[%c1, %c0_12, %c0_13] : memref<6x64x64xf32, #tpu.memory_space<vmem>>, vector<1x64x64xf32>
    %25 = vector.shape_cast %24 : vector<1x64x64xf32> to vector<64x64xf32>
    %26 = vector.shape_cast %23 : vector<64x64xf32> to vector<1x64x64xf32>
    tpu.vector_store %arg5[%c1, %c0_12, %c0_13], %26 {strides = array<i32>} : memref<6x64x64xf32, #tpu.memory_space<vmem>>, vector<1x64x64xf32>,
    %27 = vector.extract_strided_slice %6 {offsets = [2, 0, 0], sizes = [1, 64, 64], strides = [1, 1, 1]} : vector<6x64x64xf32> to vector<1x64x64xf32>
    %28 = vector.shape_cast %27 : vector<1x64x64xf32> to vector<64x64xf32>
    %cst_14 = arith.constant dense<0.000000e+00> : vector<64x64xf32>
    %29 = tpu.matmul %1, %28, %cst_14 {dimension_numbers = #tpu.dot_dimension_numbers<[1], [0], [0], [1], [0, 0, 1, 1], [], []>, precision = #tpu.contract_precision<fp32>} : vector<64x64xf32>, vector<64x64xf32>, vector<64x64xf32> -> vector<64x64xf32>
    %30 = vector.broadcast %0 : f32 to vector<64x64xf32>
    %31 = arith.addf %29, %30 : vector<64x64xf32>
    %32 = vector.broadcast %0 : f32 to vector<64x64xf32>
    %33 = arith.subf %31, %32 : vector<64x64xf32>
    %c2 = arith.constant 2 : index
    %c0_15 = arith.constant 0 : index
    %c0_16 = arith.constant 0 : index
    %34 = vector.load %arg5[%c2, %c0_15, %c0_16] : memref<6x64x64xf32, #tpu.memory_space<vmem>>, vector<1x64x64xf32>
    %35 = vector.shape_cast %34 : vector<1x64x64xf32> to vector<64x64xf32>
    %36 = vector.shape_cast %33 : vector<64x64xf32> to vector<1x64x64xf32>
    tpu.vector_store %arg5[%c2, %c0_15, %c0_16], %36 {strides = array<i32>} : memref<6x64x64xf32, #tpu.memory_space<vmem>>, vector<1x64x64xf32>,
    %37 = vector.extract_strided_slice %6 {offsets = [3, 0, 0], sizes = [1, 64, 64], strides = [1, 1, 1]} : vector<6x64x64xf32> to vector<1x64x64xf32>
    %38 = vector.shape_cast %37 : vector<1x64x64xf32> to vector<64x64xf32>
    %cst_17 = arith.constant dense<0.000000e+00> : vector<64x64xf32>
    %39 = tpu.matmul %1, %38, %cst_17 {dimension_numbers = #tpu.dot_dimension_numbers<[1], [0], [0], [1], [0, 0, 1, 1], [], []>, precision = #tpu.contract_precision<fp32>} : vector<64x64xf32>, vector<64x64xf32>, vector<64x64xf32> -> vector<64x64xf32>
    %40 = vector.broadcast %0 : f32 to vector<64x64xf32>
    %41 = arith.addf %39, %40 : vector<64x64xf32>
    %42 = vector.broadcast %0 : f32 to vector<64x64xf32>
    %43 = arith.subf %41, %42 : vector<64x64xf32>
    %c3 = arith.constant 3 : index
    %c0_18 = arith.constant 0 : index
    %c0_19 = arith.constant 0 : index
    %44 = vector.load %arg5[%c3, %c0_18, %c0_19] : memref<6x64x64xf32, #tpu.memory_space<vmem>>, vector<1x64x64xf32>
    %45 = vector.shape_cast %44 : vector<1x64x64xf32> to vector<64x64xf32>
    %46 = vector.shape_cast %43 : vector<64x64xf32> to vector<1x64x64xf32>
    tpu.vector_store %arg5[%c3, %c0_18, %c0_19], %46 {strides = array<i32>} : memref<6x64x64xf32, #tpu.memory_space<vmem>>, vector<1x64x64xf32>,
    %47 = vector.extract_strided_slice %6 {offsets = [4, 0, 0], sizes = [1, 64, 64], strides = [1, 1, 1]} : vector<6x64x64xf32> to vector<1x64x64xf32>
    %48 = vector.shape_cast %47 : vector<1x64x64xf32> to vector<64x64xf32>
    %cst_20 = arith.constant dense<0.000000e+00> : vector<64x64xf32>
    %49 = tpu.matmul %1, %48, %cst_20 {dimension_numbers = #tpu.dot_dimension_numbers<[1], [0], [0], [1], [0, 0, 1, 1], [], []>, precision = #tpu.contract_precision<fp32>} : vector<64x64xf32>, vector<64x64xf32>, vector<64x64xf32> -> vector<64x64xf32>
    %50 = vector.broadcast %0 : f32 to vector<64x64xf32>
    %51 = arith.addf %49, %50 : vector<64x64xf32>
    %52 = vector.broadcast %0 : f32 to vector<64x64xf32>
    %53 = arith.subf %51, %52 : vector<64x64xf32>
    %c4 = arith.constant 4 : index
    %c0_21 = arith.constant 0 : index
    %c0_22 = arith.constant 0 : index
    %54 = vector.load %arg5[%c4, %c0_21, %c0_22] : memref<6x64x64xf32, #tpu.memory_space<vmem>>, vector<1x64x64xf32>
    %55 = vector.shape_cast %54 : vector<1x64x64xf32> to vector<64x64xf32>
    %56 = vector.shape_cast %53 : vector<64x64xf32> to vector<1x64x64xf32>
    tpu.vector_store %arg5[%c4, %c0_21, %c0_22], %56 {strides = array<i32>} : memref<6x64x64xf32, #tpu.memory_space<vmem>>, vector<1x64x64xf32>,
    %57 = vector.extract_strided_slice %6 {offsets = [5, 0, 0], sizes = [1, 64, 64], strides = [1, 1, 1]} : vector<6x64x64xf32> to vector<1x64x64xf32>
    %58 = vector.shape_cast %57 : vector<1x64x64xf32> to vector<64x64xf32>
    %cst_23 = arith.constant dense<0.000000e+00> : vector<64x64xf32>
    %59 = tpu.matmul %1, %58, %cst_23 {dimension_numbers = #tpu.dot_dimension_numbers<[1], [0], [0], [1], [0, 0, 1, 1], [], []>, precision = #tpu.contract_precision<fp32>} : vector<64x64xf32>, vector<64x64xf32>, vector<64x64xf32> -> vector<64x64xf32>
    %60 = vector.broadcast %0 : f32 to vector<64x64xf32>
    %61 = arith.addf %59, %60 : vector<64x64xf32>
    %62 = vector.broadcast %0 : f32 to vector<64x64xf32>
    %63 = arith.subf %61, %62 : vector<64x64xf32>
    %c5 = arith.constant 5 : index
    %c0_24 = arith.constant 0 : index
    %c0_25 = arith.constant 0 : index
    %64 = vector.load %arg5[%c5, %c0_24, %c0_25] : memref<6x64x64xf32, #tpu.memory_space<vmem>>, vector<1x64x64xf32>
    %65 = vector.shape_cast %64 : vector<1x64x64xf32> to vector<64x64xf32>
    %66 = vector.shape_cast %63 : vector<64x64xf32> to vector<1x64x64xf32>
    tpu.vector_store %arg5[%c5, %c0_24, %c0_25], %66 {strides = array<i32>} : memref<6x64x64xf32, #tpu.memory_space<vmem>>, vector<1x64x64xf32>,
    return
  }
  func.func @transform_0(%arg0: i32) -> (i32, i32, i32) {
    %c0_i32 = arith.constant 0 : i32
    %c0_i32_0 = arith.constant 0 : i32
    %c0_i32_1 = arith.constant 0 : i32
    return %arg0, %c0_i32, %c0_i32_0 : i32, i32, i32
  }
  func.func @transform_1(%arg0: i32) -> (i32, i32) {
    %c0_i32 = arith.constant 0 : i32
    %c0_i32_0 = arith.constant 0 : i32
    %c0_i32_1 = arith.constant 0 : i32
    return %c0_i32, %c0_i32_0 : i32, i32
  }
  func.func @transform_2(%arg0: i32) -> (i32, i32) {
    %c0_i32 = arith.constant 0 : i32
    %c0_i32_0 = arith.constant 0 : i32
    %c0_i32_1 = arith.constant 0 : i32
    return %c0_i32, %c0_i32_0 : i32, i32
  }
  func.func @transform_3(%arg0: i32) -> i32 {
    %c0_i32 = arith.constant 0 : i32
    %c0_i32_0 = arith.constant 0 : i32
    return %c0_i32 : i32
  }
  func.func @transform_4(%arg0: i32) -> (i32, i32, i32) {
    %c0_i32 = arith.constant 0 : i32
    %c0_i32_0 = arith.constant 0 : i32
    %c0_i32_1 = arith.constant 0 : i32
    return %arg0, %c0_i32, %c0_i32_0 : i32, i32, i32
  }
}

</mosaic_0001>

<llo_original>
// kernel: model_forward.1
$region0: #{model_forward.1}
  #allocation0 [shape = 'u32[]', space=smem, size = 0x4, offset = 0x4, fixed_abs, tag = 'smem constant byte address 0x4 - core index']
  #allocation1 [shape = 'u32[72,128]{1,0:T(1,128)}', space=vmem, size = 0x9000, scoped, tag = 'internal scratch']
  #allocation2 [shape = 'f32[1]{0:T(128)S(6)}', space=smem, size = 0x200, scoped, tag = 'scoped memory for model_forward.1']
  %s0 = inlined_call_operand.vmem [shape: f32[12,64,64], index: 0, kind: input, shape index: {}]
  %s1 = inlined_call_operand.vmem [shape: f32[64,64], index: 1, kind: input, shape index: {}]
  %s2 = inlined_call_operand.vmem [shape: f32[64,64], index: 2, kind: input, shape index: {}]
  %s3 = inlined_call_operand.<no memory space> [shape: f32[1], index: 3, kind: input, shape index: {}]
  %s4 = inlined_call_operand.vmem [shape: f32[12,64,64], index: 4, kind: output, shape index: {}]
  %s5 = sld [smem:[#allocation0]]
  $region49: #{model_forward.1} parent=0
    _
  %s7 = ssub.s32 1, %s5
  %s8 = scalar_select 0, %s7, %s5
  %9 = sst [smem:[#allocation2]] %s3
  loop: start=0, step=1, limit=4
  $region2: #{model_forward.1} parent=0 // loop_pre_header
    _
  $region3: #{model_forward.1} parent=0 // loop_header
    %s11 = sphi 0, %s15
    %p12 = scmp.ge.s32.totalorder %s11, 4
    %s21 = sphi 0, %s23
    %s24 = sphi 0, %s21
    %s25 = sphi 0, %s24
    %s41 = sphi 0, %s25
    %s45 = sphi 0, %s45
    %s47 = sphi 0, %s45
    %s48 = sphi 0, %s47
    %s62 = sphi 0, %s48
    %s66 = sphi 0, %s66
    %s68 = sphi 0, %s66
    %s69 = sphi 0, %s68
    %s83 = sphi 0, %s69
    %s87 = sphi 0, %s87
    %s89 = sphi 0, %s87
    %s90 = sphi 0, %s89
    %s104 = sphi 0, %s90
    %s110 = sphi 0, %s112
    %s113 = sphi 0, %s110
    %s114 = sphi 0, %s113
    %s130 = sphi 0, %s114
  $region4: #{model_forward.1} parent=0 // loop_header_branch
    %14 = sbr.rel (%p12) target = $region8
  $region5: #{model_forward.1} parent=0 // loop_body
    %s16 = ssub.s32 %s11, 1
    %s17 = ssub.s32 %s11, 2
    %s18 = sadd.s32 %s11, 1
    %s19 = ssub.s32 %s11, %s18
    %p20 = scmp.eq.s32.totalorder %s19, 0
    %s22 = sadd.s32 %s21, 1
    %s23 = scalar_select %p20, %s21, %s22
    %p26 = pneg %p20
    %p27 = scmp.eq.s32.totalorder %s11, 1
    %p28 = por %p26, %p27
    %p29 = scmp.ne.s32.totalorder %s21, %s24
    %p30 = scmp.eq.s32.totalorder %s11, 0
    %p31 = por %p29, %p30
    %p32 = scmp.ne.s32.totalorder %s21, %s24
    %p33 = scmp.eq.s32.totalorder %s16, 1
    %p34 = por %p32, %p33
    %p35 = scmp.ne.s32.totalorder %s24, %s25
    %p36 = scmp.eq.s32.totalorder %s16, 0
    %p37 = por %p35, %p36
    %p38 = scmp.ne.s32.totalorder %s24, %s25
    %p39 = scmp.eq.s32.totalorder %s17, 1
    %p40 = por %p38, %p39
    %p42 = scmp.ne.s32.totalorder %s25, %s41
    %p43 = scmp.eq.s32.totalorder %s17, 0
    %p44 = por %p42, %p43
    %s46 = sadd.s32 %s45, 1
    %p49 = scmp.eq.s32.totalorder %s11, 1
    %p50 = scmp.ne.s32.totalorder %s45, %s47
    %p51 = scmp.eq.s32.totalorder %s11, 0
    %p52 = por %p50, %p51
    %p53 = scmp.ne.s32.totalorder %s45, %s47
    %p54 = scmp.eq.s32.totalorder %s16, 1
    %p55 = por %p53, %p54
    %p56 = scmp.ne.s32.totalorder %s47, %s48
    %p57 = scmp.eq.s32.totalorder %s16, 0
    %p58 = por %p56, %p57
    %p59 = scmp.ne.s32.totalorder %s47, %s48
    %p60 = scmp.eq.s32.totalorder %s17, 1
    %p61 = por %p59, %p60
    %p63 = scmp.ne.s32.totalorder %s48, %s62
    %p64 = scmp.eq.s32.totalorder %s17, 0
    %p65 = por %p63, %p64
    %s67 = sadd.s32 %s66, 1
    %p70 = scmp.eq.s32.totalorder %s11, 1
    %p71 = scmp.ne.s32.totalorder %s66, %s68
    %p72 = scmp.eq.s32.totalorder %s11, 0
    %p73 = por %p71, %p72
    %p74 = scmp.ne.s32.totalorder %s66, %s68
    %p75 = scmp.eq.s32.totalorder %s16, 1
    %p76 = por %p74, %p75
    %p77 = scmp.ne.s32.totalorder %s68, %s69
    %p78 = scmp.eq.s32.totalorder %s16, 0
    %p79 = por %p77, %p78
    %p80 = scmp.ne.s32.totalorder %s68, %s69
    %p81 = scmp.eq.s32.totalorder %s17, 1
    %p82 = por %p80, %p81
    %p84 = scmp.ne.s32.totalorder %s69, %s83
    %p85 = scmp.eq.s32.totalorder %s17, 0
    %p86 = por %p84, %p85
    %s88 = sadd.s32 %s87, 1
    %p91 = scmp.eq.s32.totalorder %s11, 1
    %p92 = scmp.ne.s32.totalorder %s87, %s89
    %p93 = scmp.eq.s32.totalorder %s11, 0
    %p94 = por %p92, %p93
    %p95 = scmp.ne.s32.totalorder %s87, %s89
    %p96 = scmp.eq.s32.totalorder %s16, 1
    %p97 = por %p95, %p96
    %p98 = scmp.ne.s32.totalorder %s89, %s90
    %p99 = scmp.eq.s32.totalorder %s16, 0
    %p100 = por %p98, %p99
    %p101 = scmp.ne.s32.totalorder %s89, %s90
    %p102 = scmp.eq.s32.totalorder %s17, 1
    %p103 = por %p101, %p102
    %p105 = scmp.ne.s32.totalorder %s90, %s104
    %p106 = scmp.eq.s32.totalorder %s17, 0
    %p107 = por %p105, %p106
    %s108 = ssub.s32 %s11, %s18
    %p109 = scmp.eq.s32.totalorder %s108, 0
    %s111 = sadd.s32 %s110, 1
    %s112 = scalar_select %p109, %s110, %s111
    %p115 = pneg %p109
    %p116 = scmp.eq.s32.totalorder %s11, 1
    %p117 = por %p115, %p116
    %p118 = scmp.ne.s32.totalorder %s110, %s113
    %p119 = scmp.eq.s32.totalorder %s11, 0
    %p120 = por %p118, %p119
    %p121 = scmp.ne.s32.totalorder %s110, %s113
    %p122 = scmp.eq.s32.totalorder %s16, 1
    %p123 = por %p121, %p122
    %p124 = scmp.ne.s32.totalorder %s113, %s114
    %p125 = scmp.eq.s32.totalorder %s16, 0
    %p126 = por %p124, %p125
    %p127 = scmp.ne.s32.totalorder %s113, %s114
    %p128 = scmp.eq.s32.totalorder %s17, 1
    %p129 = por %p127, %p128
    %p131 = scmp.ne.s32.totalorder %s114, %s130
    %p132 = scmp.eq.s32.totalorder %s17, 0
    %p133 = por %p131, %p132
    %p134 = scmp.le.s32.totalorder 1, %s11
    %p135 = scmp.lt.s32.totalorder %s11, 3
    %p136 = pnand %p134, %p135
    %p137 = pneg %p136
    // Predicated region
    $region9: #{model_forward.1} parent=5 // pred_check
      _
    $region10: #{model_forward.1} parent=5 // pred_check_branch
      %139 = sbr.rel (%p136) target = $region12
    $region11: #{model_forward.1} parent=5 // pred_region
      %s140 = ssub.s32 %s11, 1
      // Predicated region
      $region13: #{model_forward.1} parent=11 // pred_check
        %p141 = pneg %p58
      $region14: #{model_forward.1} parent=11 // pred_check_branch
        %143 = sbr.rel (%p141) target = $region16
      $region15: #{model_forward.1} parent=11 // pred_region
        _
      $region16: #{model_forward.1} parent=11 // pred_fallthru
        _
      // Predicated region
      $region17: #{model_forward.1} parent=11 // pred_check
        %p144 = pneg %p79
      $region18: #{model_forward.1} parent=11 // pred_check_branch
        %146 = sbr.rel (%p144) target = $region20
      $region19: #{model_forward.1} parent=11 // pred_region
        _
      $region20: #{model_forward.1} parent=11 // pred_fallthru
        _
      // Predicated region
      $region21: #{model_forward.1} parent=11 // pred_check
        %p147 = pneg %p100
      $region22: #{model_forward.1} parent=11 // pred_check_branch
        %149 = sbr.rel (%p147) target = $region24
      $region23: #{model_forward.1} parent=11 // pred_region
        _
      $region24: #{model_forward.1} parent=11 // pred_fallthru
        _
    $region12: #{model_forward.1} parent=5 // pred_fallthru
      _
    %p150 = scmp.lt.s32.totalorder %s11, 2
    // Predicated region
    $region25: #{model_forward.1} parent=5 // pred_check
      %p151 = pneg %p150
    $region26: #{model_forward.1} parent=5 // pred_check_branch
      %153 = sbr.rel (%p151) target = $region28
    $region27: #{model_forward.1} parent=5 // pred_region
      // Predicated region
      $region29: #{model_forward.1} parent=27 // pred_check
        %p154 = pneg %p31
      $region30: #{model_forward.1} parent=27 // pred_check_branch
        %156 = sbr.rel (%p154) target = $region32
      $region31: #{model_forward.1} parent=27 // pred_region
        %s157 = smul.u32 6, %s11
        %p158 = scmp.lt.s32.totalorder %s157, 11
        %s159 = scalar_select %p158, %s157, 11
        %s160 = smul.addr %s159, 8
        %s161 = smul.addr %s160, 8
        %s162 = scalar_lea.vmem %s0, %s161
        %s163 = smul.u32 6, %s11
      $region32: #{model_forward.1} parent=27 // pred_fallthru
        _
    $region28: #{model_forward.1} parent=5 // pred_fallthru
      _
    %p164 = scmp.le.s32.totalorder 1, %s11
    %p165 = scmp.lt.s32.totalorder %s11, 3
    %p166 = pnand %p164, %p165
    %p167 = pneg %p166
    // Predicated region
    $region33: #{model_forward.1} parent=5 // pred_check
      _
    $region34: #{model_forward.1} parent=5 // pred_check_branch
      %169 = sbr.rel (%p166) target = $region36
    $region35: #{model_forward.1} parent=5 // pred_region
      %s170 = ssub.s32 %s11, 1
      %s171 = smul.u32 6, %s16
      %p172 = scmp.lt.s32.totalorder %s171, 11
      %s173 = scalar_select %p172, %s171, 11
      %s174 = smul.addr %s173, 8
      %s175 = smul.addr %s174, 8
      %s176 = scalar_lea.vmem %s0, %s175
      %p177 = pneg %p37
      %p178 = pneg %p34
      %p179 = pneg %p58
      %p180 = pneg %p55
      %p181 = pneg %p79
      %p182 = pneg %p76
      %p183 = pneg %p100
      %p184 = pneg %p97
      %p185 = pneg %p126
      %p186 = pneg %p123
      %s187 = smul.u32 6, %s16
      %p188 = scmp.lt.s32.totalorder %s187, 11
      %s189 = scalar_select %p188, %s187, 11
      %s190 = smul.addr %s189, 8
      %s191 = smul.addr %s190, 8
      %s192 = scalar_lea.vmem %s4, %s191
      %s193 = smul.u32 6, %s16
      %p194 = scmp.lt.s32.totalorder %s193, 11
      %s195 = scalar_select %p194, %s193, 11
      %s196 = smul.addr %s195, 8
      %s197 = smul.addr %s196, 8
      %s198 = scalar_lea.vmem %s0, %s197
      %s199 = smul.u32 6, %s16
      %s200 = smul.u32 6, %s16
      %p201 = scmp.lt.s32.totalorder %s200, 11
      %s202 = scalar_select %p201, %s200, 11
      %s203 = smul.addr %s202, 8
      %s204 = smul.addr %s203, 8
      %s205 = scalar_lea.vmem %s4, %s204
      %s206 = smul.u32 6, %s16
      %s207 = sld [smem:[#allocation2]]
      %v208 = vld [vmem:[%s1] sm:$0xff]
      %v209 = vld [vmem:[%s1 + $0x8] sm:$0xff]
      %v210 = vld [vmem:[%s1 + $0x10] sm:$0xff]
      %v211 = vld [vmem:[%s1 + $0x18] sm:$0xff]
      %v212 = vld [vmem:[%s1 + $0x20] sm:$0xff]
      %v213 = vld [vmem:[%s1 + $0x28] sm:$0xff]
      %v214 = vld [vmem:[%s1 + $0x30] sm:$0xff]
      %v215 = vld [vmem:[%s1 + $0x38] sm:$0xff]
      %v216 = vld [vmem:[%s2] sm:$0xff]
      %v217 = vld [vmem:[%s2 + $0x8] sm:$0xff]
      %v218 = vld [vmem:[%s2 + $0x10] sm:$0xff]
      %v219 = vld [vmem:[%s2 + $0x18] sm:$0xff]
      %v220 = vld [vmem:[%s2 + $0x20] sm:$0xff]
      %v221 = vld [vmem:[%s2 + $0x28] sm:$0xff]
      %v222 = vld [vmem:[%s2 + $0x30] sm:$0xff]
      %v223 = vld [vmem:[%s2 + $0x38] sm:$0xff]
      %v224 = vld [vmem:[%s198] sm:$0xff]
      %v225 = vld [vmem:[%s198 + $0x8] sm:$0xff]
      %v226 = vld [vmem:[%s198 + $0x10] sm:$0xff]
      %v227 = vld [vmem:[%s198 + $0x18] sm:$0xff]
      %v228 = vld [vmem:[%s198 + $0x20] sm:$0xff]
      %v229 = vld [vmem:[%s198 + $0x28] sm:$0xff]
      %v230 = vld [vmem:[%s198 + $0x30] sm:$0xff]
      %v231 = vld [vmem:[%s198 + $0x38] sm:$0xff]
      %v232 = vld [vmem:[%s198 + $0x40] sm:$0xff]
      %v233 = vld [vmem:[%s198 + $0x48] sm:$0xff]
      %v234 = vld [vmem:[%s198 + $0x50] sm:$0xff]
      %v235 = vld [vmem:[%s198 + $0x58] sm:$0xff]
      %v236 = vld [vmem:[%s198 + $0x60] sm:$0xff]
      %v237 = vld [vmem:[%s198 + $0x68] sm:$0xff]
      %v238 = vld [vmem:[%s198 + $0x70] sm:$0xff]
      %v239 = vld [vmem:[%s198 + $0x78] sm:$0xff]
      %v240 = vld [vmem:[%s198 + $0x80] sm:$0xff]
      %v241 = vld [vmem:[%s198 + $0x88] sm:$0xff]
      %v242 = vld [vmem:[%s198 + $0x90] sm:$0xff]
      %v243 = vld [vmem:[%s198 + $0x98] sm:$0xff]
      %v244 = vld [vmem:[%s198 + $0xa0] sm:$0xff]
      %v245 = vld [vmem:[%s198 + $0xa8] sm:$0xff]
      %v246 = vld [vmem:[%s198 + $0xb0] sm:$0xff]
      %v247 = vld [vmem:[%s198 + $0xb8] sm:$0xff]
      %v248 = vld [vmem:[%s198 + $0xc0] sm:$0xff]
      %v249 = vld [vmem:[%s198 + $0xc8] sm:$0xff]
      %v250 = vld [vmem:[%s198 + $0xd0] sm:$0xff]
      %v251 = vld [vmem:[%s198 + $0xd8] sm:$0xff]
      %v252 = vld [vmem:[%s198 + $0xe0] sm:$0xff]
      %v253 = vld [vmem:[%s198 + $0xe8] sm:$0xff]
      %v254 = vld [vmem:[%s198 + $0xf0] sm:$0xff]
      %v255 = vld [vmem:[%s198 + $0xf8] sm:$0xff]
      %v256 = vld [vmem:[%s198 + $0x100] sm:$0xff]
      %v257 = vld [vmem:[%s198 + $0x108] sm:$0xff]
      %v258 = vld [vmem:[%s198 + $0x110] sm:$0xff]
      %v259 = vld [vmem:[%s198 + $0x118] sm:$0xff]
      %v260 = vld [vmem:[%s198 + $0x120] sm:$0xff]
      %v261 = vld [vmem:[%s198 + $0x128] sm:$0xff]
      %v262 = vld [vmem:[%s198 + $0x130] sm:$0xff]
      %v263 = vld [vmem:[%s198 + $0x138] sm:$0xff]
      %v264 = vld [vmem:[%s198 + $0x140] sm:$0xff]
      %v265 = vld [vmem:[%s198 + $0x148] sm:$0xff]
      %v266 = vld [vmem:[%s198 + $0x150] sm:$0xff]
      %v267 = vld [vmem:[%s198 + $0x158] sm:$0xff]
      %v268 = vld [vmem:[%s198 + $0x160] sm:$0xff]
      %v269 = vld [vmem:[%s198 + $0x168] sm:$0xff]
      %v270 = vld [vmem:[%s198 + $0x170] sm:$0xff]
      %v271 = vld [vmem:[%s198 + $0x178] sm:$0xff]
      %vm272 = vcmask 523264
      %v274 = vsel %vm272, %v224, 0
      %v277 = vsel %vm272, %v225, 0
      %v280 = vsel %vm272, %v226, 0
      %v283 = vsel %vm272, %v227, 0
      %v286 = vsel %vm272, %v228, 0
      %v289 = vsel %vm272, %v229, 0
      %v292 = vsel %vm272, %v230, 0
      %v295 = vsel %vm272, %v231, 0
      %v298 = vsel %vm272, %v232, 0
      %v301 = vsel %vm272, %v233, 0
      %v304 = vsel %vm272, %v234, 0
      %v307 = vsel %vm272, %v235, 0
      %v310 = vsel %vm272, %v236, 0
      %v313 = vsel %vm272, %v237, 0
      %v316 = vsel %vm272, %v238, 0
      %v319 = vsel %vm272, %v239, 0
      %v322 = vsel %vm272, %v240, 0
      %v325 = vsel %vm272, %v241, 0
      %v328 = vsel %vm272, %v242, 0
      %v331 = vsel %vm272, %v243, 0
      %v334 = vsel %vm272, %v244, 0
      %v337 = vsel %vm272, %v245, 0
      %v340 = vsel %vm272, %v246, 0
      %v343 = vsel %vm272, %v247, 0
      %v346 = vsel %vm272, %v248, 0
      %v349 = vsel %vm272, %v249, 0
      %v352 = vsel %vm272, %v250, 0
      %v355 = vsel %vm272, %v251, 0
      %v358 = vsel %vm272, %v252, 0
      %v361 = vsel %vm272, %v253, 0
      %v364 = vsel %vm272, %v254, 0
      %v367 = vsel %vm272, %v255, 0
      %v370 = vsel %vm272, %v256, 0
      %v373 = vsel %vm272, %v257, 0
      %v376 = vsel %vm272, %v258, 0
      %v379 = vsel %vm272, %v259, 0
      %v382 = vsel %vm272, %v260, 0
      %v385 = vsel %vm272, %v261, 0
      %v388 = vsel %vm272, %v262, 0
      %v391 = vsel %vm272, %v263, 0
      %v394 = vsel %vm272, %v264, 0
      %v397 = vsel %vm272, %v265, 0
      %v400 = vsel %vm272, %v266, 0
      %v403 = vsel %vm272, %v267, 0
      %v406 = vsel %vm272, %v268, 0
      %v409 = vsel %vm272, %v269, 0
      %v412 = vsel %vm272, %v270, 0
      %v415 = vsel %vm272, %v271, 0
      %417 = vmatpush.msra.mxu0 0.0
      %418 = vmatpush.msra.mxu0 0.0
      %419 = vmatpush.msra.mxu0 0.0
      %420 = vmatpush.msra.mxu0 0.0
      %421 = vmatpush.msra.mxu0 0.0
      %422 = vmatpush.msra.mxu0 0.0
      %423 = vmatpush.msra.mxu0 0.0
      %424 = vmatpush.msra.mxu0 0.0
      %v425 = vand.u32 %v223, 4294901760
      %426 = vmatpush.msra.mxu0 %v425
      %v427 = vand.u32 %v222, 4294901760
      %428 = vmatpush.msra.mxu0 %v427
      %v429 = vand.u32 %v221, 4294901760
      %430 = vmatpush.msra.mxu0 %v429
      %v431 = vand.u32 %v220, 4294901760
      %432 = vmatpush.msra.mxu0 %v431
      %v433 = vand.u32 %v219, 4294901760
      %434 = vmatpush.msra.mxu0 %v433
      %v435 = vand.u32 %v218, 4294901760
      %436 = vmatpush.msra.mxu0 %v435
      %v437 = vand.u32 %v217, 4294901760
      %438 = vmatpush.msra.mxu0 %v437
      %v439 = vand.u32 %v216, 4294901760
      %440 = vmatpush.msra.mxu0 %v439
      %v441 = vand.u32 %v274, 4294901760
      %v442 = vsub.f32 %v274, %v441
      %v443 = vand.u32 %v442, 4294901760
      %v444 = vsub.f32 %v442, %v443
      %v445 = vand.u32 %v444, 4294901760
      %446 = vmatmul.f32.gmra.mxu0 %v445
      %v447 = vpop.f32.mrf.mxu0
      %v448 = vadd.f32 0.0, %v447
      %v449 = vand.u32 %v277, 4294901760
      %v450 = vsub.f32 %v277, %v449
      %v451 = vand.u32 %v450, 4294901760
      %v452 = vsub.f32 %v450, %v451
      %v453 = vand.u32 %v452, 4294901760
      %454 = vmatmul.f32.gmra.mxu0 %v453
      %v455 = vpop.f32.mrf.mxu0
      %v456 = vadd.f32 0.0, %v455
      %v457 = vand.u32 %v280, 4294901760
      %v458 = vsub.f32 %v280, %v457
      %v459 = vand.u32 %v458, 4294901760
      %v460 = vsub.f32 %v458, %v459
      %v461 = vand.u32 %v460, 4294901760
      %462 = vmatmul.f32.gmra.mxu0 %v461
      %v463 = vpop.f32.mrf.mxu0
      %v464 = vadd.f32 0.0, %v463
      %v465 = vand.u32 %v283, 4294901760
      %v466 = vsub.f32 %v283, %v465
      %v467 = vand.u32 %v466, 4294901760
      %v468 = vsub.f32 %v466, %v467
      %v469 = vand.u32 %v468, 4294901760
      %470 = vmatmul.f32.gmra.mxu0 %v469
      %v471 = vpop.f32.mrf.mxu0
      %v472 = vadd.f32 0.0, %v471
      %v473 = vand.u32 %v286, 4294901760
      %v474 = vsub.f32 %v286, %v473
      %v475 = vand.u32 %v474, 4294901760
      %v476 = vsub.f32 %v474, %v475
      %v477 = vand.u32 %v476, 4294901760
      %478 = vmatmul.f32.gmra.mxu0 %v477
      %v479 = vpop.f32.mrf.mxu0
      %v480 = vadd.f32 0.0, %v479
      %v481 = vand.u32 %v289, 4294901760
      %v482 = vsub.f32 %v289, %v481
      %v483 = vand.u32 %v482, 4294901760
      %v484 = vsub.f32 %v482, %v483
      %v485 = vand.u32 %v484, 4294901760
      %486 = vmatmul.f32.gmra.mxu0 %v485
      %v487 = vpop.f32.mrf.mxu0
      %v488 = vadd.f32 0.0, %v487
      %v489 = vand.u32 %v292, 4294901760
      %v490 = vsub.f32 %v292, %v489
      %v491 = vand.u32 %v490, 4294901760
      %v492 = vsub.f32 %v490, %v491
      %v493 = vand.u32 %v492, 4294901760
      %494 = vmatmul.f32.gmra.mxu0 %v493
      %v495 = vpop.f32.mrf.mxu0
      %v496 = vadd.f32 0.0, %v495
      %v497 = vand.u32 %v295, 4294901760
      %v498 = vsub.f32 %v295, %v497
      %v499 = vand.u32 %v498, 4294901760
      %v500 = vsub.f32 %v498, %v499
      %v501 = vand.u32 %v500, 4294901760
      %502 = vmatmul.f32.gmra.mxu0 %v501
      %v503 = vpop.f32.mrf.mxu0
      %v504 = vadd.f32 0.0, %v503
      %v505 = vand.u32 %v298, 4294901760
      %v506 = vsub.f32 %v298, %v505
      %v507 = vand.u32 %v506, 4294901760
      %v508 = vsub.f32 %v506, %v507
      %v509 = vand.u32 %v508, 4294901760
      %510 = vmatmul.f32.gmra.mxu0 %v509
      %v511 = vpop.f32.mrf.mxu0
      %v512 = vadd.f32 0.0, %v511
      %v513 = vand.u32 %v301, 4294901760
      %v514 = vsub.f32 %v301, %v513
      %v515 = vand.u32 %v514, 4294901760
      %v516 = vsub.f32 %v514, %v515
      %v517 = vand.u32 %v516, 4294901760
      %518 = vmatmul.f32.gmra.mxu0 %v517
      %v519 = vpop.f32.mrf.mxu0
      %v520 = vadd.f32 0.0, %v519
      %v521 = vand.u32 %v304, 4294901760
      %v522 = vsub.f32 %v304, %v521
      %v523 = vand.u32 %v522, 4294901760
      %v524 = vsub.f32 %v522, %v523
      %v525 = vand.u32 %v524, 4294901760
      %526 = vmatmul.f32.gmra.mxu0 %v525
      %v527 = vpop.f32.mrf.mxu0
      %v528 = vadd.f32 0.0, %v527
      %v529 = vand.u32 %v307, 4294901760
      %v530 = vsub.f32 %v307, %v529
      %v531 = vand.u32 %v530, 4294901760
      %v532 = vsub.f32 %v530, %v531
      %v533 = vand.u32 %v532, 4294901760
      %534 = vmatmul.f32.gmra.mxu0 %v533
      %v535 = vpop.f32.mrf.mxu0
      %v536 = vadd.f32 0.0, %v535
      %v537 = vand.u32 %v310, 4294901760
      %v538 = vsub.f32 %v310, %v537
      %v539 = vand.u32 %v538, 4294901760
      %v540 = vsub.f32 %v538, %v539
      %v541 = vand.u32 %v540, 4294901760
      %542 = vmatmul.f32.gmra.mxu0 %v541
      %v543 = vpop.f32.mrf.mxu0
      %v544 = vadd.f32 0.0, %v543
      %v545 = vand.u32 %v313, 4294901760
      %v546 = vsub.f32 %v313, %v545
      %v547 = vand.u32 %v546, 4294901760
      %v548 = vsub.f32 %v546, %v547
      %v549 = vand.u32 %v548, 4294901760
      %550 = vmatmul.f32.gmra.mxu0 %v549
      %v551 = vpop.f32.mrf.mxu0
      %v552 = vadd.f32 0.0, %v551
      %v553 = vand.u32 %v316, 4294901760
      %v554 = vsub.f32 %v316, %v553
      %v555 = vand.u32 %v554, 4294901760
      %v556 = vsub.f32 %v554, %v555
      %v557 = vand.u32 %v556, 4294901760
      %558 = vmatmul.f32.gmra.mxu0 %v557
      %v559 = vpop.f32.mrf.mxu0
      %v560 = vadd.f32 0.0, %v559
      %v561 = vand.u32 %v319, 4294901760
      %v562 = vsub.f32 %v319, %v561
      %v563 = vand.u32 %v562, 4294901760
      %v564 = vsub.f32 %v562, %v563
      %v565 = vand.u32 %v564, 4294901760
      %566 = vmatmul.f32.gmra.mxu0 %v565
      %v567 = vpop.f32.mrf.mxu0
      %v568 = vadd.f32 0.0, %v567
      %v569 = vand.u32 %v322, 4294901760
      %v570 = vsub.f32 %v322, %v569
      %v571 = vand.u32 %v570, 4294901760
      %v572 = vsub.f32 %v570, %v571
      %v573 = vand.u32 %v572, 4294901760
      %574 = vmatmul.f32.gmra.mxu0 %v573
      %v575 = vpop.f32.mrf.mxu0
      %v576 = vadd.f32 0.0, %v575
      %v577 = vand.u32 %v325, 4294901760
      %v578 = vsub.f32 %v325, %v577
      %v579 = vand.u32 %v578, 4294901760
      %v580 = vsub.f32 %v578, %v579
      %v581 = vand.u32 %v580, 4294901760
      %582 = vmatmul.f32.gmra.mxu0 %v581
      %v583 = vpop.f32.mrf.mxu0
      %v584 = vadd.f32 0.0, %v583
      %v585 = vand.u32 %v328, 4294901760
      %v586 = vsub.f32 %v328, %v585
      %v587 = vand.u32 %v586, 4294901760
      %v588 = vsub.f32 %v586, %v587
      %v589 = vand.u32 %v588, 4294901760
      %590 = vmatmul.f32.gmra.mxu0 %v589
      %v591 = vpop.f32.mrf.mxu0
      %v592 = vadd.f32 0.0, %v591
      %v593 = vand.u32 %v331, 4294901760
      %v594 = vsub.f32 %v331, %v593
      %v595 = vand.u32 %v594, 4294901760
      %v596 = vsub.f32 %v594, %v595
      %v597 = vand.u32 %v596, 4294901760
      %598 = vmatmul.f32.gmra.mxu0 %v597
      %v599 = vpop.f32.mrf.mxu0
      %v600 = vadd.f32 0.0, %v599
      %v601 = vand.u32 %v334, 4294901760
      %v602 = vsub.f32 %v334, %v601
      %v603 = vand.u32 %v602, 4294901760
      %v604 = vsub.f32 %v602, %v603
      %v605 = vand.u32 %v604, 4294901760
      %606 = vmatmul.f32.gmra.mxu0 %v605
      %v607 = vpop.f32.mrf.mxu0
      %v608 = vadd.f32 0.0, %v607
      %v609 = vand.u32 %v337, 4294901760
      %v610 = vsub.f32 %v337, %v609
      %v611 = vand.u32 %v610, 4294901760
      %v612 = vsub.f32 %v610, %v611
      %v613 = vand.u32 %v612, 4294901760
      %614 = vmatmul.f32.gmra.mxu0 %v613
      %v615 = vpop.f32.mrf.mxu0
      %v616 = vadd.f32 0.0, %v615
      %v617 = vand.u32 %v340, 4294901760
      %v618 = vsub.f32 %v340, %v617
      %v619 = vand.u32 %v618, 4294901760
      %v620 = vsub.f32 %v618, %v619
      %v621 = vand.u32 %v620, 4294901760
      %622 = vmatmul.f32.gmra.mxu0 %v621
      %v623 = vpop.f32.mrf.mxu0
      %v624 = vadd.f32 0.0, %v623
      %v625 = vand.u32 %v343, 4294901760
      %v626 = vsub.f32 %v343, %v625
      %v627 = vand.u32 %v626, 4294901760
      %v628 = vsub.f32 %v626, %v627
      %v629 = vand.u32 %v628, 4294901760
      %630 = vmatmul.f32.gmra.mxu0 %v629
      %v631 = vpop.f32.mrf.mxu0
      %v632 = vadd.f32 0.0, %v631
      %v633 = vand.u32 %v346, 4294901760
      %v634 = vsub.f32 %v346, %v633
      %v635 = vand.u32 %v634, 4294901760
      %v636 = vsub.f32 %v634, %v635
      %v637 = vand.u32 %v636, 4294901760
      %638 = vmatmul.f32.gmra.mxu0 %v637
      %v639 = vpop.f32.mrf.mxu0
      %v640 = vadd.f32 0.0, %v639
      %v641 = vand.u32 %v349, 4294901760
      %v642 = vsub.f32 %v349, %v641
      %v643 = vand.u32 %v642, 4294901760
      %v644 = vsub.f32 %v642, %v643
      %v645 = vand.u32 %v644, 4294901760
      %646 = vmatmul.f32.gmra.mxu0 %v645
      %v647 = vpop.f32.mrf.mxu0
      %v648 = vadd.f32 0.0, %v647
      %v649 = vand.u32 %v352, 4294901760
      %v650 = vsub.f32 %v352, %v649
      %v651 = vand.u32 %v650, 4294901760
      %v652 = vsub.f32 %v650, %v651
      %v653 = vand.u32 %v652, 4294901760
      %654 = vmatmul.f32.gmra.mxu0 %v653
      %v655 = vpop.f32.mrf.mxu0
      %v656 = vadd.f32 0.0, %v655
      %v657 = vand.u32 %v355, 4294901760
      %v658 = vsub.f32 %v355, %v657
      %v659 = vand.u32 %v658, 4294901760
      %v660 = vsub.f32 %v658, %v659
      %v661 = vand.u32 %v660, 4294901760
      %662 = vmatmul.f32.gmra.mxu0 %v661
      %v663 = vpop.f32.mrf.mxu0
      %v664 = vadd.f32 0.0, %v663
      %v665 = vand.u32 %v358, 4294901760
      %v666 = vsub.f32 %v358, %v665
      %v667 = vand.u32 %v666, 4294901760
      %v668 = vsub.f32 %v666, %v667
      %v669 = vand.u32 %v668, 4294901760
      %670 = vmatmul.f32.gmra.mxu0 %v669
      %v671 = vpop.f32.mrf.mxu0
      %v672 = vadd.f32 0.0, %v671
      %v673 = vand.u32 %v361, 4294901760
      %v674 = vsub.f32 %v361, %v673
      %v675 = vand.u32 %v674, 4294901760
      %v676 = vsub.f32 %v674, %v675
      %v677 = vand.u32 %v676, 4294901760
      %678 = vmatmul.f32.gmra.mxu0 %v677
      %v679 = vpop.f32.mrf.mxu0
      %v680 = vadd.f32 0.0, %v679
      %v681 = vand.u32 %v364, 4294901760
      %v682 = vsub.f32 %v364, %v681
      %v683 = vand.u32 %v682, 4294901760
      %v684 = vsub.f32 %v682, %v683
      %v685 = vand.u32 %v684, 4294901760
      %686 = vmatmul.f32.gmra.mxu0 %v685
      %v687 = vpop.f32.mrf.mxu0
      %v688 = vadd.f32 0.0, %v687
      %v689 = vand.u32 %v367, 4294901760
      %v690 = vsub.f32 %v367, %v689
      %v691 = vand.u32 %v690, 4294901760
      %v692 = vsub.f32 %v690, %v691
      %v693 = vand.u32 %v692, 4294901760
      %694 = vmatmul.f32.gmra.mxu0 %v693
      %v695 = vpop.f32.mrf.mxu0
      %v696 = vadd.f32 0.0, %v695
      %v697 = vand.u32 %v370, 4294901760
      %v698 = vsub.f32 %v370, %v697
      %v699 = vand.u32 %v698, 4294901760
      %v700 = vsub.f32 %v698, %v699
      %v701 = vand.u32 %v700, 4294901760
      %702 = vmatmul.f32.gmra.mxu0 %v701
      %v703 = vpop.f32.mrf.mxu0
      %v704 = vadd.f32 0.0, %v703
      %v705 = vand.u32 %v373, 4294901760
      %v706 = vsub.f32 %v373, %v705
      %v707 = vand.u32 %v706, 4294901760
      %v708 = vsub.f32 %v706, %v707
      %v709 = vand.u32 %v708, 4294901760
      %710 = vmatmul.f32.gmra.mxu0 %v709
      %v711 = vpop.f32.mrf.mxu0
      %v712 = vadd.f32 0.0, %v711
      %v713 = vand.u32 %v376, 4294901760
      %v714 = vsub.f32 %v376, %v713
      %v715 = vand.u32 %v714, 4294901760
      %v716 = vsub.f32 %v714, %v715
      %v717 = vand.u32 %v716, 4294901760
      %718 = vmatmul.f32.gmra.mxu0 %v717
      %v719 = vpop.f32.mrf.mxu0
      %v720 = vadd.f32 0.0, %v719
      %v721 = vand.u32 %v379, 4294901760
      %v722 = vsub.f32 %v379, %v721
      %v723 = vand.u32 %v722, 4294901760
      %v724 = vsub.f32 %v722, %v723
      %v725 = vand.u32 %v724, 4294901760
      %726 = vmatmul.f32.gmra.mxu0 %v725
      %v727 = vpop.f32.mrf.mxu0
      %v728 = vadd.f32 0.0, %v727
      %v729 = vand.u32 %v382, 4294901760
      %v730 = vsub.f32 %v382, %v729
      %v731 = vand.u32 %v730, 4294901760
      %v732 = vsub.f32 %v730, %v731
      %v733 = vand.u32 %v732, 4294901760
      %734 = vmatmul.f32.gmra.mxu0 %v733
      %v735 = vpop.f32.mrf.mxu0
      %v736 = vadd.f32 0.0, %v735
      %v737 = vand.u32 %v385, 4294901760
      %v738 = vsub.f32 %v385, %v737
      %v739 = vand.u32 %v738, 4294901760
      %v740 = vsub.f32 %v738, %v739
      %v741 = vand.u32 %v740, 4294901760
      %742 = vmatmul.f32.gmra.mxu0 %v741
      %v743 = vpop.f32.mrf.mxu0
      %v744 = vadd.f32 0.0, %v743
      %v745 = vand.u32 %v388, 4294901760
      %v746 = vsub.f32 %v388, %v745
      %v747 = vand.u32 %v746, 4294901760
      %v748 = vsub.f32 %v746, %v747
      %v749 = vand.u32 %v748, 4294901760
      %750 = vmatmul.f32.gmra.mxu0 %v749
      %v751 = vpop.f32.mrf.mxu0
      %v752 = vadd.f32 0.0, %v751
      %v753 = vand.u32 %v391, 4294901760
      %v754 = vsub.f32 %v391, %v753
      %v755 = vand.u32 %v754, 4294901760
      %v756 = vsub.f32 %v754, %v755
      %v757 = vand.u32 %v756, 4294901760
      %758 = vmatmul.f32.gmra.mxu0 %v757
      %v759 = vpop.f32.mrf.mxu0
      %v760 = vadd.f32 0.0, %v759
      %v761 = vand.u32 %v394, 4294901760
      %v762 = vsub.f32 %v394, %v761
      %v763 = vand.u32 %v762, 4294901760
      %v764 = vsub.f32 %v762, %v763
      %v765 = vand.u32 %v764, 4294901760
      %766 = vmatmul.f32.gmra.mxu0 %v765
      %v767 = vpop.f32.mrf.mxu0
      %v768 = vadd.f32 0.0, %v767
      %v769 = vand.u32 %v397, 4294901760
      %v770 = vsub.f32 %v397, %v769
      %v771 = vand.u32 %v770, 4294901760
      %v772 = vsub.f32 %v770, %v771
      %v773 = vand.u32 %v772, 4294901760
      %774 = vmatmul.f32.gmra.mxu0 %v773
      %v775 = vpop.f32.mrf.mxu0
      %v776 = vadd.f32 0.0, %v775
      %v777 = vand.u32 %v400, 4294901760
      %v778 = vsub.f32 %v400, %v777
      %v779 = vand.u32 %v778, 4294901760
      %v780 = vsub.f32 %v778, %v779
      %v781 = vand.u32 %v780, 4294901760
      %782 = vmatmul.f32.gmra.mxu0 %v781
      %v783 = vpop.f32.mrf.mxu0
      %v784 = vadd.f32 0.0, %v783
      %v785 = vand.u32 %v403, 4294901760
      %v786 = vsub.f32 %v403, %v785
      %v787 = vand.u32 %v786, 4294901760
      %v788 = vsub.f32 %v786, %v787
      %v789 = vand.u32 %v788, 4294901760
      %790 = vmatmul.f32.gmra.mxu0 %v789
      %v791 = vpop.f32.mrf.mxu0
      %v792 = vadd.f32 0.0, %v791
      %v793 = vand.u32 %v406, 4294901760
      %v794 = vsub.f32 %v406, %v793
      %v795 = vand.u32 %v794, 4294901760
      %v796 = vsub.f32 %v794, %v795
      %v797 = vand.u32 %v796, 4294901760
      %798 = vmatmul.f32.gmra.mxu0 %v797
      %v799 = vpop.f32.mrf.mxu0
      %v800 = vadd.f32 0.0, %v799
      %v801 = vand.u32 %v409, 4294901760
      %v802 = vsub.f32 %v409, %v801
      %v803 = vand.u32 %v802, 4294901760
      %v804 = vsub.f32 %v802, %v803
      %v805 = vand.u32 %v804, 4294901760
      %806 = vmatmul.f32.gmra.mxu0 %v805
      %v807 = vpop.f32.mrf.mxu0
      %v808 = vadd.f32 0.0, %v807
      %v809 = vand.u32 %v412, 4294901760
      %v810 = vsub.f32 %v412, %v809
      %v811 = vand.u32 %v810, 4294901760
      %v812 = vsub.f32 %v810, %v811
      %v813 = vand.u32 %v812, 4294901760
      %814 = vmatmul.f32.gmra.mxu0 %v813
      %v815 = vpop.f32.mrf.mxu0
      %v816 = vadd.f32 0.0, %v815
      %v817 = vand.u32 %v415, 4294901760
      %v818 = vsub.f32 %v415, %v817
      %v819 = vand.u32 %v818, 4294901760
      %v820 = vsub.f32 %v818, %v819
      %v821 = vand.u32 %v820, 4294901760
      %822 = vmatmul.f32.gmra.mxu0 %v821
      %v823 = vpop.f32.mrf.mxu0
      %v824 = vadd.f32 0.0, %v823
      %825 = vdwg.mxu0
      %826 = vmatpush.msra.mxu0 0.0
      %827 = vmatpush.msra.mxu0 0.0
      %828 = vmatpush.msra.mxu0 0.0
      %829 = vmatpush.msra.mxu0 0.0
      %830 = vmatpush.msra.mxu0 0.0
      %831 = vmatpush.msra.mxu0 0.0
      %832 = vmatpush.msra.mxu0 0.0
      %833 = vmatpush.msra.mxu0 0.0
      %v834 = vand.u32 %v223, 4294901760
      %v835 = vsub.f32 %v223, %v834
      %v836 = vand.u32 %v835, 4294901760
      %v837 = vsub.f32 %v835, %v836
      %v838 = vand.u32 %v837, 4294901760
      %839 = vmatpush.msra.mxu0 %v838
      %v840 = vand.u32 %v222, 4294901760
      %v841 = vsub.f32 %v222, %v840
      %v842 = vand.u32 %v841, 4294901760
      %v843 = vsub.f32 %v841, %v842
      %v844 = vand.u32 %v843, 4294901760
      %845 = vmatpush.msra.mxu0 %v844
      %v846 = vand.u32 %v221, 4294901760
      %v847 = vsub.f32 %v221, %v846
      %v848 = vand.u32 %v847, 4294901760
      %v849 = vsub.f32 %v847, %v848
      %v850 = vand.u32 %v849, 4294901760
      %851 = vmatpush.msra.mxu0 %v850
      %v852 = vand.u32 %v220, 4294901760
      %v853 = vsub.f32 %v220, %v852
      %v854 = vand.u32 %v853, 4294901760
      %v855 = vsub.f32 %v853, %v854
      %v856 = vand.u32 %v855, 4294901760
      %857 = vmatpush.msra.mxu0 %v856
      %v858 = vand.u32 %v219, 4294901760
      %v859 = vsub.f32 %v219, %v858
      %v860 = vand.u32 %v859, 4294901760
      %v861 = vsub.f32 %v859, %v860
      %v862 = vand.u32 %v861, 4294901760
      %863 = vmatpush.msra.mxu0 %v862
      %v864 = vand.u32 %v218, 4294901760
      %v865 = vsub.f32 %v218, %v864
      %v866 = vand.u32 %v865, 4294901760
      %v867 = vsub.f32 %v865, %v866
      %v868 = vand.u32 %v867, 4294901760
      %869 = vmatpush.msra.mxu0 %v868
      %v870 = vand.u32 %v217, 4294901760
      %v871 = vsub.f32 %v217, %v870
      %v872 = vand.u32 %v871, 4294901760
      %v873 = vsub.f32 %v871, %v872
      %v874 = vand.u32 %v873, 4294901760
      %875 = vmatpush.msra.mxu0 %v874
      %v876 = vand.u32 %v216, 4294901760
      %v877 = vsub.f32 %v216, %v876
      %v878 = vand.u32 %v877, 4294901760
      %v879 = vsub.f32 %v877, %v878
      %v880 = vand.u32 %v879, 4294901760
      %881 = vmatpush.msra.mxu0 %v880
      %v882 = vand.u32 %v274, 4294901760
      %883 = vmatmul.f32.gmra.mxu0 %v882
      %v884 = vpop.f32.mrf.mxu0
      %v885 = vadd.f32 %v448, %v884
      %v886 = vand.u32 %v277, 4294901760
      %887 = vmatmul.f32.gmra.mxu0 %v886
      %v888 = vpop.f32.mrf.mxu0
      %v889 = vadd.f32 %v456, %v888
      %v890 = vand.u32 %v280, 4294901760
      %891 = vmatmul.f32.gmra.mxu0 %v890
      %v892 = vpop.f32.mrf.mxu0
      %v893 = vadd.f32 %v464, %v892
      %v894 = vand.u32 %v283, 4294901760
      %895 = vmatmul.f32.gmra.mxu0 %v894
      %v896 = vpop.f32.mrf.mxu0
      %v897 = vadd.f32 %v472, %v896
      %v898 = vand.u32 %v286, 4294901760
      %899 = vmatmul.f32.gmra.mxu0 %v898
      %v900 = vpop.f32.mrf.mxu0
      %v901 = vadd.f32 %v480, %v900
      %v902 = vand.u32 %v289, 4294901760
      %903 = vmatmul.f32.gmra.mxu0 %v902
      %v904 = vpop.f32.mrf.mxu0
      %v905 = vadd.f32 %v488, %v904
      %v906 = vand.u32 %v292, 4294901760
      %907 = vmatmul.f32.gmra.mxu0 %v906
      %v908 = vpop.f32.mrf.mxu0
      %v909 = vadd.f32 %v496, %v908
      %v910 = vand.u32 %v295, 4294901760
      %911 = vmatmul.f32.gmra.mxu0 %v910
      %v912 = vpop.f32.mrf.mxu0
      %v913 = vadd.f32 %v504, %v912
      %v914 = vand.u32 %v298, 4294901760
      %915 = vmatmul.f32.gmra.mxu0 %v914
      %v916 = vpop.f32.mrf.mxu0
      %v917 = vadd.f32 %v512, %v916
      %v918 = vand.u32 %v301, 4294901760
      %919 = vmatmul.f32.gmra.mxu0 %v918
      %v920 = vpop.f32.mrf.mxu0
      %v921 = vadd.f32 %v520, %v920
      %v922 = vand.u32 %v304, 4294901760
      %923 = vmatmul.f32.gmra.mxu0 %v922
      %v924 = vpop.f32.mrf.mxu0
      %v925 = vadd.f32 %v528, %v924
      %v926 = vand.u32 %v307, 4294901760
      %927 = vmatmul.f32.gmra.mxu0 %v926
      %v928 = vpop.f32.mrf.mxu0
      %v929 = vadd.f32 %v536, %v928
      %v930 = vand.u32 %v310, 4294901760
      %931 = vmatmul.f32.gmra.mxu0 %v930
      %v932 = vpop.f32.mrf.mxu0
      %v933 = vadd.f32 %v544, %v932
      %v934 = vand.u32 %v313, 4294901760
      %935 = vmatmul.f32.gmra.mxu0 %v934
      %v936 = vpop.f32.mrf.mxu0
      %v937 = vadd.f32 %v552, %v936
      %v938 = vand.u32 %v316, 4294901760
      %939 = vmatmul.f32.gmra.mxu0 %v938
      %v940 = vpop.f32.mrf.mxu0
      %v941 = vadd.f32 %v560, %v940
      %v942 = vand.u32 %v319, 4294901760
      %943 = vmatmul.f32.gmra.mxu0 %v942
      %v944 = vpop.f32.mrf.mxu0
      %v945 = vadd.f32 %v568, %v944
      %v946 = vand.u32 %v322, 4294901760
      %947 = vmatmul.f32.gmra.mxu0 %v946
      %v948 = vpop.f32.mrf.mxu0
      %v949 = vadd.f32 %v576, %v948
      %v950 = vand.u32 %v325, 4294901760
      %951 = vmatmul.f32.gmra.mxu0 %v950
      %v952 = vpop.f32.mrf.mxu0
      %v953 = vadd.f32 %v584, %v952
      %v954 = vand.u32 %v328, 4294901760
      %955 = vmatmul.f32.gmra.mxu0 %v954
      %v956 = vpop.f32.mrf.mxu0
      %v957 = vadd.f32 %v592, %v956
      %v958 = vand.u32 %v331, 4294901760
      %959 = vmatmul.f32.gmra.mxu0 %v958
      %v960 = vpop.f32.mrf.mxu0
      %v961 = vadd.f32 %v600, %v960
      %v962 = vand.u32 %v334, 4294901760
      %963 = vmatmul.f32.gmra.mxu0 %v962
      %v964 = vpop.f32.mrf.mxu0
      %v965 = vadd.f32 %v608, %v964
      %v966 = vand.u32 %v337, 4294901760
      %967 = vmatmul.f32.gmra.mxu0 %v966
      %v968 = vpop.f32.mrf.mxu0
      %v969 = vadd.f32 %v616, %v968
      %v970 = vand.u32 %v340, 4294901760
      %971 = vmatmul.f32.gmra.mxu0 %v970
      %v972 = vpop.f32.mrf.mxu0
      %v973 = vadd.f32 %v624, %v972
      %v974 = vand.u32 %v343, 4294901760
      %975 = vmatmul.f32.gmra.mxu0 %v974
      %v976 = vpop.f32.mrf.mxu0
      %v977 = vadd.f32 %v632, %v976
      %v978 = vand.u32 %v346, 4294901760
      %979 = vmatmul.f32.gmra.mxu0 %v978
      %v980 = vpop.f32.mrf.mxu0
      %v981 = vadd.f32 %v640, %v980
      %v982 = vand.u32 %v349, 4294901760
      %983 = vmatmul.f32.gmra.mxu0 %v982
      %v984 = vpop.f32.mrf.mxu0
      %v985 = vadd.f32 %v648, %v984
      %v986 = vand.u32 %v352, 4294901760
      %987 = vmatmul.f32.gmra.mxu0 %v986
      %v988 = vpop.f32.mrf.mxu0
      %v989 = vadd.f32 %v656, %v988
      %v990 = vand.u32 %v355, 4294901760
      %991 = vmatmul.f32.gmra.mxu0 %v990
      %v992 = vpop.f32.mrf.mxu0
      %v993 = vadd.f32 %v664, %v992
      %v994 = vand.u32 %v358, 4294901760
      %995 = vmatmul.f32.gmra.mxu0 %v994
      %v996 = vpop.f32.mrf.mxu0
      %v997 = vadd.f32 %v672, %v996
      %v998 = vand.u32 %v361, 4294901760
      %999 = vmatmul.f32.gmra.mxu0 %v998
      %v1000 = vpop.f32.mrf.mxu0
      %v1001 = vadd.f32 %v680, %v1000
      %v1002 = vand.u32 %v364, 4294901760
      %1003 = vmatmul.f32.gmra.mxu0 %v1002
      %v1004 = vpop.f32.mrf.mxu0
      %v1005 = vadd.f32 %v688, %v1004
      %v1006 = vand.u32 %v367, 4294901760
      %1007 = vmatmul.f32.gmra.mxu0 %v1006
      %v1008 = vpop.f32.mrf.mxu0
      %v1009 = vadd.f32 %v696, %v1008
      %v1010 = vand.u32 %v370, 4294901760
      %1011 = vmatmul.f32.gmra.mxu0 %v1010
      %v1012 = vpop.f32.mrf.mxu0
      %v1013 = vadd.f32 %v704, %v1012
      %v1014 = vand.u32 %v373, 4294901760
      %1015 = vmatmul.f32.gmra.mxu0 %v1014
      %v1016 = vpop.f32.mrf.mxu0
      %v1017 = vadd.f32 %v712, %v1016
      %v1018 = vand.u32 %v376, 4294901760
      %1019 = vmatmul.f32.gmra.mxu0 %v1018
      %v1020 = vpop.f32.mrf.mxu0
      %v1021 = vadd.f32 %v720, %v1020
      %v1022 = vand.u32 %v379, 4294901760
      %1023 = vmatmul.f32.gmra.mxu0 %v1022
      %v1024 = vpop.f32.mrf.mxu0
      %v1025 = vadd.f32 %v728, %v1024
      %v1026 = vand.u32 %v382, 4294901760
      %1027 = vmatmul.f32.gmra.mxu0 %v1026
      %v1028 = vpop.f32.mrf.mxu0
      %v1029 = vadd.f32 %v736, %v1028
      %v1030 = vand.u32 %v385, 4294901760
      %1031 = vmatmul.f32.gmra.mxu0 %v1030
      %v1032 = vpop.f32.mrf.mxu0
      %v1033 = vadd.f32 %v744, %v1032
      %v1034 = vand.u32 %v388, 4294901760
      %1035 = vmatmul.f32.gmra.mxu0 %v1034
      %v1036 = vpop.f32.mrf.mxu0
      %v1037 = vadd.f32 %v752, %v1036
      %v1038 = vand.u32 %v391, 4294901760
      %1039 = vmatmul.f32.gmra.mxu0 %v1038
      %v1040 = vpop.f32.mrf.mxu0
      %v1041 = vadd.f32 %v760, %v1040
      %v1042 = vand.u32 %v394, 4294901760
      %1043 = vmatmul.f32.gmra.mxu0 %v1042
      %v1044 = vpop.f32.mrf.mxu0
      %v1045 = vadd.f32 %v768, %v1044
      %v1046 = vand.u32 %v397, 4294901760
      %1047 = vmatmul.f32.gmra.mxu0 %v1046
      %v1048 = vpop.f32.mrf.mxu0
      %v1049 = vadd.f32 %v776, %v1048
      %v1050 = vand.u32 %v400, 4294901760
      %1051 = vmatmul.f32.gmra.mxu0 %v1050
      %v1052 = vpop.f32.mrf.mxu0
      %v1053 = vadd.f32 %v784, %v1052
      %v1054 = vand.u32 %v403, 4294901760
      %1055 = vmatmul.f32.gmra.mxu0 %v1054
      %v1056 = vpop.f32.mrf.mxu0
      %v1057 = vadd.f32 %v792, %v1056
      %v1058 = vand.u32 %v406, 4294901760
      %1059 = vmatmul.f32.gmra.mxu0 %v1058
      %v1060 = vpop.f32.mrf.mxu0
      %v1061 = vadd.f32 %v800, %v1060
      %v1062 = vand.u32 %v409, 4294901760
      %1063 = vmatmul.f32.gmra.mxu0 %v1062
      %v1064 = vpop.f32.mrf.mxu0
      %v1065 = vadd.f32 %v808, %v1064
      %v1066 = vand.u32 %v412, 4294901760
      %1067 = vmatmul.f32.gmra.mxu0 %v1066
      %v1068 = vpop.f32.mrf.mxu0
      %v1069 = vadd.f32 %v816, %v1068
      %v1070 = vand.u32 %v415, 4294901760
      %1071 = vmatmul.f32.gmra.mxu0 %v1070
      %v1072 = vpop.f32.mrf.mxu0
      %v1073 = vadd.f32 %v824, %v1072
      %1074 = vdwg.mxu0
      %1075 = vmatpush.msra.mxu0 0.0
      %1076 = vmatpush.msra.mxu0 0.0
      %1077 = vmatpush.msra.mxu0 0.0
      %1078 = vmatpush.msra.mxu0 0.0
      %1079 = vmatpush.msra.mxu0 0.0
      %1080 = vmatpush.msra.mxu0 0.0
      %1081 = vmatpush.msra.mxu0 0.0
      %1082 = vmatpush.msra.mxu0 0.0
      %v1083 = vand.u32 %v223, 4294901760
      %v1084 = vsub.f32 %v223, %v1083
      %1085 = vmatpush.msra.mxu0 %v1084
      %v1086 = vand.u32 %v222, 4294901760
      %v1087 = vsub.f32 %v222, %v1086
      %1088 = vmatpush.msra.mxu0 %v1087
      %v1089 = vand.u32 %v221, 4294901760
      %v1090 = vsub.f32 %v221, %v1089
      %1091 = vmatpush.msra.mxu0 %v1090
      %v1092 = vand.u32 %v220, 4294901760
      %v1093 = vsub.f32 %v220, %v1092
      %1094 = vmatpush.msra.mxu0 %v1093
      %v1095 = vand.u32 %v219, 4294901760
      %v1096 = vsub.f32 %v219, %v1095
      %1097 = vmatpush.msra.mxu0 %v1096
      %v1098 = vand.u32 %v218, 4294901760
      %v1099 = vsub.f32 %v218, %v1098
      %1100 = vmatpush.msra.mxu0 %v1099
      %v1101 = vand.u32 %v217, 4294901760
      %v1102 = vsub.f32 %v217, %v1101
      %1103 = vmatpush.msra.mxu0 %v1102
      %v1104 = vand.u32 %v216, 4294901760
      %v1105 = vsub.f32 %v216, %v1104
      %1106 = vmatpush.msra.mxu0 %v1105
      %v1107 = vand.u32 %v274, 4294901760
      %v1108 = vsub.f32 %v274, %v1107
      %1109 = vmatmul.f32.gmra.mxu0 %v1108
      %v1110 = vpop.f32.mrf.mxu0
      %v1111 = vadd.f32 %v885, %v1110
      %v1112 = vand.u32 %v277, 4294901760
      %v1113 = vsub.f32 %v277, %v1112
      %1114 = vmatmul.f32.gmra.mxu0 %v1113
      %v1115 = vpop.f32.mrf.mxu0
      %v1116 = vadd.f32 %v889, %v1115
      %v1117 = vand.u32 %v280, 4294901760
      %v1118 = vsub.f32 %v280, %v1117
      %1119 = vmatmul.f32.gmra.mxu0 %v1118
      %v1120 = vpop.f32.mrf.mxu0
      %v1121 = vadd.f32 %v893, %v1120
      %v1122 = vand.u32 %v283, 4294901760
      %v1123 = vsub.f32 %v283, %v1122
      %1124 = vmatmul.f32.gmra.mxu0 %v1123
      %v1125 = vpop.f32.mrf.mxu0
      %v1126 = vadd.f32 %v897, %v1125
      %v1127 = vand.u32 %v286, 4294901760
      %v1128 = vsub.f32 %v286, %v1127
      %1129 = vmatmul.f32.gmra.mxu0 %v1128
      %v1130 = vpop.f32.mrf.mxu0
      %v1131 = vadd.f32 %v901, %v1130
      %v1132 = vand.u32 %v289, 4294901760
      %v1133 = vsub.f32 %v289, %v1132
      %1134 = vmatmul.f32.gmra.mxu0 %v1133
      %v1135 = vpop.f32.mrf.mxu0
      %v1136 = vadd.f32 %v905, %v1135
      %v1137 = vand.u32 %v292, 4294901760
      %v1138 = vsub.f32 %v292, %v1137
      %1139 = vmatmul.f32.gmra.mxu0 %v1138
      %v1140 = vpop.f32.mrf.mxu0
      %v1141 = vadd.f32 %v909, %v1140
      %v1142 = vand.u32 %v295, 4294901760
      %v1143 = vsub.f32 %v295, %v1142
      %1144 = vmatmul.f32.gmra.mxu0 %v1143
      %v1145 = vpop.f32.mrf.mxu0
      %v1146 = vadd.f32 %v913, %v1145
      %v1147 = vand.u32 %v298, 4294901760
      %v1148 = vsub.f32 %v298, %v1147
      %1149 = vmatmul.f32.gmra.mxu0 %v1148
      %v1150 = vpop.f32.mrf.mxu0
      %v1151 = vadd.f32 %v917, %v1150
      %v1152 = vand.u32 %v301, 4294901760
      %v1153 = vsub.f32 %v301, %v1152
      %1154 = vmatmul.f32.gmra.mxu0 %v1153
      %v1155 = vpop.f32.mrf.mxu0
      %v1156 = vadd.f32 %v921, %v1155
      %v1157 = vand.u32 %v304, 4294901760
      %v1158 = vsub.f32 %v304, %v1157
      %1159 = vmatmul.f32.gmra.mxu0 %v1158
      %v1160 = vpop.f32.mrf.mxu0
      %v1161 = vadd.f32 %v925, %v1160
      %v1162 = vand.u32 %v307, 4294901760
      %v1163 = vsub.f32 %v307, %v1162
      %1164 = vmatmul.f32.gmra.mxu0 %v1163
      %v1165 = vpop.f32.mrf.mxu0
      %v1166 = vadd.f32 %v929, %v1165
      %v1167 = vand.u32 %v310, 4294901760
      %v1168 = vsub.f32 %v310, %v1167
      %1169 = vmatmul.f32.gmra.mxu0 %v1168
      %v1170 = vpop.f32.mrf.mxu0
      %v1171 = vadd.f32 %v933, %v1170
      %v1172 = vand.u32 %v313, 4294901760
      %v1173 = vsub.f32 %v313, %v1172
      %1174 = vmatmul.f32.gmra.mxu0 %v1173
      %v1175 = vpop.f32.mrf.mxu0
      %v1176 = vadd.f32 %v937, %v1175
      %v1177 = vand.u32 %v316, 4294901760
      %v1178 = vsub.f32 %v316, %v1177
      %1179 = vmatmul.f32.gmra.mxu0 %v1178
      %v1180 = vpop.f32.mrf.mxu0
      %v1181 = vadd.f32 %v941, %v1180
      %v1182 = vand.u32 %v319, 4294901760
      %v1183 = vsub.f32 %v319, %v1182
      %1184 = vmatmul.f32.gmra.mxu0 %v1183
      %v1185 = vpop.f32.mrf.mxu0
      %v1186 = vadd.f32 %v945, %v1185
      %v1187 = vand.u32 %v322, 4294901760
      %v1188 = vsub.f32 %v322, %v1187
      %1189 = vmatmul.f32.gmra.mxu0 %v1188
      %v1190 = vpop.f32.mrf.mxu0
      %v1191 = vadd.f32 %v949, %v1190
      %v1192 = vand.u32 %v325, 4294901760
      %v1193 = vsub.f32 %v325, %v1192
      %1194 = vmatmul.f32.gmra.mxu0 %v1193
      %v1195 = vpop.f32.mrf.mxu0
      %v1196 = vadd.f32 %v953, %v1195
      %v1197 = vand.u32 %v328, 4294901760
      %v1198 = vsub.f32 %v328, %v1197
      %1199 = vmatmul.f32.gmra.mxu0 %v1198
      %v1200 = vpop.f32.mrf.mxu0
      %v1201 = vadd.f32 %v957, %v1200
      %v1202 = vand.u32 %v331, 4294901760
      %v1203 = vsub.f32 %v331, %v1202
      %1204 = vmatmul.f32.gmra.mxu0 %v1203
      %v1205 = vpop.f32.mrf.mxu0
      %v1206 = vadd.f32 %v961, %v1205
      %v1207 = vand.u32 %v334, 4294901760
      %v1208 = vsub.f32 %v334, %v1207
      %1209 = vmatmul.f32.gmra.mxu0 %v1208
      %v1210 = vpop.f32.mrf.mxu0
      %v1211 = vadd.f32 %v965, %v1210
      %v1212 = vand.u32 %v337, 4294901760
      %v1213 = vsub.f32 %v337, %v1212
      %1214 = vmatmul.f32.gmra.mxu0 %v1213
      %v1215 = vpop.f32.mrf.mxu0
      %v1216 = vadd.f32 %v969, %v1215
      %v1217 = vand.u32 %v340, 4294901760
      %v1218 = vsub.f32 %v340, %v1217
      %1219 = vmatmul.f32.gmra.mxu0 %v1218
      %v1220 = vpop.f32.mrf.mxu0
      %v1221 = vadd.f32 %v973, %v1220
      %v1222 = vand.u32 %v343, 4294901760
      %v1223 = vsub.f32 %v343, %v1222
      %1224 = vmatmul.f32.gmra.mxu0 %v1223
      %v1225 = vpop.f32.mrf.mxu0
      %v1226 = vadd.f32 %v977, %v1225
      %v1227 = vand.u32 %v346, 4294901760
      %v1228 = vsub.f32 %v346, %v1227
      %1229 = vmatmul.f32.gmra.mxu0 %v1228
      %v1230 = vpop.f32.mrf.mxu0
      %v1231 = vadd.f32 %v981, %v1230
      %v1232 = vand.u32 %v349, 4294901760
      %v1233 = vsub.f32 %v349, %v1232
      %1234 = vmatmul.f32.gmra.mxu0 %v1233
      %v1235 = vpop.f32.mrf.mxu0
      %v1236 = vadd.f32 %v985, %v1235
      %v1237 = vand.u32 %v352, 4294901760
      %v1238 = vsub.f32 %v352, %v1237
      %1239 = vmatmul.f32.gmra.mxu0 %v1238
      %v1240 = vpop.f32.mrf.mxu0
      %v1241 = vadd.f32 %v989, %v1240
      %v1242 = vand.u32 %v355, 4294901760
      %v1243 = vsub.f32 %v355, %v1242
      %1244 = vmatmul.f32.gmra.mxu0 %v1243
      %v1245 = vpop.f32.mrf.mxu0
      %v1246 = vadd.f32 %v993, %v1245
      %v1247 = vand.u32 %v358, 4294901760
      %v1248 = vsub.f32 %v358, %v1247
      %1249 = vmatmul.f32.gmra.mxu0 %v1248
      %v1250 = vpop.f32.mrf.mxu0
      %v1251 = vadd.f32 %v997, %v1250
      %v1252 = vand.u32 %v361, 4294901760
      %v1253 = vsub.f32 %v361, %v1252
      %1254 = vmatmul.f32.gmra.mxu0 %v1253
      %v1255 = vpop.f32.mrf.mxu0
      %v1256 = vadd.f32 %v1001, %v1255
      %v1257 = vand.u32 %v364, 4294901760
      %v1258 = vsub.f32 %v364, %v1257
      %1259 = vmatmul.f32.gmra.mxu0 %v1258
      %v1260 = vpop.f32.mrf.mxu0
      %v1261 = vadd.f32 %v1005, %v1260
      %v1262 = vand.u32 %v367, 4294901760
      %v1263 = vsub.f32 %v367, %v1262
      %1264 = vmatmul.f32.gmra.mxu0 %v1263
      %v1265 = vpop.f32.mrf.mxu0
      %v1266 = vadd.f32 %v1009, %v1265
      %v1267 = vand.u32 %v370, 4294901760
      %v1268 = vsub.f32 %v370, %v1267
      %1269 = vmatmul.f32.gmra.mxu0 %v1268
      %v1270 = vpop.f32.mrf.mxu0
      %v1271 = vadd.f32 %v1013, %v1270
      %v1272 = vand.u32 %v373, 4294901760
      %v1273 = vsub.f32 %v373, %v1272
      %1274 = vmatmul.f32.gmra.mxu0 %v1273
      %v1275 = vpop.f32.mrf.mxu0
      %v1276 = vadd.f32 %v1017, %v1275
      %v1277 = vand.u32 %v376, 4294901760
      %v1278 = vsub.f32 %v376, %v1277
      %1279 = vmatmul.f32.gmra.mxu0 %v1278
      %v1280 = vpop.f32.mrf.mxu0
      %v1281 = vadd.f32 %v1021, %v1280
      %v1282 = vand.u32 %v379, 4294901760
      %v1283 = vsub.f32 %v379, %v1282
      %1284 = vmatmul.f32.gmra.mxu0 %v1283
      %v1285 = vpop.f32.mrf.mxu0
      %v1286 = vadd.f32 %v1025, %v1285
      %v1287 = vand.u32 %v382, 4294901760
      %v1288 = vsub.f32 %v382, %v1287
      %1289 = vmatmul.f32.gmra.mxu0 %v1288
      %v1290 = vpop.f32.mrf.mxu0
      %v1291 = vadd.f32 %v1029, %v1290
      %v1292 = vand.u32 %v385, 4294901760
      %v1293 = vsub.f32 %v385, %v1292
      %1294 = vmatmul.f32.gmra.mxu0 %v1293
      %v1295 = vpop.f32.mrf.mxu0
      %v1296 = vadd.f32 %v1033, %v1295
      %v1297 = vand.u32 %v388, 4294901760
      %v1298 = vsub.f32 %v388, %v1297
      %1299 = vmatmul.f32.gmra.mxu0 %v1298
      %v1300 = vpop.f32.mrf.mxu0
      %v1301 = vadd.f32 %v1037, %v1300
      %v1302 = vand.u32 %v391, 4294901760
      %v1303 = vsub.f32 %v391, %v1302
      %1304 = vmatmul.f32.gmra.mxu0 %v1303
      %v1305 = vpop.f32.mrf.mxu0
      %v1306 = vadd.f32 %v1041, %v1305
      %v1307 = vand.u32 %v394, 4294901760
      %v1308 = vsub.f32 %v394, %v1307
      %1309 = vmatmul.f32.gmra.mxu0 %v1308
      %v1310 = vpop.f32.mrf.mxu0
      %v1311 = vadd.f32 %v1045, %v1310
      %v1312 = vand.u32 %v397, 4294901760
      %v1313 = vsub.f32 %v397, %v1312
      %1314 = vmatmul.f32.gmra.mxu0 %v1313
      %v1315 = vpop.f32.mrf.mxu0
      %v1316 = vadd.f32 %v1049, %v1315
      %v1317 = vand.u32 %v400, 4294901760
      %v1318 = vsub.f32 %v400, %v1317
      %1319 = vmatmul.f32.gmra.mxu0 %v1318
      %v1320 = vpop.f32.mrf.mxu0
      %v1321 = vadd.f32 %v1053, %v1320
      %v1322 = vand.u32 %v403, 4294901760
      %v1323 = vsub.f32 %v403, %v1322
      %1324 = vmatmul.f32.gmra.mxu0 %v1323
      %v1325 = vpop.f32.mrf.mxu0
      %v1326 = vadd.f32 %v1057, %v1325
      %v1327 = vand.u32 %v406, 4294901760
      %v1328 = vsub.f32 %v406, %v1327
      %1329 = vmatmul.f32.gmra.mxu0 %v1328
      %v1330 = vpop.f32.mrf.mxu0
      %v1331 = vadd.f32 %v1061, %v1330
      %v1332 = vand.u32 %v409, 4294901760
      %v1333 = vsub.f32 %v409, %v1332
      %1334 = vmatmul.f32.gmra.mxu0 %v1333
      %v1335 = vpop.f32.mrf.mxu0
      %v1336 = vadd.f32 %v1065, %v1335
      %v1337 = vand.u32 %v412, 4294901760
      %v1338 = vsub.f32 %v412, %v1337
      %1339 = vmatmul.f32.gmra.mxu0 %v1338
      %v1340 = vpop.f32.mrf.mxu0
      %v1341 = vadd.f32 %v1069, %v1340
      %v1342 = vand.u32 %v415, 4294901760
      %v1343 = vsub.f32 %v415, %v1342
      %1344 = vmatmul.f32.gmra.mxu0 %v1343
      %v1345 = vpop.f32.mrf.mxu0
      %v1346 = vadd.f32 %v1073, %v1345
      %1347 = vdwg.mxu0
      %1348 = vmatpush.msra.mxu0 0.0
      %1349 = vmatpush.msra.mxu0 0.0
      %1350 = vmatpush.msra.mxu0 0.0
      %1351 = vmatpush.msra.mxu0 0.0
      %1352 = vmatpush.msra.mxu0 0.0
      %1353 = vmatpush.msra.mxu0 0.0
      %1354 = vmatpush.msra.mxu0 0.0
      %1355 = vmatpush.msra.mxu0 0.0
      %v1356 = vand.u32 %v223, 4294901760
      %1357 = vmatpush.msra.mxu0 %v1356
      %v1358 = vand.u32 %v222, 4294901760
      %1359 = vmatpush.msra.mxu0 %v1358
      %v1360 = vand.u32 %v221, 4294901760
      %1361 = vmatpush.msra.mxu0 %v1360
      %v1362 = vand.u32 %v220, 4294901760
      %1363 = vmatpush.msra.mxu0 %v1362
      %v1364 = vand.u32 %v219, 4294901760
      %1365 = vmatpush.msra.mxu0 %v1364
      %v1366 = vand.u32 %v218, 4294901760
      %1367 = vmatpush.msra.mxu0 %v1366
      %v1368 = vand.u32 %v217, 4294901760
      %1369 = vmatpush.msra.mxu0 %v1368
      %v1370 = vand.u32 %v216, 4294901760
      %1371 = vmatpush.msra.mxu0 %v1370
      %v1372 = vand.u32 %v274, 4294901760
      %v1373 = vsub.f32 %v274, %v1372
      %v1374 = vand.u32 %v1373, 4294901760
      %1375 = vmatmul.f32.gmra.mxu0 %v1374
      %v1376 = vpop.f32.mrf.mxu0
      %v1377 = vadd.f32 %v1111, %v1376
      %v1378 = vand.u32 %v277, 4294901760
      %v1379 = vsub.f32 %v277, %v1378
      %v1380 = vand.u32 %v1379, 4294901760
      %1381 = vmatmul.f32.gmra.mxu0 %v1380
      %v1382 = vpop.f32.mrf.mxu0
      %v1383 = vadd.f32 %v1116, %v1382
      %v1384 = vand.u32 %v280, 4294901760
      %v1385 = vsub.f32 %v280, %v1384
      %v1386 = vand.u32 %v1385, 4294901760
      %1387 = vmatmul.f32.gmra.mxu0 %v1386
      %v1388 = vpop.f32.mrf.mxu0
      %v1389 = vadd.f32 %v1121, %v1388
      %v1390 = vand.u32 %v283, 4294901760
      %v1391 = vsub.f32 %v283, %v1390
      %v1392 = vand.u32 %v1391, 4294901760
      %1393 = vmatmul.f32.gmra.mxu0 %v1392
      %v1394 = vpop.f32.mrf.mxu0
      %v1395 = vadd.f32 %v1126, %v1394
      %v1396 = vand.u32 %v286, 4294901760
      %v1397 = vsub.f32 %v286, %v1396
      %v1398 = vand.u32 %v1397, 4294901760
      %1399 = vmatmul.f32.gmra.mxu0 %v1398
      %v1400 = vpop.f32.mrf.mxu0
      %v1401 = vadd.f32 %v1131, %v1400
      %v1402 = vand.u32 %v289, 4294901760
      %v1403 = vsub.f32 %v289, %v1402
      %v1404 = vand.u32 %v1403, 4294901760
      %1405 = vmatmul.f32.gmra.mxu0 %v1404
      %v1406 = vpop.f32.mrf.mxu0
      %v1407 = vadd.f32 %v1136, %v1406
      %v1408 = vand.u32 %v292, 4294901760
      %v1409 = vsub.f32 %v292, %v1408
      %v1410 = vand.u32 %v1409, 4294901760
      %1411 = vmatmul.f32.gmra.mxu0 %v1410
      %v1412 = vpop.f32.mrf.mxu0
      %v1413 = vadd.f32 %v1141, %v1412
      %v1414 = vand.u32 %v295, 4294901760
      %v1415 = vsub.f32 %v295, %v1414
      %v1416 = vand.u32 %v1415, 4294901760
      %1417 = vmatmul.f32.gmra.mxu0 %v1416
      %v1418 = vpop.f32.mrf.mxu0
      %v1419 = vadd.f32 %v1146, %v1418
      %v1420 = vand.u32 %v298, 4294901760
      %v1421 = vsub.f32 %v298, %v1420
      %v1422 = vand.u32 %v1421, 4294901760
      %1423 = vmatmul.f32.gmra.mxu0 %v1422
      %v1424 = vpop.f32.mrf.mxu0
      %v1425 = vadd.f32 %v1151, %v1424
      %v1426 = vand.u32 %v301, 4294901760
      %v1427 = vsub.f32 %v301, %v1426
      %v1428 = vand.u32 %v1427, 4294901760
      %1429 = vmatmul.f32.gmra.mxu0 %v1428
      %v1430 = vpop.f32.mrf.mxu0
      %v1431 = vadd.f32 %v1156, %v1430
      %v1432 = vand.u32 %v304, 4294901760
      %v1433 = vsub.f32 %v304, %v1432
      %v1434 = vand.u32 %v1433, 4294901760
      %1435 = vmatmul.f32.gmra.mxu0 %v1434
      %v1436 = vpop.f32.mrf.mxu0
      %v1437 = vadd.f32 %v1161, %v1436
      %v1438 = vand.u32 %v307, 4294901760
      %v1439 = vsub.f32 %v307, %v1438
      %v1440 = vand.u32 %v1439, 4294901760
      %1441 = vmatmul.f32.gmra.mxu0 %v1440
      %v1442 = vpop.f32.mrf.mxu0
      %v1443 = vadd.f32 %v1166, %v1442
      %v1444 = vand.u32 %v310, 4294901760
      %v1445 = vsub.f32 %v310, %v1444
      %v1446 = vand.u32 %v1445, 4294901760
      %1447 = vmatmul.f32.gmra.mxu0 %v1446
      %v1448 = vpop.f32.mrf.mxu0
      %v1449 = vadd.f32 %v1171, %v1448
      %v1450 = vand.u32 %v313, 4294901760
      %v1451 = vsub.f32 %v313, %v1450
      %v1452 = vand.u32 %v1451, 4294901760
      %1453 = vmatmul.f32.gmra.mxu0 %v1452
      %v1454 = vpop.f32.mrf.mxu0
      %v1455 = vadd.f32 %v1176, %v1454
      %v1456 = vand.u32 %v316, 4294901760
      %v1457 = vsub.f32 %v316, %v1456
      %v1458 = vand.u32 %v1457, 4294901760
      %1459 = vmatmul.f32.gmra.mxu0 %v1458
      %v1460 = vpop.f32.mrf.mxu0
      %v1461 = vadd.f32 %v1181, %v1460
      %v1462 = vand.u32 %v319, 4294901760
      %v1463 = vsub.f32 %v319, %v1462
      %v1464 = vand.u32 %v1463, 4294901760
      %1465 = vmatmul.f32.gmra.mxu0 %v1464
      %v1466 = vpop.f32.mrf.mxu0
      %v1467 = vadd.f32 %v1186, %v1466
      %v1468 = vand.u32 %v322, 4294901760
      %v1469 = vsub.f32 %v322, %v1468
      %v1470 = vand.u32 %v1469, 4294901760
      %1471 = vmatmul.f32.gmra.mxu0 %v1470
      %v1472 = vpop.f32.mrf.mxu0
      %v1473 = vadd.f32 %v1191, %v1472
      %v1474 = vand.u32 %v325, 4294901760
      %v1475 = vsub.f32 %v325, %v1474
      %v1476 = vand.u32 %v1475, 4294901760
      %1477 = vmatmul.f32.gmra.mxu0 %v1476
      %v1478 = vpop.f32.mrf.mxu0
      %v1479 = vadd.f32 %v1196, %v1478
      %v1480 = vand.u32 %v328, 4294901760
      %v1481 = vsub.f32 %v328, %v1480
      %v1482 = vand.u32 %v1481, 4294901760
      %1483 = vmatmul.f32.gmra.mxu0 %v1482
      %v1484 = vpop.f32.mrf.mxu0
      %v1485 = vadd.f32 %v1201, %v1484
      %v1486 = vand.u32 %v331, 4294901760
      %v1487 = vsub.f32 %v331, %v1486
      %v1488 = vand.u32 %v1487, 4294901760
      %1489 = vmatmul.f32.gmra.mxu0 %v1488
      %v1490 = vpop.f32.mrf.mxu0
      %v1491 = vadd.f32 %v1206, %v1490
      %v1492 = vand.u32 %v334, 4294901760
      %v1493 = vsub.f32 %v334, %v1492
      %v1494 = vand.u32 %v1493, 4294901760
      %1495 = vmatmul.f32.gmra.mxu0 %v1494
      %v1496 = vpop.f32.mrf.mxu0
      %v1497 = vadd.f32 %v1211, %v1496
      %v1498 = vand.u32 %v337, 4294901760
      %v1499 = vsub.f32 %v337, %v1498
      %v1500 = vand.u32 %v1499, 4294901760
      %1501 = vmatmul.f32.gmra.mxu0 %v1500
      %v1502 = vpop.f32.mrf.mxu0
      %v1503 = vadd.f32 %v1216, %v1502
      %v1504 = vand.u32 %v340, 4294901760
      %v1505 = vsub.f32 %v340, %v1504
      %v1506 = vand.u32 %v1505, 4294901760
      %1507 = vmatmul.f32.gmra.mxu0 %v1506
      %v1508 = vpop.f32.mrf.mxu0
      %v1509 = vadd.f32 %v1221, %v1508
      %v1510 = vand.u32 %v343, 4294901760
      %v1511 = vsub.f32 %v343, %v1510
      %v1512 = vand.u32 %v1511, 4294901760
      %1513 = vmatmul.f32.gmra.mxu0 %v1512
      %v1514 = vpop.f32.mrf.mxu0
      %v1515 = vadd.f32 %v1226, %v1514
      %v1516 = vand.u32 %v346, 4294901760
      %v1517 = vsub.f32 %v346, %v1516
      %v1518 = vand.u32 %v1517, 4294901760
      %1519 = vmatmul.f32.gmra.mxu0 %v1518
      %v1520 = vpop.f32.mrf.mxu0
      %v1521 = vadd.f32 %v1231, %v1520
      %v1522 = vand.u32 %v349, 4294901760
      %v1523 = vsub.f32 %v349, %v1522
      %v1524 = vand.u32 %v1523, 4294901760
      %1525 = vmatmul.f32.gmra.mxu0 %v1524
      %v1526 = vpop.f32.mrf.mxu0
      %v1527 = vadd.f32 %v1236, %v1526
      %v1528 = vand.u32 %v352, 4294901760
      %v1529 = vsub.f32 %v352, %v1528
      %v1530 = vand.u32 %v1529, 4294901760
      %1531 = vmatmul.f32.gmra.mxu0 %v1530
      %v1532 = vpop.f32.mrf.mxu0
      %v1533 = vadd.f32 %v1241, %v1532
      %v1534 = vand.u32 %v355, 4294901760
      %v1535 = vsub.f32 %v355, %v1534
      %v1536 = vand.u32 %v1535, 4294901760
      %1537 = vmatmul.f32.gmra.mxu0 %v1536
      %v1538 = vpop.f32.mrf.mxu0
      %v1539 = vadd.f32 %v1246, %v1538
      %v1540 = vand.u32 %v358, 4294901760
      %v1541 = vsub.f32 %v358, %v1540
      %v1542 = vand.u32 %v1541, 4294901760
      %1543 = vmatmul.f32.gmra.mxu0 %v1542
      %v1544 = vpop.f32.mrf.mxu0
      %v1545 = vadd.f32 %v1251, %v1544
      %v1546 = vand.u32 %v361, 4294901760
      %v1547 = vsub.f32 %v361, %v1546
      %v1548 = vand.u32 %v1547, 4294901760
      %1549 = vmatmul.f32.gmra.mxu0 %v1548
      %v1550 = vpop.f32.mrf.mxu0
      %v1551 = vadd.f32 %v1256, %v1550
      %v1552 = vand.u32 %v364, 4294901760
      %v1553 = vsub.f32 %v364, %v1552
      %v1554 = vand.u32 %v1553, 4294901760
      %1555 = vmatmul.f32.gmra.mxu0 %v1554
      %v1556 = vpop.f32.mrf.mxu0
      %v1557 = vadd.f32 %v1261, %v1556
      %v1558 = vand.u32 %v367, 4294901760
      %v1559 = vsub.f32 %v367, %v1558
      %v1560 = vand.u32 %v1559, 4294901760
      %1561 = vmatmul.f32.gmra.mxu0 %v1560
      %v1562 = vpop.f32.mrf.mxu0
      %v1563 = vadd.f32 %v1266, %v1562
      %v1564 = vand.u32 %v370, 4294901760
      %v1565 = vsub.f32 %v370, %v1564
      %v1566 = vand.u32 %v1565, 4294901760
      %1567 = vmatmul.f32.gmra.mxu0 %v1566
      %v1568 = vpop.f32.mrf.mxu0
      %v1569 = vadd.f32 %v1271, %v1568
      %v1570 = vand.u32 %v373, 4294901760
      %v1571 = vsub.f32 %v373, %v1570
      %v1572 = vand.u32 %v1571, 4294901760
      %1573 = vmatmul.f32.gmra.mxu0 %v1572
      %v1574 = vpop.f32.mrf.mxu0
      %v1575 = vadd.f32 %v1276, %v1574
      %v1576 = vand.u32 %v376, 4294901760
      %v1577 = vsub.f32 %v376, %v1576
      %v1578 = vand.u32 %v1577, 4294901760
      %1579 = vmatmul.f32.gmra.mxu0 %v1578
      %v1580 = vpop.f32.mrf.mxu0
      %v1581 = vadd.f32 %v1281, %v1580
      %v1582 = vand.u32 %v379, 4294901760
      %v1583 = vsub.f32 %v379, %v1582
      %v1584 = vand.u32 %v1583, 4294901760
      %1585 = vmatmul.f32.gmra.mxu0 %v1584
      %v1586 = vpop.f32.mrf.mxu0
      %v1587 = vadd.f32 %v1286, %v1586
      %v1588 = vand.u32 %v382, 4294901760
      %v1589 = vsub.f32 %v382, %v1588
      %v1590 = vand.u32 %v1589, 4294901760
      %1591 = vmatmul.f32.gmra.mxu0 %v1590
      %v1592 = vpop.f32.mrf.mxu0
      %v1593 = vadd.f32 %v1291, %v1592
      %v1594 = vand.u32 %v385, 4294901760
      %v1595 = vsub.f32 %v385, %v1594
      %v1596 = vand.u32 %v1595, 4294901760
      %1597 = vmatmul.f32.gmra.mxu0 %v1596
      %v1598 = vpop.f32.mrf.mxu0
      %v1599 = vadd.f32 %v1296, %v1598
      %v1600 = vand.u32 %v388, 4294901760
      %v1601 = vsub.f32 %v388, %v1600
      %v1602 = vand.u32 %v1601, 4294901760
      %1603 = vmatmul.f32.gmra.mxu0 %v1602
      %v1604 = vpop.f32.mrf.mxu0
      %v1605 = vadd.f32 %v1301, %v1604
      %v1606 = vand.u32 %v391, 4294901760
      %v1607 = vsub.f32 %v391, %v1606
      %v1608 = vand.u32 %v1607, 4294901760
      %1609 = vmatmul.f32.gmra.mxu0 %v1608
      %v1610 = vpop.f32.mrf.mxu0
      %v1611 = vadd.f32 %v1306, %v1610
      %v1612 = vand.u32 %v394, 4294901760
      %v1613 = vsub.f32 %v394, %v1612
      %v1614 = vand.u32 %v1613, 4294901760
      %1615 = vmatmul.f32.gmra.mxu0 %v1614
      %v1616 = vpop.f32.mrf.mxu0
      %v1617 = vadd.f32 %v1311, %v1616
      %v1618 = vand.u32 %v397, 4294901760
      %v1619 = vsub.f32 %v397, %v1618
      %v1620 = vand.u32 %v1619, 4294901760
      %1621 = vmatmul.f32.gmra.mxu0 %v1620
      %v1622 = vpop.f32.mrf.mxu0
      %v1623 = vadd.f32 %v1316, %v1622
      %v1624 = vand.u32 %v400, 4294901760
      %v1625 = vsub.f32 %v400, %v1624
      %v1626 = vand.u32 %v1625, 4294901760
      %1627 = vmatmul.f32.gmra.mxu0 %v1626
      %v1628 = vpop.f32.mrf.mxu0
      %v1629 = vadd.f32 %v1321, %v1628
      %v1630 = vand.u32 %v403, 4294901760
      %v1631 = vsub.f32 %v403, %v1630
      %v1632 = vand.u32 %v1631, 4294901760
      %1633 = vmatmul.f32.gmra.mxu0 %v1632
      %v1634 = vpop.f32.mrf.mxu0
      %v1635 = vadd.f32 %v1326, %v1634
      %v1636 = vand.u32 %v406, 4294901760
      %v1637 = vsub.f32 %v406, %v1636
      %v1638 = vand.u32 %v1637, 4294901760
      %1639 = vmatmul.f32.gmra.mxu0 %v1638
      %v1640 = vpop.f32.mrf.mxu0
      %v1641 = vadd.f32 %v1331, %v1640
      %v1642 = vand.u32 %v409, 4294901760
      %v1643 = vsub.f32 %v409, %v1642
      %v1644 = vand.u32 %v1643, 4294901760
      %1645 = vmatmul.f32.gmra.mxu0 %v1644
      %v1646 = vpop.f32.mrf.mxu0
      %v1647 = vadd.f32 %v1336, %v1646
      %v1648 = vand.u32 %v412, 4294901760
      %v1649 = vsub.f32 %v412, %v1648
      %v1650 = vand.u32 %v1649, 4294901760
      %1651 = vmatmul.f32.gmra.mxu0 %v1650
      %v1652 = vpop.f32.mrf.mxu0
      %v1653 = vadd.f32 %v1341, %v1652
      %v1654 = vand.u32 %v415, 4294901760
      %v1655 = vsub.f32 %v415, %v1654
      %v1656 = vand.u32 %v1655, 4294901760
      %1657 = vmatmul.f32.gmra.mxu0 %v1656
      %v1658 = vpop.f32.mrf.mxu0
      %v1659 = vadd.f32 %v1346, %v1658
      %1660 = vdwg.mxu0
      %1661 = vmatpush.msra.mxu0 0.0
      %1662 = vmatpush.msra.mxu0 0.0
      %1663 = vmatpush.msra.mxu0 0.0
      %1664 = vmatpush.msra.mxu0 0.0
      %1665 = vmatpush.msra.mxu0 0.0
      %1666 = vmatpush.msra.mxu0 0.0
      %1667 = vmatpush.msra.mxu0 0.0
      %1668 = vmatpush.msra.mxu0 0.0
      %v1669 = vand.u32 %v223, 4294901760
      %v1670 = vsub.f32 %v223, %v1669
      %v1671 = vand.u32 %v1670, 4294901760
      %1672 = vmatpush.msra.mxu0 %v1671
      %v1673 = vand.u32 %v222, 4294901760
      %v1674 = vsub.f32 %v222, %v1673
      %v1675 = vand.u32 %v1674, 4294901760
      %1676 = vmatpush.msra.mxu0 %v1675
      %v1677 = vand.u32 %v221, 4294901760
      %v1678 = vsub.f32 %v221, %v1677
      %v1679 = vand.u32 %v1678, 4294901760
      %1680 = vmatpush.msra.mxu0 %v1679
      %v1681 = vand.u32 %v220, 4294901760
      %v1682 = vsub.f32 %v220, %v1681
      %v1683 = vand.u32 %v1682, 4294901760
      %1684 = vmatpush.msra.mxu0 %v1683
      %v1685 = vand.u32 %v219, 4294901760
      %v1686 = vsub.f32 %v219, %v1685
      %v1687 = vand.u32 %v1686, 4294901760
      %1688 = vmatpush.msra.mxu0 %v1687
      %v1689 = vand.u32 %v218, 4294901760
      %v1690 = vsub.f32 %v218, %v1689
      %v1691 = vand.u32 %v1690, 4294901760
      %1692 = vmatpush.msra.mxu0 %v1691
      %v1693 = vand.u32 %v217, 4294901760
      %v1694 = vsub.f32 %v217, %v1693
      %v1695 = vand.u32 %v1694, 4294901760
      %1696 = vmatpush.msra.mxu0 %v1695
      %v1697 = vand.u32 %v216, 4294901760
      %v1698 = vsub.f32 %v216, %v1697
      %v1699 = vand.u32 %v1698, 4294901760
      %1700 = vmatpush.msra.mxu0 %v1699
      %v1701 = vand.u32 %v274, 4294901760
      %1702 = vmatmul.f32.gmra.mxu0 %v1701
      %v1703 = vpop.f32.mrf.mxu0
      %v1704 = vadd.f32 %v1377, %v1703
      %v1705 = vand.u32 %v277, 4294901760
      %1706 = vmatmul.f32.gmra.mxu0 %v1705
      %v1707 = vpop.f32.mrf.mxu0
      %v1708 = vadd.f32 %v1383, %v1707
      %v1709 = vand.u32 %v280, 4294901760
      %1710 = vmatmul.f32.gmra.mxu0 %v1709
      %v1711 = vpop.f32.mrf.mxu0
      %v1712 = vadd.f32 %v1389, %v1711
      %v1713 = vand.u32 %v283, 4294901760
      %1714 = vmatmul.f32.gmra.mxu0 %v1713
      %v1715 = vpop.f32.mrf.mxu0
      %v1716 = vadd.f32 %v1395, %v1715
      %v1717 = vand.u32 %v286, 4294901760
      %1718 = vmatmul.f32.gmra.mxu0 %v1717
      %v1719 = vpop.f32.mrf.mxu0
      %v1720 = vadd.f32 %v1401, %v1719
      %v1721 = vand.u32 %v289, 4294901760
      %1722 = vmatmul.f32.gmra.mxu0 %v1721
      %v1723 = vpop.f32.mrf.mxu0
      %v1724 = vadd.f32 %v1407, %v1723
      %v1725 = vand.u32 %v292, 4294901760
      %1726 = vmatmul.f32.gmra.mxu0 %v1725
      %v1727 = vpop.f32.mrf.mxu0
      %v1728 = vadd.f32 %v1413, %v1727
      %v1729 = vand.u32 %v295, 4294901760
      %1730 = vmatmul.f32.gmra.mxu0 %v1729
      %v1731 = vpop.f32.mrf.mxu0
      %v1732 = vadd.f32 %v1419, %v1731
      %v1733 = vand.u32 %v298, 4294901760
      %1734 = vmatmul.f32.gmra.mxu0 %v1733
      %v1735 = vpop.f32.mrf.mxu0
      %v1736 = vadd.f32 %v1425, %v1735
      %v1737 = vand.u32 %v301, 4294901760
      %1738 = vmatmul.f32.gmra.mxu0 %v1737
      %v1739 = vpop.f32.mrf.mxu0
      %v1740 = vadd.f32 %v1431, %v1739
      %v1741 = vand.u32 %v304, 4294901760
      %1742 = vmatmul.f32.gmra.mxu0 %v1741
      %v1743 = vpop.f32.mrf.mxu0
      %v1744 = vadd.f32 %v1437, %v1743
      %v1745 = vand.u32 %v307, 4294901760
      %1746 = vmatmul.f32.gmra.mxu0 %v1745
      %v1747 = vpop.f32.mrf.mxu0
      %v1748 = vadd.f32 %v1443, %v1747
      %v1749 = vand.u32 %v310, 4294901760
      %1750 = vmatmul.f32.gmra.mxu0 %v1749
      %v1751 = vpop.f32.mrf.mxu0
      %v1752 = vadd.f32 %v1449, %v1751
      %v1753 = vand.u32 %v313, 4294901760
      %1754 = vmatmul.f32.gmra.mxu0 %v1753
      %v1755 = vpop.f32.mrf.mxu0
      %v1756 = vadd.f32 %v1455, %v1755
      %v1757 = vand.u32 %v316, 4294901760
      %1758 = vmatmul.f32.gmra.mxu0 %v1757
      %v1759 = vpop.f32.mrf.mxu0
      %v1760 = vadd.f32 %v1461, %v1759
      %v1761 = vand.u32 %v319, 4294901760
      %1762 = vmatmul.f32.gmra.mxu0 %v1761
      %v1763 = vpop.f32.mrf.mxu0
      %v1764 = vadd.f32 %v1467, %v1763
      %v1765 = vand.u32 %v322, 4294901760
      %1766 = vmatmul.f32.gmra.mxu0 %v1765
      %v1767 = vpop.f32.mrf.mxu0
      %v1768 = vadd.f32 %v1473, %v1767
      %v1769 = vand.u32 %v325, 4294901760
      %1770 = vmatmul.f32.gmra.mxu0 %v1769
      %v1771 = vpop.f32.mrf.mxu0
      %v1772 = vadd.f32 %v1479, %v1771
      %v1773 = vand.u32 %v328, 4294901760
      %1774 = vmatmul.f32.gmra.mxu0 %v1773
      %v1775 = vpop.f32.mrf.mxu0
      %v1776 = vadd.f32 %v1485, %v1775
      %v1777 = vand.u32 %v331, 4294901760
      %1778 = vmatmul.f32.gmra.mxu0 %v1777
      %v1779 = vpop.f32.mrf.mxu0
      %v1780 = vadd.f32 %v1491, %v1779
      %v1781 = vand.u32 %v334, 4294901760
      %1782 = vmatmul.f32.gmra.mxu0 %v1781
      %v1783 = vpop.f32.mrf.mxu0
      %v1784 = vadd.f32 %v1497, %v1783
      %v1785 = vand.u32 %v337, 4294901760
      %1786 = vmatmul.f32.gmra.mxu0 %v1785
      %v1787 = vpop.f32.mrf.mxu0
      %v1788 = vadd.f32 %v1503, %v1787
      %v1789 = vand.u32 %v340, 4294901760
      %1790 = vmatmul.f32.gmra.mxu0 %v1789
      %v1791 = vpop.f32.mrf.mxu0
      %v1792 = vadd.f32 %v1509, %v1791
      %v1793 = vand.u32 %v343, 4294901760
      %1794 = vmatmul.f32.gmra.mxu0 %v1793
      %v1795 = vpop.f32.mrf.mxu0
      %v1796 = vadd.f32 %v1515, %v1795
      %v1797 = vand.u32 %v346, 4294901760
      %1798 = vmatmul.f32.gmra.mxu0 %v1797
      %v1799 = vpop.f32.mrf.mxu0
      %v1800 = vadd.f32 %v1521, %v1799
      %v1801 = vand.u32 %v349, 4294901760
      %1802 = vmatmul.f32.gmra.mxu0 %v1801
      %v1803 = vpop.f32.mrf.mxu0
      %v1804 = vadd.f32 %v1527, %v1803
      %v1805 = vand.u32 %v352, 4294901760
      %1806 = vmatmul.f32.gmra.mxu0 %v1805
      %v1807 = vpop.f32.mrf.mxu0
      %v1808 = vadd.f32 %v1533, %v1807
      %v1809 = vand.u32 %v355, 4294901760
      %1810 = vmatmul.f32.gmra.mxu0 %v1809
      %v1811 = vpop.f32.mrf.mxu0
      %v1812 = vadd.f32 %v1539, %v1811
      %v1813 = vand.u32 %v358, 4294901760
      %1814 = vmatmul.f32.gmra.mxu0 %v1813
      %v1815 = vpop.f32.mrf.mxu0
      %v1816 = vadd.f32 %v1545, %v1815
      %v1817 = vand.u32 %v361, 4294901760
      %1818 = vmatmul.f32.gmra.mxu0 %v1817
      %v1819 = vpop.f32.mrf.mxu0
      %v1820 = vadd.f32 %v1551, %v1819
      %v1821 = vand.u32 %v364, 4294901760
      %1822 = vmatmul.f32.gmra.mxu0 %v1821
      %v1823 = vpop.f32.mrf.mxu0
      %v1824 = vadd.f32 %v1557, %v1823
      %v1825 = vand.u32 %v367, 4294901760
      %1826 = vmatmul.f32.gmra.mxu0 %v1825
      %v1827 = vpop.f32.mrf.mxu0
      %v1828 = vadd.f32 %v1563, %v1827
      %v1829 = vand.u32 %v370, 4294901760
      %1830 = vmatmul.f32.gmra.mxu0 %v1829
      %v1831 = vpop.f32.mrf.mxu0
      %v1832 = vadd.f32 %v1569, %v1831
      %v1833 = vand.u32 %v373, 4294901760
      %1834 = vmatmul.f32.gmra.mxu0 %v1833
      %v1835 = vpop.f32.mrf.mxu0
      %v1836 = vadd.f32 %v1575, %v1835
      %v1837 = vand.u32 %v376, 4294901760
      %1838 = vmatmul.f32.gmra.mxu0 %v1837
      %v1839 = vpop.f32.mrf.mxu0
      %v1840 = vadd.f32 %v1581, %v1839
      %v1841 = vand.u32 %v379, 4294901760
      %1842 = vmatmul.f32.gmra.mxu0 %v1841
      %v1843 = vpop.f32.mrf.mxu0
      %v1844 = vadd.f32 %v1587, %v1843
      %v1845 = vand.u32 %v382, 4294901760
      %1846 = vmatmul.f32.gmra.mxu0 %v1845
      %v1847 = vpop.f32.mrf.mxu0
      %v1848 = vadd.f32 %v1593, %v1847
      %v1849 = vand.u32 %v385, 4294901760
      %1850 = vmatmul.f32.gmra.mxu0 %v1849
      %v1851 = vpop.f32.mrf.mxu0
      %v1852 = vadd.f32 %v1599, %v1851
      %v1853 = vand.u32 %v388, 4294901760
      %1854 = vmatmul.f32.gmra.mxu0 %v1853
      %v1855 = vpop.f32.mrf.mxu0
      %v1856 = vadd.f32 %v1605, %v1855
      %v1857 = vand.u32 %v391, 4294901760
      %1858 = vmatmul.f32.gmra.mxu0 %v1857
      %v1859 = vpop.f32.mrf.mxu0
      %v1860 = vadd.f32 %v1611, %v1859
      %v1861 = vand.u32 %v394, 4294901760
      %1862 = vmatmul.f32.gmra.mxu0 %v1861
      %v1863 = vpop.f32.mrf.mxu0
      %v1864 = vadd.f32 %v1617, %v1863
      %v1865 = vand.u32 %v397, 4294901760
      %1866 = vmatmul.f32.gmra.mxu0 %v1865
      %v1867 = vpop.f32.mrf.mxu0
      %v1868 = vadd.f32 %v1623, %v1867
      %v1869 = vand.u32 %v400, 4294901760
      %1870 = vmatmul.f32.gmra.mxu0 %v1869
      %v1871 = vpop.f32.mrf.mxu0
      %v1872 = vadd.f32 %v1629, %v1871
      %v1873 = vand.u32 %v403, 4294901760
      %1874 = vmatmul.f32.gmra.mxu0 %v1873
      %v1875 = vpop.f32.mrf.mxu0
      %v1876 = vadd.f32 %v1635, %v1875
      %v1877 = vand.u32 %v406, 4294901760
      %1878 = vmatmul.f32.gmra.mxu0 %v1877
      %v1879 = vpop.f32.mrf.mxu0
      %v1880 = vadd.f32 %v1641, %v1879
      %v1881 = vand.u32 %v409, 4294901760
      %1882 = vmatmul.f32.gmra.mxu0 %v1881
      %v1883 = vpop.f32.mrf.mxu0
      %v1884 = vadd.f32 %v1647, %v1883
      %v1885 = vand.u32 %v412, 4294901760
      %1886 = vmatmul.f32.gmra.mxu0 %v1885
      %v1887 = vpop.f32.mrf.mxu0
      %v1888 = vadd.f32 %v1653, %v1887
      %v1889 = vand.u32 %v415, 4294901760
      %1890 = vmatmul.f32.gmra.mxu0 %v1889
      %v1891 = vpop.f32.mrf.mxu0
      %v1892 = vadd.f32 %v1659, %v1891
      %1893 = vdwg.mxu0
      %1894 = vmatpush.msra.mxu0 0.0
      %1895 = vmatpush.msra.mxu0 0.0
      %1896 = vmatpush.msra.mxu0 0.0
      %1897 = vmatpush.msra.mxu0 0.0
      %1898 = vmatpush.msra.mxu0 0.0
      %1899 = vmatpush.msra.mxu0 0.0
      %1900 = vmatpush.msra.mxu0 0.0
      %1901 = vmatpush.msra.mxu0 0.0
      %v1902 = vand.u32 %v223, 4294901760
      %1903 = vmatpush.msra.mxu0 %v1902
      %v1904 = vand.u32 %v222, 4294901760
      %1905 = vmatpush.msra.mxu0 %v1904
      %v1906 = vand.u32 %v221, 4294901760
      %1907 = vmatpush.msra.mxu0 %v1906
      %v1908 = vand.u32 %v220, 4294901760
      %1909 = vmatpush.msra.mxu0 %v1908
      %v1910 = vand.u32 %v219, 4294901760
      %1911 = vmatpush.msra.mxu0 %v1910
      %v1912 = vand.u32 %v218, 4294901760
      %1913 = vmatpush.msra.mxu0 %v1912
      %v1914 = vand.u32 %v217, 4294901760
      %1915 = vmatpush.msra.mxu0 %v1914
      %v1916 = vand.u32 %v216, 4294901760
      %1917 = vmatpush.msra.mxu0 %v1916
      %v1918 = vand.u32 %v274, 4294901760
      %1919 = vmatmul.f32.gmra.mxu0 %v1918
      %v1920 = vpop.f32.mrf.mxu0
      %v1921 = vadd.f32 %v1704, %v1920
      %v1922 = vand.u32 %v277, 4294901760
      %1923 = vmatmul.f32.gmra.mxu0 %v1922
      %v1924 = vpop.f32.mrf.mxu0
      %v1925 = vadd.f32 %v1708, %v1924
      %v1926 = vand.u32 %v280, 4294901760
      %1927 = vmatmul.f32.gmra.mxu0 %v1926
      %v1928 = vpop.f32.mrf.mxu0
      %v1929 = vadd.f32 %v1712, %v1928
      %v1930 = vand.u32 %v283, 4294901760
      %1931 = vmatmul.f32.gmra.mxu0 %v1930
      %v1932 = vpop.f32.mrf.mxu0
      %v1933 = vadd.f32 %v1716, %v1932
      %v1934 = vand.u32 %v286, 4294901760
      %1935 = vmatmul.f32.gmra.mxu0 %v1934
      %v1936 = vpop.f32.mrf.mxu0
      %v1937 = vadd.f32 %v1720, %v1936
      %v1938 = vand.u32 %v289, 4294901760
      %1939 = vmatmul.f32.gmra.mxu0 %v1938
      %v1940 = vpop.f32.mrf.mxu0
      %v1941 = vadd.f32 %v1724, %v1940
      %v1942 = vand.u32 %v292, 4294901760
      %1943 = vmatmul.f32.gmra.mxu0 %v1942
      %v1944 = vpop.f32.mrf.mxu0
      %v1945 = vadd.f32 %v1728, %v1944
      %v1946 = vand.u32 %v295, 4294901760
      %1947 = vmatmul.f32.gmra.mxu0 %v1946
      %v1948 = vpop.f32.mrf.mxu0
      %v1949 = vadd.f32 %v1732, %v1948
      %v1950 = vand.u32 %v298, 4294901760
      %1951 = vmatmul.f32.gmra.mxu0 %v1950
      %v1952 = vpop.f32.mrf.mxu0
      %v1953 = vadd.f32 %v1736, %v1952
      %v1954 = vand.u32 %v301, 4294901760
      %1955 = vmatmul.f32.gmra.mxu0 %v1954
      %v1956 = vpop.f32.mrf.mxu0
      %v1957 = vadd.f32 %v1740, %v1956
      %v1958 = vand.u32 %v304, 4294901760
      %1959 = vmatmul.f32.gmra.mxu0 %v1958
      %v1960 = vpop.f32.mrf.mxu0
      %v1961 = vadd.f32 %v1744, %v1960
      %v1962 = vand.u32 %v307, 4294901760
      %1963 = vmatmul.f32.gmra.mxu0 %v1962
      %v1964 = vpop.f32.mrf.mxu0
      %v1965 = vadd.f32 %v1748, %v1964
      %v1966 = vand.u32 %v310, 4294901760
      %1967 = vmatmul.f32.gmra.mxu0 %v1966
      %v1968 = vpop.f32.mrf.mxu0
      %v1969 = vadd.f32 %v1752, %v1968
      %v1970 = vand.u32 %v313, 4294901760
      %1971 = vmatmul.f32.gmra.mxu0 %v1970
      %v1972 = vpop.f32.mrf.mxu0
      %v1973 = vadd.f32 %v1756, %v1972
      %v1974 = vand.u32 %v316, 4294901760
      %1975 = vmatmul.f32.gmra.mxu0 %v1974
      %v1976 = vpop.f32.mrf.mxu0
      %v1977 = vadd.f32 %v1760, %v1976
      %v1978 = vand.u32 %v319, 4294901760
      %1979 = vmatmul.f32.gmra.mxu0 %v1978
      %v1980 = vpop.f32.mrf.mxu0
      %v1981 = vadd.f32 %v1764, %v1980
      %v1982 = vand.u32 %v322, 4294901760
      %1983 = vmatmul.f32.gmra.mxu0 %v1982
      %v1984 = vpop.f32.mrf.mxu0
      %v1985 = vadd.f32 %v1768, %v1984
      %v1986 = vand.u32 %v325, 4294901760
      %1987 = vmatmul.f32.gmra.mxu0 %v1986
      %v1988 = vpop.f32.mrf.mxu0
      %v1989 = vadd.f32 %v1772, %v1988
      %v1990 = vand.u32 %v328, 4294901760
      %1991 = vmatmul.f32.gmra.mxu0 %v1990
      %v1992 = vpop.f32.mrf.mxu0
      %v1993 = vadd.f32 %v1776, %v1992
      %v1994 = vand.u32 %v331, 4294901760
      %1995 = vmatmul.f32.gmra.mxu0 %v1994
      %v1996 = vpop.f32.mrf.mxu0
      %v1997 = vadd.f32 %v1780, %v1996
      %v1998 = vand.u32 %v334, 4294901760
      %1999 = vmatmul.f32.gmra.mxu0 %v1998
      %v2000 = vpop.f32.mrf.mxu0
      %v2001 = vadd.f32 %v1784, %v2000
      %v2002 = vand.u32 %v337, 4294901760
      %2003 = vmatmul.f32.gmra.mxu0 %v2002
      %v2004 = vpop.f32.mrf.mxu0
      %v2005 = vadd.f32 %v1788, %v2004
      %v2006 = vand.u32 %v340, 4294901760
      %2007 = vmatmul.f32.gmra.mxu0 %v2006
      %v2008 = vpop.f32.mrf.mxu0
      %v2009 = vadd.f32 %v1792, %v2008
      %v2010 = vand.u32 %v343, 4294901760
      %2011 = vmatmul.f32.gmra.mxu0 %v2010
      %v2012 = vpop.f32.mrf.mxu0
      %v2013 = vadd.f32 %v1796, %v2012
      %v2014 = vand.u32 %v346, 4294901760
      %2015 = vmatmul.f32.gmra.mxu0 %v2014
      %v2016 = vpop.f32.mrf.mxu0
      %v2017 = vadd.f32 %v1800, %v2016
      %v2018 = vand.u32 %v349, 4294901760
      %2019 = vmatmul.f32.gmra.mxu0 %v2018
      %v2020 = vpop.f32.mrf.mxu0
      %v2021 = vadd.f32 %v1804, %v2020
      %v2022 = vand.u32 %v352, 4294901760
      %2023 = vmatmul.f32.gmra.mxu0 %v2022
      %v2024 = vpop.f32.mrf.mxu0
      %v2025 = vadd.f32 %v1808, %v2024
      %v2026 = vand.u32 %v355, 4294901760
      %2027 = vmatmul.f32.gmra.mxu0 %v2026
      %v2028 = vpop.f32.mrf.mxu0
      %v2029 = vadd.f32 %v1812, %v2028
      %v2030 = vand.u32 %v358, 4294901760
      %2031 = vmatmul.f32.gmra.mxu0 %v2030
      %v2032 = vpop.f32.mrf.mxu0
      %v2033 = vadd.f32 %v1816, %v2032
      %v2034 = vand.u32 %v361, 4294901760
      %2035 = vmatmul.f32.gmra.mxu0 %v2034
      %v2036 = vpop.f32.mrf.mxu0
      %v2037 = vadd.f32 %v1820, %v2036
      %v2038 = vand.u32 %v364, 4294901760
      %2039 = vmatmul.f32.gmra.mxu0 %v2038
      %v2040 = vpop.f32.mrf.mxu0
      %v2041 = vadd.f32 %v1824, %v2040
      %v2042 = vand.u32 %v367, 4294901760
      %2043 = vmatmul.f32.gmra.mxu0 %v2042
      %v2044 = vpop.f32.mrf.mxu0
      %v2045 = vadd.f32 %v1828, %v2044
      %v2046 = vand.u32 %v370, 4294901760
      %2047 = vmatmul.f32.gmra.mxu0 %v2046
      %v2048 = vpop.f32.mrf.mxu0
      %v2049 = vadd.f32 %v1832, %v2048
      %v2050 = vand.u32 %v373, 4294901760
      %2051 = vmatmul.f32.gmra.mxu0 %v2050
      %v2052 = vpop.f32.mrf.mxu0
      %v2053 = vadd.f32 %v1836, %v2052
      %v2054 = vand.u32 %v376, 4294901760
      %2055 = vmatmul.f32.gmra.mxu0 %v2054
      %v2056 = vpop.f32.mrf.mxu0
      %v2057 = vadd.f32 %v1840, %v2056
      %v2058 = vand.u32 %v379, 4294901760
      %2059 = vmatmul.f32.gmra.mxu0 %v2058
      %v2060 = vpop.f32.mrf.mxu0
      %v2061 = vadd.f32 %v1844, %v2060
      %v2062 = vand.u32 %v382, 4294901760
      %2063 = vmatmul.f32.gmra.mxu0 %v2062
      %v2064 = vpop.f32.mrf.mxu0
      %v2065 = vadd.f32 %v1848, %v2064
      %v2066 = vand.u32 %v385, 4294901760
      %2067 = vmatmul.f32.gmra.mxu0 %v2066
      %v2068 = vpop.f32.mrf.mxu0
      %v2069 = vadd.f32 %v1852, %v2068
      %v2070 = vand.u32 %v388, 4294901760
      %2071 = vmatmul.f32.gmra.mxu0 %v2070
      %v2072 = vpop.f32.mrf.mxu0
      %v2073 = vadd.f32 %v1856, %v2072
      %v2074 = vand.u32 %v391, 4294901760
      %2075 = vmatmul.f32.gmra.mxu0 %v2074
      %v2076 = vpop.f32.mrf.mxu0
      %v2077 = vadd.f32 %v1860, %v2076
      %v2078 = vand.u32 %v394, 4294901760
      %2079 = vmatmul.f32.gmra.mxu0 %v2078
      %v2080 = vpop.f32.mrf.mxu0
      %v2081 = vadd.f32 %v1864, %v2080
      %v2082 = vand.u32 %v397, 4294901760
      %2083 = vmatmul.f32.gmra.mxu0 %v2082
      %v2084 = vpop.f32.mrf.mxu0
      %v2085 = vadd.f32 %v1868, %v2084
      %v2086 = vand.u32 %v400, 4294901760
      %2087 = vmatmul.f32.gmra.mxu0 %v2086
      %v2088 = vpop.f32.mrf.mxu0
      %v2089 = vadd.f32 %v1872, %v2088
      %v2090 = vand.u32 %v403, 4294901760
      %2091 = vmatmul.f32.gmra.mxu0 %v2090
      %v2092 = vpop.f32.mrf.mxu0
      %v2093 = vadd.f32 %v1876, %v2092
      %v2094 = vand.u32 %v406, 4294901760
      %2095 = vmatmul.f32.gmra.mxu0 %v2094
      %v2096 = vpop.f32.mrf.mxu0
      %v2097 = vadd.f32 %v1880, %v2096
      %v2098 = vand.u32 %v409, 4294901760
      %2099 = vmatmul.f32.gmra.mxu0 %v2098
      %v2100 = vpop.f32.mrf.mxu0
      %v2101 = vadd.f32 %v1884, %v2100
      %v2102 = vand.u32 %v412, 4294901760
      %2103 = vmatmul.f32.gmra.mxu0 %v2102
      %v2104 = vpop.f32.mrf.mxu0
      %v2105 = vadd.f32 %v1888, %v2104
      %v2106 = vand.u32 %v415, 4294901760
      %2107 = vmatmul.f32.gmra.mxu0 %v2106
      %v2108 = vpop.f32.mrf.mxu0
      %v2109 = vadd.f32 %v1892, %v2108
      %2110 = vdwg.mxu0
      %v2111 = vstv %s207
      %v2113 = vsel %vm272, %v208, 0
      %v2116 = vsel %vm272, %v209, 0
      %v2119 = vsel %vm272, %v210, 0
      %v2122 = vsel %vm272, %v211, 0
      %v2125 = vsel %vm272, %v212, 0
      %v2128 = vsel %vm272, %v213, 0
      %v2131 = vsel %vm272, %v214, 0
      %v2134 = vsel %vm272, %v215, 0
      %2136 = vmatpush.msra.mxu0 0.0
      %2137 = vmatpush.msra.mxu0 0.0
      %2138 = vmatpush.msra.mxu0 0.0
      %2139 = vmatpush.msra.mxu0 0.0
      %2140 = vmatpush.msra.mxu0 0.0
      %2141 = vmatpush.msra.mxu0 0.0
      %2142 = vmatpush.msra.mxu0 0.0
      %2143 = vmatpush.msra.mxu0 0.0
      %v2144 = vand.u32 %v1949, 4294901760
      %2145 = vmatpush.msra.mxu0 %v2144
      %v2146 = vand.u32 %v1945, 4294901760
      %2147 = vmatpush.msra.mxu0 %v2146
      %v2148 = vand.u32 %v1941, 4294901760
      %2149 = vmatpush.msra.mxu0 %v2148
      %v2150 = vand.u32 %v1937, 4294901760
      %2151 = vmatpush.msra.mxu0 %v2150
      %v2152 = vand.u32 %v1933, 4294901760
      %2153 = vmatpush.msra.mxu0 %v2152
      %v2154 = vand.u32 %v1929, 4294901760
      %2155 = vmatpush.msra.mxu0 %v2154
      %v2156 = vand.u32 %v1925, 4294901760
      %2157 = vmatpush.msra.mxu0 %v2156
      %v2158 = vand.u32 %v1921, 4294901760
      %2159 = vmatpush.msra.mxu0 %v2158
      %v2160 = vand.u32 %v2113, 4294901760
      %v2161 = vsub.f32 %v2113, %v2160
      %v2162 = vand.u32 %v2161, 4294901760
      %v2163 = vsub.f32 %v2161, %v2162
      %v2164 = vand.u32 %v2163, 4294901760
      %2165 = vmatmul.f32.gmra.mxu0 %v2164
      %v2166 = vpop.f32.mrf.mxu0
      %v2167 = vadd.f32 %v2111, %v2166
      %v2168 = vand.u32 %v2116, 4294901760
      %v2169 = vsub.f32 %v2116, %v2168
      %v2170 = vand.u32 %v2169, 4294901760
      %v2171 = vsub.f32 %v2169, %v2170
      %v2172 = vand.u32 %v2171, 4294901760
      %2173 = vmatmul.f32.gmra.mxu0 %v2172
      %v2174 = vpop.f32.mrf.mxu0
      %v2175 = vadd.f32 %v2111, %v2174
      %v2176 = vand.u32 %v2119, 4294901760
      %v2177 = vsub.f32 %v2119, %v2176
      %v2178 = vand.u32 %v2177, 4294901760
      %v2179 = vsub.f32 %v2177, %v2178
      %v2180 = vand.u32 %v2179, 4294901760
      %2181 = vmatmul.f32.gmra.mxu0 %v2180
      %v2182 = vpop.f32.mrf.mxu0
      %v2183 = vadd.f32 %v2111, %v2182
      %v2184 = vand.u32 %v2122, 4294901760
      %v2185 = vsub.f32 %v2122, %v2184
      %v2186 = vand.u32 %v2185, 4294901760
      %v2187 = vsub.f32 %v2185, %v2186
      %v2188 = vand.u32 %v2187, 4294901760
      %2189 = vmatmul.f32.gmra.mxu0 %v2188
      %v2190 = vpop.f32.mrf.mxu0
      %v2191 = vadd.f32 %v2111, %v2190
      %v2192 = vand.u32 %v2125, 4294901760
      %v2193 = vsub.f32 %v2125, %v2192
      %v2194 = vand.u32 %v2193, 4294901760
      %v2195 = vsub.f32 %v2193, %v2194
      %v2196 = vand.u32 %v2195, 4294901760
      %2197 = vmatmul.f32.gmra.mxu0 %v2196
      %v2198 = vpop.f32.mrf.mxu0
      %v2199 = vadd.f32 %v2111, %v2198
      %v2200 = vand.u32 %v2128, 4294901760
      %v2201 = vsub.f32 %v2128, %v2200
      %v2202 = vand.u32 %v2201, 4294901760
      %v2203 = vsub.f32 %v2201, %v2202
      %v2204 = vand.u32 %v2203, 4294901760
      %2205 = vmatmul.f32.gmra.mxu0 %v2204
      %v2206 = vpop.f32.mrf.mxu0
      %v2207 = vadd.f32 %v2111, %v2206
      %v2208 = vand.u32 %v2131, 4294901760
      %v2209 = vsub.f32 %v2131, %v2208
      %v2210 = vand.u32 %v2209, 4294901760
      %v2211 = vsub.f32 %v2209, %v2210
      %v2212 = vand.u32 %v2211, 4294901760
      %2213 = vmatmul.f32.gmra.mxu0 %v2212
      %v2214 = vpop.f32.mrf.mxu0
      %v2215 = vadd.f32 %v2111, %v2214
      %v2216 = vand.u32 %v2134, 4294901760
      %v2217 = vsub.f32 %v2134, %v2216
      %v2218 = vand.u32 %v2217, 4294901760
      %v2219 = vsub.f32 %v2217, %v2218
      %v2220 = vand.u32 %v2219, 4294901760
      %2221 = vmatmul.f32.gmra.mxu0 %v2220
      %v2222 = vpop.f32.mrf.mxu0
      %v2223 = vadd.f32 %v2111, %v2222
      %2224 = vdwg.mxu0
      %2225 = vmatpush.msra.mxu0 0.0
      %2226 = vmatpush.msra.mxu0 0.0
      %2227 = vmatpush.msra.mxu0 0.0
      %2228 = vmatpush.msra.mxu0 0.0
      %2229 = vmatpush.msra.mxu0 0.0
      %2230 = vmatpush.msra.mxu0 0.0
      %2231 = vmatpush.msra.mxu0 0.0
      %2232 = vmatpush.msra.mxu0 0.0
      %v2233 = vand.u32 %v1949, 4294901760
      %v2234 = vsub.f32 %v1949, %v2233
      %v2235 = vand.u32 %v2234, 4294901760
      %v2236 = vsub.f32 %v2234, %v2235
      %v2237 = vand.u32 %v2236, 4294901760
      %2238 = vmatpush.msra.mxu0 %v2237
      %v2239 = vand.u32 %v1945, 4294901760
      %v2240 = vsub.f32 %v1945, %v2239
      %v2241 = vand.u32 %v2240, 4294901760
      %v2242 = vsub.f32 %v2240, %v2241
      %v2243 = vand.u32 %v2242, 4294901760
      %2244 = vmatpush.msra.mxu0 %v2243
      %v2245 = vand.u32 %v1941, 4294901760
      %v2246 = vsub.f32 %v1941, %v2245
      %v2247 = vand.u32 %v2246, 4294901760
      %v2248 = vsub.f32 %v2246, %v2247
      %v2249 = vand.u32 %v2248, 4294901760
      %2250 = vmatpush.msra.mxu0 %v2249
      %v2251 = vand.u32 %v1937, 4294901760
      %v2252 = vsub.f32 %v1937, %v2251
      %v2253 = vand.u32 %v2252, 4294901760
      %v2254 = vsub.f32 %v2252, %v2253
      %v2255 = vand.u32 %v2254, 4294901760
      %2256 = vmatpush.msra.mxu0 %v2255
      %v2257 = vand.u32 %v1933, 4294901760
      %v2258 = vsub.f32 %v1933, %v2257
      %v2259 = vand.u32 %v2258, 4294901760
      %v2260 = vsub.f32 %v2258, %v2259
      %v2261 = vand.u32 %v2260, 4294901760
      %2262 = vmatpush.msra.mxu0 %v2261
      %v2263 = vand.u32 %v1929, 4294901760
      %v2264 = vsub.f32 %v1929, %v2263
      %v2265 = vand.u32 %v2264, 4294901760
      %v2266 = vsub.f32 %v2264, %v2265
      %v2267 = vand.u32 %v2266, 4294901760
      %2268 = vmatpush.msra.mxu0 %v2267
      %v2269 = vand.u32 %v1925, 4294901760
      %v2270 = vsub.f32 %v1925, %v2269
      %v2271 = vand.u32 %v2270, 4294901760
      %v2272 = vsub.f32 %v2270, %v2271
      %v2273 = vand.u32 %v2272, 4294901760
      %2274 = vmatpush.msra.mxu0 %v2273
      %v2275 = vand.u32 %v1921, 4294901760
      %v2276 = vsub.f32 %v1921, %v2275
      %v2277 = vand.u32 %v2276, 4294901760
      %v2278 = vsub.f32 %v2276, %v2277
      %v2279 = vand.u32 %v2278, 4294901760
      %2280 = vmatpush.msra.mxu0 %v2279
      %v2281 = vand.u32 %v2113, 4294901760
      %2282 = vmatmul.f32.gmra.mxu0 %v2281
      %v2283 = vpop.f32.mrf.mxu0
      %v2284 = vadd.f32 %v2167, %v2283
      %v2285 = vand.u32 %v2116, 4294901760
      %2286 = vmatmul.f32.gmra.mxu0 %v2285
      %v2287 = vpop.f32.mrf.mxu0
      %v2288 = vadd.f32 %v2175, %v2287
      %v2289 = vand.u32 %v2119, 4294901760
      %2290 = vmatmul.f32.gmra.mxu0 %v2289
      %v2291 = vpop.f32.mrf.mxu0
      %v2292 = vadd.f32 %v2183, %v2291
      %v2293 = vand.u32 %v2122, 4294901760
      %2294 = vmatmul.f32.gmra.mxu0 %v2293
      %v2295 = vpop.f32.mrf.mxu0
      %v2296 = vadd.f32 %v2191, %v2295
      %v2297 = vand.u32 %v2125, 4294901760
      %2298 = vmatmul.f32.gmra.mxu0 %v2297
      %v2299 = vpop.f32.mrf.mxu0
      %v2300 = vadd.f32 %v2199, %v2299
      %v2301 = vand.u32 %v2128, 4294901760
      %2302 = vmatmul.f32.gmra.mxu0 %v2301
      %v2303 = vpop.f32.mrf.mxu0
      %v2304 = vadd.f32 %v2207, %v2303
      %v2305 = vand.u32 %v2131, 4294901760
      %2306 = vmatmul.f32.gmra.mxu0 %v2305
      %v2307 = vpop.f32.mrf.mxu0
      %v2308 = vadd.f32 %v2215, %v2307
      %v2309 = vand.u32 %v2134, 4294901760
      %2310 = vmatmul.f32.gmra.mxu0 %v2309
      %v2311 = vpop.f32.mrf.mxu0
      %v2312 = vadd.f32 %v2223, %v2311
      %2313 = vdwg.mxu0
      %2314 = vmatpush.msra.mxu0 0.0
      %2315 = vmatpush.msra.mxu0 0.0
      %2316 = vmatpush.msra.mxu0 0.0
      %2317 = vmatpush.msra.mxu0 0.0
      %2318 = vmatpush.msra.mxu0 0.0
      %2319 = vmatpush.msra.mxu0 0.0
      %2320 = vmatpush.msra.mxu0 0.0
      %2321 = vmatpush.msra.mxu0 0.0
      %v2322 = vand.u32 %v1949, 4294901760
      %v2323 = vsub.f32 %v1949, %v2322
      %2324 = vmatpush.msra.mxu0 %v2323
      %v2325 = vand.u32 %v1945, 4294901760
      %v2326 = vsub.f32 %v1945, %v2325
      %2327 = vmatpush.msra.mxu0 %v2326
      %v2328 = vand.u32 %v1941, 4294901760
      %v2329 = vsub.f32 %v1941, %v2328
      %2330 = vmatpush.msra.mxu0 %v2329
      %v2331 = vand.u32 %v1937, 4294901760
      %v2332 = vsub.f32 %v1937, %v2331
      %2333 = vmatpush.msra.mxu0 %v2332
      %v2334 = vand.u32 %v1933, 4294901760
      %v2335 = vsub.f32 %v1933, %v2334
      %2336 = vmatpush.msra.mxu0 %v2335
      %v2337 = vand.u32 %v1929, 4294901760
      %v2338 = vsub.f32 %v1929, %v2337
      %2339 = vmatpush.msra.mxu0 %v2338
      %v2340 = vand.u32 %v1925, 4294901760
      %v2341 = vsub.f32 %v1925, %v2340
      %2342 = vmatpush.msra.mxu0 %v2341
      %v2343 = vand.u32 %v1921, 4294901760
      %v2344 = vsub.f32 %v1921, %v2343
      %2345 = vmatpush.msra.mxu0 %v2344
      %v2346 = vand.u32 %v2113, 4294901760
      %v2347 = vsub.f32 %v2113, %v2346
      %2348 = vmatmul.f32.gmra.mxu0 %v2347
      %v2349 = vpop.f32.mrf.mxu0
      %v2350 = vadd.f32 %v2284, %v2349
      %v2351 = vand.u32 %v2116, 4294901760
      %v2352 = vsub.f32 %v2116, %v2351
      %2353 = vmatmul.f32.gmra.mxu0 %v2352
      %v2354 = vpop.f32.mrf.mxu0
      %v2355 = vadd.f32 %v2288, %v2354
      %v2356 = vand.u32 %v2119, 4294901760
      %v2357 = vsub.f32 %v2119, %v2356
      %2358 = vmatmul.f32.gmra.mxu0 %v2357
      %v2359 = vpop.f32.mrf.mxu0
      %v2360 = vadd.f32 %v2292, %v2359
      %v2361 = vand.u32 %v2122, 4294901760
      %v2362 = vsub.f32 %v2122, %v2361
      %2363 = vmatmul.f32.gmra.mxu0 %v2362
      %v2364 = vpop.f32.mrf.mxu0
      %v2365 = vadd.f32 %v2296, %v2364
      %v2366 = vand.u32 %v2125, 4294901760
      %v2367 = vsub.f32 %v2125, %v2366
      %2368 = vmatmul.f32.gmra.mxu0 %v2367
      %v2369 = vpop.f32.mrf.mxu0
      %v2370 = vadd.f32 %v2300, %v2369
      %v2371 = vand.u32 %v2128, 4294901760
      %v2372 = vsub.f32 %v2128, %v2371
      %2373 = vmatmul.f32.gmra.mxu0 %v2372
      %v2374 = vpop.f32.mrf.mxu0
      %v2375 = vadd.f32 %v2304, %v2374
      %v2376 = vand.u32 %v2131, 4294901760
      %v2377 = vsub.f32 %v2131, %v2376
      %2378 = vmatmul.f32.gmra.mxu0 %v2377
      %v2379 = vpop.f32.mrf.mxu0
      %v2380 = vadd.f32 %v2308, %v2379
      %v2381 = vand.u32 %v2134, 4294901760
      %v2382 = vsub.f32 %v2134, %v2381
      %2383 = vmatmul.f32.gmra.mxu0 %v2382
      %v2384 = vpop.f32.mrf.mxu0
      %v2385 = vadd.f32 %v2312, %v2384
      %2386 = vdwg.mxu0
      %2387 = vmatpush.msra.mxu0 0.0
      %2388 = vmatpush.msra.mxu0 0.0
      %2389 = vmatpush.msra.mxu0 0.0
      %2390 = vmatpush.msra.mxu0 0.0
      %2391 = vmatpush.msra.mxu0 0.0
      %2392 = vmatpush.msra.mxu0 0.0
      %2393 = vmatpush.msra.mxu0 0.0
      %2394 = vmatpush.msra.mxu0 0.0
      %v2395 = vand.u32 %v1949, 4294901760
      %2396 = vmatpush.msra.mxu0 %v2395
      %v2397 = vand.u32 %v1945, 4294901760
      %2398 = vmatpush.msra.mxu0 %v2397
      %v2399 = vand.u32 %v1941, 4294901760
      %2400 = vmatpush.msra.mxu0 %v2399
      %v2401 = vand.u32 %v1937, 4294901760
      %2402 = vmatpush.msra.mxu0 %v2401
      %v2403 = vand.u32 %v1933, 4294901760
      %2404 = vmatpush.msra.mxu0 %v2403
      %v2405 = vand.u32 %v1929, 4294901760
      %2406 = vmatpush.msra.mxu0 %v2405
      %v2407 = vand.u32 %v1925, 4294901760
      %2408 = vmatpush.msra.mxu0 %v2407
      %v2409 = vand.u32 %v1921, 4294901760
      %2410 = vmatpush.msra.mxu0 %v2409
      %v2411 = vand.u32 %v2113, 4294901760
      %v2412 = vsub.f32 %v2113, %v2411
      %v2413 = vand.u32 %v2412, 4294901760
      %2414 = vmatmul.f32.gmra.mxu0 %v2413
      %v2415 = vpop.f32.mrf.mxu0
      %v2416 = vadd.f32 %v2350, %v2415
      %v2417 = vand.u32 %v2116, 4294901760
      %v2418 = vsub.f32 %v2116, %v2417
      %v2419 = vand.u32 %v2418, 4294901760
      %2420 = vmatmul.f32.gmra.mxu0 %v2419
      %v2421 = vpop.f32.mrf.mxu0
      %v2422 = vadd.f32 %v2355, %v2421
      %v2423 = vand.u32 %v2119, 4294901760
      %v2424 = vsub.f32 %v2119, %v2423
      %v2425 = vand.u32 %v2424, 4294901760
      %2426 = vmatmul.f32.gmra.mxu0 %v2425
      %v2427 = vpop.f32.mrf.mxu0
      %v2428 = vadd.f32 %v2360, %v2427
      %v2429 = vand.u32 %v2122, 4294901760
      %v2430 = vsub.f32 %v2122, %v2429
      %v2431 = vand.u32 %v2430, 4294901760
      %2432 = vmatmul.f32.gmra.mxu0 %v2431
      %v2433 = vpop.f32.mrf.mxu0
      %v2434 = vadd.f32 %v2365, %v2433
      %v2435 = vand.u32 %v2125, 4294901760
      %v2436 = vsub.f32 %v2125, %v2435
      %v2437 = vand.u32 %v2436, 4294901760
      %2438 = vmatmul.f32.gmra.mxu0 %v2437
      %v2439 = vpop.f32.mrf.mxu0
      %v2440 = vadd.f32 %v2370, %v2439
      %v2441 = vand.u32 %v2128, 4294901760
      %v2442 = vsub.f32 %v2128, %v2441
      %v2443 = vand.u32 %v2442, 4294901760
      %2444 = vmatmul.f32.gmra.mxu0 %v2443
      %v2445 = vpop.f32.mrf.mxu0
      %v2446 = vadd.f32 %v2375, %v2445
      %v2447 = vand.u32 %v2131, 4294901760
      %v2448 = vsub.f32 %v2131, %v2447
      %v2449 = vand.u32 %v2448, 4294901760
      %2450 = vmatmul.f32.gmra.mxu0 %v2449
      %v2451 = vpop.f32.mrf.mxu0
      %v2452 = vadd.f32 %v2380, %v2451
      %v2453 = vand.u32 %v2134, 4294901760
      %v2454 = vsub.f32 %v2134, %v2453
      %v2455 = vand.u32 %v2454, 4294901760
      %2456 = vmatmul.f32.gmra.mxu0 %v2455
      %v2457 = vpop.f32.mrf.mxu0
      %v2458 = vadd.f32 %v2385, %v2457
      %2459 = vdwg.mxu0
      %2460 = vmatpush.msra.mxu0 0.0
      %2461 = vmatpush.msra.mxu0 0.0
      %2462 = vmatpush.msra.mxu0 0.0
      %2463 = vmatpush.msra.mxu0 0.0
      %2464 = vmatpush.msra.mxu0 0.0
      %2465 = vmatpush.msra.mxu0 0.0
      %2466 = vmatpush.msra.mxu0 0.0
      %2467 = vmatpush.msra.mxu0 0.0
      %v2468 = vand.u32 %v1949, 4294901760
      %v2469 = vsub.f32 %v1949, %v2468
      %v2470 = vand.u32 %v2469, 4294901760
      %2471 = vmatpush.msra.mxu0 %v2470
      %v2472 = vand.u32 %v1945, 4294901760
      %v2473 = vsub.f32 %v1945, %v2472
      %v2474 = vand.u32 %v2473, 4294901760
      %2475 = vmatpush.msra.mxu0 %v2474
      %v2476 = vand.u32 %v1941, 4294901760
      %v2477 = vsub.f32 %v1941, %v2476
      %v2478 = vand.u32 %v2477, 4294901760
      %2479 = vmatpush.msra.mxu0 %v2478
      %v2480 = vand.u32 %v1937, 4294901760
      %v2481 = vsub.f32 %v1937, %v2480
      %v2482 = vand.u32 %v2481, 4294901760
      %2483 = vmatpush.msra.mxu0 %v2482
      %v2484 = vand.u32 %v1933, 4294901760
      %v2485 = vsub.f32 %v1933, %v2484
      %v2486 = vand.u32 %v2485, 4294901760
      %2487 = vmatpush.msra.mxu0 %v2486
      %v2488 = vand.u32 %v1929, 4294901760
      %v2489 = vsub.f32 %v1929, %v2488
      %v2490 = vand.u32 %v2489, 4294901760
      %2491 = vmatpush.msra.mxu0 %v2490
      %v2492 = vand.u32 %v1925, 4294901760
      %v2493 = vsub.f32 %v1925, %v2492
      %v2494 = vand.u32 %v2493, 4294901760
      %2495 = vmatpush.msra.mxu0 %v2494
      %v2496 = vand.u32 %v1921, 4294901760
      %v2497 = vsub.f32 %v1921, %v2496
      %v2498 = vand.u32 %v2497, 4294901760
      %2499 = vmatpush.msra.mxu0 %v2498
      %v2500 = vand.u32 %v2113, 4294901760
      %2501 = vmatmul.f32.gmra.mxu0 %v2500
      %v2502 = vpop.f32.mrf.mxu0
      %v2503 = vadd.f32 %v2416, %v2502
      %v2504 = vand.u32 %v2116, 4294901760
      %2505 = vmatmul.f32.gmra.mxu0 %v2504
      %v2506 = vpop.f32.mrf.mxu0
      %v2507 = vadd.f32 %v2422, %v2506
      %v2508 = vand.u32 %v2119, 4294901760
      %2509 = vmatmul.f32.gmra.mxu0 %v2508
      %v2510 = vpop.f32.mrf.mxu0
      %v2511 = vadd.f32 %v2428, %v2510
      %v2512 = vand.u32 %v2122, 4294901760
      %2513 = vmatmul.f32.gmra.mxu0 %v2512
      %v2514 = vpop.f32.mrf.mxu0
      %v2515 = vadd.f32 %v2434, %v2514
      %v2516 = vand.u32 %v2125, 4294901760
      %2517 = vmatmul.f32.gmra.mxu0 %v2516
      %v2518 = vpop.f32.mrf.mxu0
      %v2519 = vadd.f32 %v2440, %v2518
      %v2520 = vand.u32 %v2128, 4294901760
      %2521 = vmatmul.f32.gmra.mxu0 %v2520
      %v2522 = vpop.f32.mrf.mxu0
      %v2523 = vadd.f32 %v2446, %v2522
      %v2524 = vand.u32 %v2131, 4294901760
      %2525 = vmatmul.f32.gmra.mxu0 %v2524
      %v2526 = vpop.f32.mrf.mxu0
      %v2527 = vadd.f32 %v2452, %v2526
      %v2528 = vand.u32 %v2134, 4294901760
      %2529 = vmatmul.f32.gmra.mxu0 %v2528
      %v2530 = vpop.f32.mrf.mxu0
      %v2531 = vadd.f32 %v2458, %v2530
      %2532 = vdwg.mxu0
      %2533 = vmatpush.msra.mxu0 0.0
      %2534 = vmatpush.msra.mxu0 0.0
      %2535 = vmatpush.msra.mxu0 0.0
      %2536 = vmatpush.msra.mxu0 0.0
      %2537 = vmatpush.msra.mxu0 0.0
      %2538 = vmatpush.msra.mxu0 0.0
      %2539 = vmatpush.msra.mxu0 0.0
      %2540 = vmatpush.msra.mxu0 0.0
      %v2541 = vand.u32 %v1949, 4294901760
      %2542 = vmatpush.msra.mxu0 %v2541
      %v2543 = vand.u32 %v1945, 4294901760
      %2544 = vmatpush.msra.mxu0 %v2543
      %v2545 = vand.u32 %v1941, 4294901760
      %2546 = vmatpush.msra.mxu0 %v2545
      %v2547 = vand.u32 %v1937, 4294901760
      %2548 = vmatpush.msra.mxu0 %v2547
      %v2549 = vand.u32 %v1933, 4294901760
      %2550 = vmatpush.msra.mxu0 %v2549
      %v2551 = vand.u32 %v1929, 4294901760
      %2552 = vmatpush.msra.mxu0 %v2551
      %v2553 = vand.u32 %v1925, 4294901760
      %2554 = vmatpush.msra.mxu0 %v2553
      %v2555 = vand.u32 %v1921, 4294901760
      %2556 = vmatpush.msra.mxu0 %v2555
      %v2557 = vand.u32 %v2113, 4294901760
      %2558 = vmatmul.f32.gmra.mxu0 %v2557
      %v2559 = vpop.f32.mrf.mxu0
      %v2560 = vadd.f32 %v2503, %v2559
      %v2561 = vand.u32 %v2116, 4294901760
      %2562 = vmatmul.f32.gmra.mxu0 %v2561
      %v2563 = vpop.f32.mrf.mxu0
      %v2564 = vadd.f32 %v2507, %v2563
      %v2565 = vand.u32 %v2119, 4294901760
      %2566 = vmatmul.f32.gmra.mxu0 %v2565
      %v2567 = vpop.f32.mrf.mxu0
      %v2568 = vadd.f32 %v2511, %v2567
      %v2569 = vand.u32 %v2122, 4294901760
      %2570 = vmatmul.f32.gmra.mxu0 %v2569
      %v2571 = vpop.f32.mrf.mxu0
      %v2572 = vadd.f32 %v2515, %v2571
      %v2573 = vand.u32 %v2125, 4294901760
      %2574 = vmatmul.f32.gmra.mxu0 %v2573
      %v2575 = vpop.f32.mrf.mxu0
      %v2576 = vadd.f32 %v2519, %v2575
      %v2577 = vand.u32 %v2128, 4294901760
      %2578 = vmatmul.f32.gmra.mxu0 %v2577
      %v2579 = vpop.f32.mrf.mxu0
      %v2580 = vadd.f32 %v2523, %v2579
      %v2581 = vand.u32 %v2131, 4294901760
      %2582 = vmatmul.f32.gmra.mxu0 %v2581
      %v2583 = vpop.f32.mrf.mxu0
      %v2584 = vadd.f32 %v2527, %v2583
      %v2585 = vand.u32 %v2134, 4294901760
      %2586 = vmatmul.f32.gmra.mxu0 %v2585
      %v2587 = vpop.f32.mrf.mxu0
      %v2588 = vadd.f32 %v2531, %v2587
      %2589 = vdwg.mxu0
      %v2590 = vsub.f32 %v2560, %v2111
      %v2591 = vsub.f32 %v2564, %v2111
      %v2592 = vsub.f32 %v2568, %v2111
      %v2593 = vsub.f32 %v2572, %v2111
      %v2594 = vsub.f32 %v2576, %v2111
      %v2595 = vsub.f32 %v2580, %v2111
      %v2596 = vsub.f32 %v2584, %v2111
      %v2597 = vsub.f32 %v2588, %v2111
      %2598 = vst.msk [vmem:[%s205] sm:$0xff] %vm272, %v2590
      %2599 = vst.msk [vmem:[%s205 + $0x8] sm:$0xff] %vm272, %v2591
      %2600 = vst.msk [vmem:[%s205 + $0x10] sm:$0xff] %vm272, %v2592
      %2601 = vst.msk [vmem:[%s205 + $0x18] sm:$0xff] %vm272, %v2593
      %2602 = vst.msk [vmem:[%s205 + $0x20] sm:$0xff] %vm272, %v2594
      %2603 = vst.msk [vmem:[%s205 + $0x28] sm:$0xff] %vm272, %v2595
      %2604 = vst.msk [vmem:[%s205 + $0x30] sm:$0xff] %vm272, %v2596
      %2605 = vst.msk [vmem:[%s205 + $0x38] sm:$0xff] %vm272, %v2597
      %2606 = vmatpush.msra.mxu0 0.0
      %2607 = vmatpush.msra.mxu0 0.0
      %2608 = vmatpush.msra.mxu0 0.0
      %2609 = vmatpush.msra.mxu0 0.0
      %2610 = vmatpush.msra.mxu0 0.0
      %2611 = vmatpush.msra.mxu0 0.0
      %2612 = vmatpush.msra.mxu0 0.0
      %2613 = vmatpush.msra.mxu0 0.0
      %v2614 = vand.u32 %v1981, 4294901760
      %2615 = vmatpush.msra.mxu0 %v2614
      %v2616 = vand.u32 %v1977, 4294901760
      %2617 = vmatpush.msra.mxu0 %v2616
      %v2618 = vand.u32 %v1973, 4294901760
      %2619 = vmatpush.msra.mxu0 %v2618
      %v2620 = vand.u32 %v1969, 4294901760
      %2621 = vmatpush.msra.mxu0 %v2620
      %v2622 = vand.u32 %v1965, 4294901760
      %2623 = vmatpush.msra.mxu0 %v2622
      %v2624 = vand.u32 %v1961, 4294901760
      %2625 = vmatpush.msra.mxu0 %v2624
      %v2626 = vand.u32 %v1957, 4294901760
      %2627 = vmatpush.msra.mxu0 %v2626
      %v2628 = vand.u32 %v1953, 4294901760
      %2629 = vmatpush.msra.mxu0 %v2628
      %v2630 = vand.u32 %v2113, 4294901760
      %v2631 = vsub.f32 %v2113, %v2630
      %v2632 = vand.u32 %v2631, 4294901760
      %v2633 = vsub.f32 %v2631, %v2632
      %v2634 = vand.u32 %v2633, 4294901760
      %2635 = vmatmul.f32.gmra.mxu0 %v2634
      %v2636 = vpop.f32.mrf.mxu0
      %v2637 = vadd.f32 %v2111, %v2636
      %v2638 = vand.u32 %v2116, 4294901760
      %v2639 = vsub.f32 %v2116, %v2638
      %v2640 = vand.u32 %v2639, 4294901760
      %v2641 = vsub.f32 %v2639, %v2640
      %v2642 = vand.u32 %v2641, 4294901760
      %2643 = vmatmul.f32.gmra.mxu0 %v2642
      %v2644 = vpop.f32.mrf.mxu0
      %v2645 = vadd.f32 %v2111, %v2644
      %v2646 = vand.u32 %v2119, 4294901760
      %v2647 = vsub.f32 %v2119, %v2646
      %v2648 = vand.u32 %v2647, 4294901760
      %v2649 = vsub.f32 %v2647, %v2648
      %v2650 = vand.u32 %v2649, 4294901760
      %2651 = vmatmul.f32.gmra.mxu0 %v2650
      %v2652 = vpop.f32.mrf.mxu0
      %v2653 = vadd.f32 %v2111, %v2652
      %v2654 = vand.u32 %v2122, 4294901760
      %v2655 = vsub.f32 %v2122, %v2654
      %v2656 = vand.u32 %v2655, 4294901760
      %v2657 = vsub.f32 %v2655, %v2656
      %v2658 = vand.u32 %v2657, 4294901760
      %2659 = vmatmul.f32.gmra.mxu0 %v2658
      %v2660 = vpop.f32.mrf.mxu0
      %v2661 = vadd.f32 %v2111, %v2660
      %v2662 = vand.u32 %v2125, 4294901760
      %v2663 = vsub.f32 %v2125, %v2662
      %v2664 = vand.u32 %v2663, 4294901760
      %v2665 = vsub.f32 %v2663, %v2664
      %v2666 = vand.u32 %v2665, 4294901760
      %2667 = vmatmul.f32.gmra.mxu0 %v2666
      %v2668 = vpop.f32.mrf.mxu0
      %v2669 = vadd.f32 %v2111, %v2668
      %v2670 = vand.u32 %v2128, 4294901760
      %v2671 = vsub.f32 %v2128, %v2670
      %v2672 = vand.u32 %v2671, 4294901760
      %v2673 = vsub.f32 %v2671, %v2672
      %v2674 = vand.u32 %v2673, 4294901760
      %2675 = vmatmul.f32.gmra.mxu0 %v2674
      %v2676 = vpop.f32.mrf.mxu0
      %v2677 = vadd.f32 %v2111, %v2676
      %v2678 = vand.u32 %v2131, 4294901760
      %v2679 = vsub.f32 %v2131, %v2678
      %v2680 = vand.u32 %v2679, 4294901760
      %v2681 = vsub.f32 %v2679, %v2680
      %v2682 = vand.u32 %v2681, 4294901760
      %2683 = vmatmul.f32.gmra.mxu0 %v2682
      %v2684 = vpop.f32.mrf.mxu0
      %v2685 = vadd.f32 %v2111, %v2684
      %v2686 = vand.u32 %v2134, 4294901760
      %v2687 = vsub.f32 %v2134, %v2686
      %v2688 = vand.u32 %v2687, 4294901760
      %v2689 = vsub.f32 %v2687, %v2688
      %v2690 = vand.u32 %v2689, 4294901760
      %2691 = vmatmul.f32.gmra.mxu0 %v2690
      %v2692 = vpop.f32.mrf.mxu0
      %v2693 = vadd.f32 %v2111, %v2692
      %2694 = vdwg.mxu0
      %2695 = vmatpush.msra.mxu0 0.0
      %2696 = vmatpush.msra.mxu0 0.0
      %2697 = vmatpush.msra.mxu0 0.0
      %2698 = vmatpush.msra.mxu0 0.0
      %2699 = vmatpush.msra.mxu0 0.0
      %2700 = vmatpush.msra.mxu0 0.0
      %2701 = vmatpush.msra.mxu0 0.0
      %2702 = vmatpush.msra.mxu0 0.0
      %v2703 = vand.u32 %v1981, 4294901760
      %v2704 = vsub.f32 %v1981, %v2703
      %v2705 = vand.u32 %v2704, 4294901760
      %v2706 = vsub.f32 %v2704, %v2705
      %v2707 = vand.u32 %v2706, 4294901760
      %2708 = vmatpush.msra.mxu0 %v2707
      %v2709 = vand.u32 %v1977, 4294901760
      %v2710 = vsub.f32 %v1977, %v2709
      %v2711 = vand.u32 %v2710, 4294901760
      %v2712 = vsub.f32 %v2710, %v2711
      %v2713 = vand.u32 %v2712, 4294901760
      %2714 = vmatpush.msra.mxu0 %v2713
      %v2715 = vand.u32 %v1973, 4294901760
      %v2716 = vsub.f32 %v1973, %v2715
      %v2717 = vand.u32 %v2716, 4294901760
      %v2718 = vsub.f32 %v2716, %v2717
      %v2719 = vand.u32 %v2718, 4294901760
      %2720 = vmatpush.msra.mxu0 %v2719
      %v2721 = vand.u32 %v1969, 4294901760
      %v2722 = vsub.f32 %v1969, %v2721
      %v2723 = vand.u32 %v2722, 4294901760
      %v2724 = vsub.f32 %v2722, %v2723
      %v2725 = vand.u32 %v2724, 4294901760
      %2726 = vmatpush.msra.mxu0 %v2725
      %v2727 = vand.u32 %v1965, 4294901760
      %v2728 = vsub.f32 %v1965, %v2727
      %v2729 = vand.u32 %v2728, 4294901760
      %v2730 = vsub.f32 %v2728, %v2729
      %v2731 = vand.u32 %v2730, 4294901760
      %2732 = vmatpush.msra.mxu0 %v2731
      %v2733 = vand.u32 %v1961, 4294901760
      %v2734 = vsub.f32 %v1961, %v2733
      %v2735 = vand.u32 %v2734, 4294901760
      %v2736 = vsub.f32 %v2734, %v2735
      %v2737 = vand.u32 %v2736, 4294901760
      %2738 = vmatpush.msra.mxu0 %v2737
      %v2739 = vand.u32 %v1957, 4294901760
      %v2740 = vsub.f32 %v1957, %v2739
      %v2741 = vand.u32 %v2740, 4294901760
      %v2742 = vsub.f32 %v2740, %v2741
      %v2743 = vand.u32 %v2742, 4294901760
      %2744 = vmatpush.msra.mxu0 %v2743
      %v2745 = vand.u32 %v1953, 4294901760
      %v2746 = vsub.f32 %v1953, %v2745
      %v2747 = vand.u32 %v2746, 4294901760
      %v2748 = vsub.f32 %v2746, %v2747
      %v2749 = vand.u32 %v2748, 4294901760
      %2750 = vmatpush.msra.mxu0 %v2749
      %v2751 = vand.u32 %v2113, 4294901760
      %2752 = vmatmul.f32.gmra.mxu0 %v2751
      %v2753 = vpop.f32.mrf.mxu0
      %v2754 = vadd.f32 %v2637, %v2753
      %v2755 = vand.u32 %v2116, 4294901760
      %2756 = vmatmul.f32.gmra.mxu0 %v2755
      %v2757 = vpop.f32.mrf.mxu0
      %v2758 = vadd.f32 %v2645, %v2757
      %v2759 = vand.u32 %v2119, 4294901760
      %2760 = vmatmul.f32.gmra.mxu0 %v2759
      %v2761 = vpop.f32.mrf.mxu0
      %v2762 = vadd.f32 %v2653, %v2761
      %v2763 = vand.u32 %v2122, 4294901760
      %2764 = vmatmul.f32.gmra.mxu0 %v2763
      %v2765 = vpop.f32.mrf.mxu0
      %v2766 = vadd.f32 %v2661, %v2765
      %v2767 = vand.u32 %v2125, 4294901760
      %2768 = vmatmul.f32.gmra.mxu0 %v2767
      %v2769 = vpop.f32.mrf.mxu0
      %v2770 = vadd.f32 %v2669, %v2769
      %v2771 = vand.u32 %v2128, 4294901760
      %2772 = vmatmul.f32.gmra.mxu0 %v2771
      %v2773 = vpop.f32.mrf.mxu0
      %v2774 = vadd.f32 %v2677, %v2773
      %v2775 = vand.u32 %v2131, 4294901760
      %2776 = vmatmul.f32.gmra.mxu0 %v2775
      %v2777 = vpop.f32.mrf.mxu0
      %v2778 = vadd.f32 %v2685, %v2777
      %v2779 = vand.u32 %v2134, 4294901760
      %2780 = vmatmul.f32.gmra.mxu0 %v2779
      %v2781 = vpop.f32.mrf.mxu0
      %v2782 = vadd.f32 %v2693, %v2781
      %2783 = vdwg.mxu0
      %2784 = vmatpush.msra.mxu0 0.0
      %2785 = vmatpush.msra.mxu0 0.0
      %2786 = vmatpush.msra.mxu0 0.0
      %2787 = vmatpush.msra.mxu0 0.0
      %2788 = vmatpush.msra.mxu0 0.0
      %2789 = vmatpush.msra.mxu0 0.0
      %2790 = vmatpush.msra.mxu0 0.0
      %2791 = vmatpush.msra.mxu0 0.0
      %v2792 = vand.u32 %v1981, 4294901760
      %v2793 = vsub.f32 %v1981, %v2792
      %2794 = vmatpush.msra.mxu0 %v2793
      %v2795 = vand.u32 %v1977, 4294901760
      %v2796 = vsub.f32 %v1977, %v2795
      %2797 = vmatpush.msra.mxu0 %v2796
      %v2798 = vand.u32 %v1973, 4294901760
      %v2799 = vsub.f32 %v1973, %v2798
      %2800 = vmatpush.msra.mxu0 %v2799
      %v2801 = vand.u32 %v1969, 4294901760
      %v2802 = vsub.f32 %v1969, %v2801
      %2803 = vmatpush.msra.mxu0 %v2802
      %v2804 = vand.u32 %v1965, 4294901760
      %v2805 = vsub.f32 %v1965, %v2804
      %2806 = vmatpush.msra.mxu0 %v2805
      %v2807 = vand.u32 %v1961, 4294901760
      %v2808 = vsub.f32 %v1961, %v2807
      %2809 = vmatpush.msra.mxu0 %v2808
      %v2810 = vand.u32 %v1957, 4294901760
      %v2811 = vsub.f32 %v1957, %v2810
      %2812 = vmatpush.msra.mxu0 %v2811
      %v2813 = vand.u32 %v1953, 4294901760
      %v2814 = vsub.f32 %v1953, %v2813
      %2815 = vmatpush.msra.mxu0 %v2814
      %v2816 = vand.u32 %v2113, 4294901760
      %v2817 = vsub.f32 %v2113, %v2816
      %2818 = vmatmul.f32.gmra.mxu0 %v2817
      %v2819 = vpop.f32.mrf.mxu0
      %v2820 = vadd.f32 %v2754, %v2819
      %v2821 = vand.u32 %v2116, 4294901760
      %v2822 = vsub.f32 %v2116, %v2821
      %2823 = vmatmul.f32.gmra.mxu0 %v2822
      %v2824 = vpop.f32.mrf.mxu0
      %v2825 = vadd.f32 %v2758, %v2824
      %v2826 = vand.u32 %v2119, 4294901760
      %v2827 = vsub.f32 %v2119, %v2826
      %2828 = vmatmul.f32.gmra.mxu0 %v2827
      %v2829 = vpop.f32.mrf.mxu0
      %v2830 = vadd.f32 %v2762, %v2829
      %v2831 = vand.u32 %v2122, 4294901760
      %v2832 = vsub.f32 %v2122, %v2831
      %2833 = vmatmul.f32.gmra.mxu0 %v2832
      %v2834 = vpop.f32.mrf.mxu0
      %v2835 = vadd.f32 %v2766, %v2834
      %v2836 = vand.u32 %v2125, 4294901760
      %v2837 = vsub.f32 %v2125, %v2836
      %2838 = vmatmul.f32.gmra.mxu0 %v2837
      %v2839 = vpop.f32.mrf.mxu0
      %v2840 = vadd.f32 %v2770, %v2839
      %v2841 = vand.u32 %v2128, 4294901760
      %v2842 = vsub.f32 %v2128, %v2841
      %2843 = vmatmul.f32.gmra.mxu0 %v2842
      %v2844 = vpop.f32.mrf.mxu0
      %v2845 = vadd.f32 %v2774, %v2844
      %v2846 = vand.u32 %v2131, 4294901760
      %v2847 = vsub.f32 %v2131, %v2846
      %2848 = vmatmul.f32.gmra.mxu0 %v2847
      %v2849 = vpop.f32.mrf.mxu0
      %v2850 = vadd.f32 %v2778, %v2849
      %v2851 = vand.u32 %v2134, 4294901760
      %v2852 = vsub.f32 %v2134, %v2851
      %2853 = vmatmul.f32.gmra.mxu0 %v2852
      %v2854 = vpop.f32.mrf.mxu0
      %v2855 = vadd.f32 %v2782, %v2854
      %2856 = vdwg.mxu0
      %2857 = vmatpush.msra.mxu0 0.0
      %2858 = vmatpush.msra.mxu0 0.0
      %2859 = vmatpush.msra.mxu0 0.0
      %2860 = vmatpush.msra.mxu0 0.0
      %2861 = vmatpush.msra.mxu0 0.0
      %2862 = vmatpush.msra.mxu0 0.0
      %2863 = vmatpush.msra.mxu0 0.0
      %2864 = vmatpush.msra.mxu0 0.0
      %v2865 = vand.u32 %v1981, 4294901760
      %2866 = vmatpush.msra.mxu0 %v2865
      %v2867 = vand.u32 %v1977, 4294901760
      %2868 = vmatpush.msra.mxu0 %v2867
      %v2869 = vand.u32 %v1973, 4294901760
      %2870 = vmatpush.msra.mxu0 %v2869
      %v2871 = vand.u32 %v1969, 4294901760
      %2872 = vmatpush.msra.mxu0 %v2871
      %v2873 = vand.u32 %v1965, 4294901760
      %2874 = vmatpush.msra.mxu0 %v2873
      %v2875 = vand.u32 %v1961, 4294901760
      %2876 = vmatpush.msra.mxu0 %v2875
      %v2877 = vand.u32 %v1957, 4294901760
      %2878 = vmatpush.msra.mxu0 %v2877
      %v2879 = vand.u32 %v1953, 4294901760
      %2880 = vmatpush.msra.mxu0 %v2879
      %v2881 = vand.u32 %v2113, 4294901760
      %v2882 = vsub.f32 %v2113, %v2881
      %v2883 = vand.u32 %v2882, 4294901760
      %2884 = vmatmul.f32.gmra.mxu0 %v2883
      %v2885 = vpop.f32.mrf.mxu0
      %v2886 = vadd.f32 %v2820, %v2885
      %v2887 = vand.u32 %v2116, 4294901760
      %v2888 = vsub.f32 %v2116, %v2887
      %v2889 = vand.u32 %v2888, 4294901760
      %2890 = vmatmul.f32.gmra.mxu0 %v2889
      %v2891 = vpop.f32.mrf.mxu0
      %v2892 = vadd.f32 %v2825, %v2891
      %v2893 = vand.u32 %v2119, 4294901760
      %v2894 = vsub.f32 %v2119, %v2893
      %v2895 = vand.u32 %v2894, 4294901760
      %2896 = vmatmul.f32.gmra.mxu0 %v2895
      %v2897 = vpop.f32.mrf.mxu0
      %v2898 = vadd.f32 %v2830, %v2897
      %v2899 = vand.u32 %v2122, 4294901760
      %v2900 = vsub.f32 %v2122, %v2899
      %v2901 = vand.u32 %v2900, 4294901760
      %2902 = vmatmul.f32.gmra.mxu0 %v2901
      %v2903 = vpop.f32.mrf.mxu0
      %v2904 = vadd.f32 %v2835, %v2903
      %v2905 = vand.u32 %v2125, 4294901760
      %v2906 = vsub.f32 %v2125, %v2905
      %v2907 = vand.u32 %v2906, 4294901760
      %2908 = vmatmul.f32.gmra.mxu0 %v2907
      %v2909 = vpop.f32.mrf.mxu0
      %v2910 = vadd.f32 %v2840, %v2909
      %v2911 = vand.u32 %v2128, 4294901760
      %v2912 = vsub.f32 %v2128, %v2911
      %v2913 = vand.u32 %v2912, 4294901760
      %2914 = vmatmul.f32.gmra.mxu0 %v2913
      %v2915 = vpop.f32.mrf.mxu0
      %v2916 = vadd.f32 %v2845, %v2915
      %v2917 = vand.u32 %v2131, 4294901760
      %v2918 = vsub.f32 %v2131, %v2917
      %v2919 = vand.u32 %v2918, 4294901760
      %2920 = vmatmul.f32.gmra.mxu0 %v2919
      %v2921 = vpop.f32.mrf.mxu0
      %v2922 = vadd.f32 %v2850, %v2921
      %v2923 = vand.u32 %v2134, 4294901760
      %v2924 = vsub.f32 %v2134, %v2923
      %v2925 = vand.u32 %v2924, 4294901760
      %2926 = vmatmul.f32.gmra.mxu0 %v2925
      %v2927 = vpop.f32.mrf.mxu0
      %v2928 = vadd.f32 %v2855, %v2927
      %2929 = vdwg.mxu0
      %2930 = vmatpush.msra.mxu0 0.0
      %2931 = vmatpush.msra.mxu0 0.0
      %2932 = vmatpush.msra.mxu0 0.0
      %2933 = vmatpush.msra.mxu0 0.0
      %2934 = vmatpush.msra.mxu0 0.0
      %2935 = vmatpush.msra.mxu0 0.0
      %2936 = vmatpush.msra.mxu0 0.0
      %2937 = vmatpush.msra.mxu0 0.0
      %v2938 = vand.u32 %v1981, 4294901760
      %v2939 = vsub.f32 %v1981, %v2938
      %v2940 = vand.u32 %v2939, 4294901760
      %2941 = vmatpush.msra.mxu0 %v2940
      %v2942 = vand.u32 %v1977, 4294901760
      %v2943 = vsub.f32 %v1977, %v2942
      %v2944 = vand.u32 %v2943, 4294901760
      %2945 = vmatpush.msra.mxu0 %v2944
      %v2946 = vand.u32 %v1973, 4294901760
      %v2947 = vsub.f32 %v1973, %v2946
      %v2948 = vand.u32 %v2947, 4294901760
      %2949 = vmatpush.msra.mxu0 %v2948
      %v2950 = vand.u32 %v1969, 4294901760
      %v2951 = vsub.f32 %v1969, %v2950
      %v2952 = vand.u32 %v2951, 4294901760
      %2953 = vmatpush.msra.mxu0 %v2952
      %v2954 = vand.u32 %v1965, 4294901760
      %v2955 = vsub.f32 %v1965, %v2954
      %v2956 = vand.u32 %v2955, 4294901760
      %2957 = vmatpush.msra.mxu0 %v2956
      %v2958 = vand.u32 %v1961, 4294901760
      %v2959 = vsub.f32 %v1961, %v2958
      %v2960 = vand.u32 %v2959, 4294901760
      %2961 = vmatpush.msra.mxu0 %v2960
      %v2962 = vand.u32 %v1957, 4294901760
      %v2963 = vsub.f32 %v1957, %v2962
      %v2964 = vand.u32 %v2963, 4294901760
      %2965 = vmatpush.msra.mxu0 %v2964
      %v2966 = vand.u32 %v1953, 4294901760
      %v2967 = vsub.f32 %v1953, %v2966
      %v2968 = vand.u32 %v2967, 4294901760
      %2969 = vmatpush.msra.mxu0 %v2968
      %v2970 = vand.u32 %v2113, 4294901760
      %2971 = vmatmul.f32.gmra.mxu0 %v2970
      %v2972 = vpop.f32.mrf.mxu0
      %v2973 = vadd.f32 %v2886, %v2972
      %v2974 = vand.u32 %v2116, 4294901760
      %2975 = vmatmul.f32.gmra.mxu0 %v2974
      %v2976 = vpop.f32.mrf.mxu0
      %v2977 = vadd.f32 %v2892, %v2976
      %v2978 = vand.u32 %v2119, 4294901760
      %2979 = vmatmul.f32.gmra.mxu0 %v2978
      %v2980 = vpop.f32.mrf.mxu0
      %v2981 = vadd.f32 %v2898, %v2980
      %v2982 = vand.u32 %v2122, 4294901760
      %2983 = vmatmul.f32.gmra.mxu0 %v2982
      %v2984 = vpop.f32.mrf.mxu0
      %v2985 = vadd.f32 %v2904, %v2984
      %v2986 = vand.u32 %v2125, 4294901760
      %2987 = vmatmul.f32.gmra.mxu0 %v2986
      %v2988 = vpop.f32.mrf.mxu0
      %v2989 = vadd.f32 %v2910, %v2988
      %v2990 = vand.u32 %v2128, 4294901760
      %2991 = vmatmul.f32.gmra.mxu0 %v2990
      %v2992 = vpop.f32.mrf.mxu0
      %v2993 = vadd.f32 %v2916, %v2992
      %v2994 = vand.u32 %v2131, 4294901760
      %2995 = vmatmul.f32.gmra.mxu0 %v2994
      %v2996 = vpop.f32.mrf.mxu0
      %v2997 = vadd.f32 %v2922, %v2996
      %v2998 = vand.u32 %v2134, 4294901760
      %2999 = vmatmul.f32.gmra.mxu0 %v2998
      %v3000 = vpop.f32.mrf.mxu0
      %v3001 = vadd.f32 %v2928, %v3000
      %3002 = vdwg.mxu0
      %3003 = vmatpush.msra.mxu0 0.0
      %3004 = vmatpush.msra.mxu0 0.0
      %3005 = vmatpush.msra.mxu0 0.0
      %3006 = vmatpush.msra.mxu0 0.0
      %3007 = vmatpush.msra.mxu0 0.0
      %3008 = vmatpush.msra.mxu0 0.0
      %3009 = vmatpush.msra.mxu0 0.0
      %3010 = vmatpush.msra.mxu0 0.0
      %v3011 = vand.u32 %v1981, 4294901760
      %3012 = vmatpush.msra.mxu0 %v3011
      %v3013 = vand.u32 %v1977, 4294901760
      %3014 = vmatpush.msra.mxu0 %v3013
      %v3015 = vand.u32 %v1973, 4294901760
      %3016 = vmatpush.msra.mxu0 %v3015
      %v3017 = vand.u32 %v1969, 4294901760
      %3018 = vmatpush.msra.mxu0 %v3017
      %v3019 = vand.u32 %v1965, 4294901760
      %3020 = vmatpush.msra.mxu0 %v3019
      %v3021 = vand.u32 %v1961, 4294901760
      %3022 = vmatpush.msra.mxu0 %v3021
      %v3023 = vand.u32 %v1957, 4294901760
      %3024 = vmatpush.msra.mxu0 %v3023
      %v3025 = vand.u32 %v1953, 4294901760
      %3026 = vmatpush.msra.mxu0 %v3025
      %v3027 = vand.u32 %v2113, 4294901760
      %3028 = vmatmul.f32.gmra.mxu0 %v3027
      %v3029 = vpop.f32.mrf.mxu0
      %v3030 = vadd.f32 %v2973, %v3029
      %v3031 = vand.u32 %v2116, 4294901760
      %3032 = vmatmul.f32.gmra.mxu0 %v3031
      %v3033 = vpop.f32.mrf.mxu0
      %v3034 = vadd.f32 %v2977, %v3033
      %v3035 = vand.u32 %v2119, 4294901760
      %3036 = vmatmul.f32.gmra.mxu0 %v3035
      %v3037 = vpop.f32.mrf.mxu0
      %v3038 = vadd.f32 %v2981, %v3037
      %v3039 = vand.u32 %v2122, 4294901760
      %3040 = vmatmul.f32.gmra.mxu0 %v3039
      %v3041 = vpop.f32.mrf.mxu0
      %v3042 = vadd.f32 %v2985, %v3041
      %v3043 = vand.u32 %v2125, 4294901760
      %3044 = vmatmul.f32.gmra.mxu0 %v3043
      %v3045 = vpop.f32.mrf.mxu0
      %v3046 = vadd.f32 %v2989, %v3045
      %v3047 = vand.u32 %v2128, 4294901760
      %3048 = vmatmul.f32.gmra.mxu0 %v3047
      %v3049 = vpop.f32.mrf.mxu0
      %v3050 = vadd.f32 %v2993, %v3049
      %v3051 = vand.u32 %v2131, 4294901760
      %3052 = vmatmul.f32.gmra.mxu0 %v3051
      %v3053 = vpop.f32.mrf.mxu0
      %v3054 = vadd.f32 %v2997, %v3053
      %v3055 = vand.u32 %v2134, 4294901760
      %3056 = vmatmul.f32.gmra.mxu0 %v3055
      %v3057 = vpop.f32.mrf.mxu0
      %v3058 = vadd.f32 %v3001, %v3057
      %3059 = vdwg.mxu0
      %v3060 = vsub.f32 %v3030, %v2111
      %v3061 = vsub.f32 %v3034, %v2111
      %v3062 = vsub.f32 %v3038, %v2111
      %v3063 = vsub.f32 %v3042, %v2111
      %v3064 = vsub.f32 %v3046, %v2111
      %v3065 = vsub.f32 %v3050, %v2111
      %v3066 = vsub.f32 %v3054, %v2111
      %v3067 = vsub.f32 %v3058, %v2111
      %s3068 = scalar_lea.vmem %s205, 64
      %3069 = vst.msk [vmem:[%s3068] sm:$0xff] %vm272, %v3060
      %3070 = vst.msk [vmem:[%s3068 + $0x8] sm:$0xff] %vm272, %v3061
      %3071 = vst.msk [vmem:[%s3068 + $0x10] sm:$0xff] %vm272, %v3062
      %3072 = vst.msk [vmem:[%s3068 + $0x18] sm:$0xff] %vm272, %v3063
      %3073 = vst.msk [vmem:[%s3068 + $0x20] sm:$0xff] %vm272, %v3064
      %3074 = vst.msk [vmem:[%s3068 + $0x28] sm:$0xff] %vm272, %v3065
      %3075 = vst.msk [vmem:[%s3068 + $0x30] sm:$0xff] %vm272, %v3066
      %3076 = vst.msk [vmem:[%s3068 + $0x38] sm:$0xff] %vm272, %v3067
      %3077 = vmatpush.msra.mxu0 0.0
      %3078 = vmatpush.msra.mxu0 0.0
      %3079 = vmatpush.msra.mxu0 0.0
      %3080 = vmatpush.msra.mxu0 0.0
      %3081 = vmatpush.msra.mxu0 0.0
      %3082 = vmatpush.msra.mxu0 0.0
      %3083 = vmatpush.msra.mxu0 0.0
      %3084 = vmatpush.msra.mxu0 0.0
      %v3085 = vand.u32 %v2013, 4294901760
      %3086 = vmatpush.msra.mxu0 %v3085
      %v3087 = vand.u32 %v2009, 4294901760
      %3088 = vmatpush.msra.mxu0 %v3087
      %v3089 = vand.u32 %v2005, 4294901760
      %3090 = vmatpush.msra.mxu0 %v3089
      %v3091 = vand.u32 %v2001, 4294901760
      %3092 = vmatpush.msra.mxu0 %v3091
      %v3093 = vand.u32 %v1997, 4294901760
      %3094 = vmatpush.msra.mxu0 %v3093
      %v3095 = vand.u32 %v1993, 4294901760
      %3096 = vmatpush.msra.mxu0 %v3095
      %v3097 = vand.u32 %v1989, 4294901760
      %3098 = vmatpush.msra.mxu0 %v3097
      %v3099 = vand.u32 %v1985, 4294901760
      %3100 = vmatpush.msra.mxu0 %v3099
      %v3101 = vand.u32 %v2113, 4294901760
      %v3102 = vsub.f32 %v2113, %v3101
      %v3103 = vand.u32 %v3102, 4294901760
      %v3104 = vsub.f32 %v3102, %v3103
      %v3105 = vand.u32 %v3104, 4294901760
      %3106 = vmatmul.f32.gmra.mxu0 %v3105
      %v3107 = vpop.f32.mrf.mxu0
      %v3108 = vadd.f32 %v2111, %v3107
      %v3109 = vand.u32 %v2116, 4294901760
      %v3110 = vsub.f32 %v2116, %v3109
      %v3111 = vand.u32 %v3110, 4294901760
      %v3112 = vsub.f32 %v3110, %v3111
      %v3113 = vand.u32 %v3112, 4294901760
      %3114 = vmatmul.f32.gmra.mxu0 %v3113
      %v3115 = vpop.f32.mrf.mxu0
      %v3116 = vadd.f32 %v2111, %v3115
      %v3117 = vand.u32 %v2119, 4294901760
      %v3118 = vsub.f32 %v2119, %v3117
      %v3119 = vand.u32 %v3118, 4294901760
      %v3120 = vsub.f32 %v3118, %v3119
      %v3121 = vand.u32 %v3120, 4294901760
      %3122 = vmatmul.f32.gmra.mxu0 %v3121
      %v3123 = vpop.f32.mrf.mxu0
      %v3124 = vadd.f32 %v2111, %v3123
      %v3125 = vand.u32 %v2122, 4294901760
      %v3126 = vsub.f32 %v2122, %v3125
      %v3127 = vand.u32 %v3126, 4294901760
      %v3128 = vsub.f32 %v3126, %v3127
      %v3129 = vand.u32 %v3128, 4294901760
      %3130 = vmatmul.f32.gmra.mxu0 %v3129
      %v3131 = vpop.f32.mrf.mxu0
      %v3132 = vadd.f32 %v2111, %v3131
      %v3133 = vand.u32 %v2125, 4294901760
      %v3134 = vsub.f32 %v2125, %v3133
      %v3135 = vand.u32 %v3134, 4294901760
      %v3136 = vsub.f32 %v3134, %v3135
      %v3137 = vand.u32 %v3136, 4294901760
      %3138 = vmatmul.f32.gmra.mxu0 %v3137
      %v3139 = vpop.f32.mrf.mxu0
      %v3140 = vadd.f32 %v2111, %v3139
      %v3141 = vand.u32 %v2128, 4294901760
      %v3142 = vsub.f32 %v2128, %v3141
      %v3143 = vand.u32 %v3142, 4294901760
      %v3144 = vsub.f32 %v3142, %v3143
      %v3145 = vand.u32 %v3144, 4294901760
      %3146 = vmatmul.f32.gmra.mxu0 %v3145
      %v3147 = vpop.f32.mrf.mxu0
      %v3148 = vadd.f32 %v2111, %v3147
      %v3149 = vand.u32 %v2131, 4294901760
      %v3150 = vsub.f32 %v2131, %v3149
      %v3151 = vand.u32 %v3150, 4294901760
      %v3152 = vsub.f32 %v3150, %v3151
      %v3153 = vand.u32 %v3152, 4294901760
      %3154 = vmatmul.f32.gmra.mxu0 %v3153
      %v3155 = vpop.f32.mrf.mxu0
      %v3156 = vadd.f32 %v2111, %v3155
      %v3157 = vand.u32 %v2134, 4294901760
      %v3158 = vsub.f32 %v2134, %v3157
      %v3159 = vand.u32 %v3158, 4294901760
      %v3160 = vsub.f32 %v3158, %v3159
      %v3161 = vand.u32 %v3160, 4294901760
      %3162 = vmatmul.f32.gmra.mxu0 %v3161
      %v3163 = vpop.f32.mrf.mxu0
      %v3164 = vadd.f32 %v2111, %v3163
      %3165 = vdwg.mxu0
      %3166 = vmatpush.msra.mxu0 0.0
      %3167 = vmatpush.msra.mxu0 0.0
      %3168 = vmatpush.msra.mxu0 0.0
      %3169 = vmatpush.msra.mxu0 0.0
      %3170 = vmatpush.msra.mxu0 0.0
      %3171 = vmatpush.msra.mxu0 0.0
      %3172 = vmatpush.msra.mxu0 0.0
      %3173 = vmatpush.msra.mxu0 0.0
      %v3174 = vand.u32 %v2013, 4294901760
      %v3175 = vsub.f32 %v2013, %v3174
      %v3176 = vand.u32 %v3175, 4294901760
      %v3177 = vsub.f32 %v3175, %v3176
      %v3178 = vand.u32 %v3177, 4294901760
      %3179 = vmatpush.msra.mxu0 %v3178
      %v3180 = vand.u32 %v2009, 4294901760
      %v3181 = vsub.f32 %v2009, %v3180
      %v3182 = vand.u32 %v3181, 4294901760
      %v3183 = vsub.f32 %v3181, %v3182
      %v3184 = vand.u32 %v3183, 4294901760
      %3185 = vmatpush.msra.mxu0 %v3184
      %v3186 = vand.u32 %v2005, 4294901760
      %v3187 = vsub.f32 %v2005, %v3186
      %v3188 = vand.u32 %v3187, 4294901760
      %v3189 = vsub.f32 %v3187, %v3188
      %v3190 = vand.u32 %v3189, 4294901760
      %3191 = vmatpush.msra.mxu0 %v3190
      %v3192 = vand.u32 %v2001, 4294901760
      %v3193 = vsub.f32 %v2001, %v3192
      %v3194 = vand.u32 %v3193, 4294901760
      %v3195 = vsub.f32 %v3193, %v3194
      %v3196 = vand.u32 %v3195, 4294901760
      %3197 = vmatpush.msra.mxu0 %v3196
      %v3198 = vand.u32 %v1997, 4294901760
      %v3199 = vsub.f32 %v1997, %v3198
      %v3200 = vand.u32 %v3199, 4294901760
      %v3201 = vsub.f32 %v3199, %v3200
      %v3202 = vand.u32 %v3201, 4294901760
      %3203 = vmatpush.msra.mxu0 %v3202
      %v3204 = vand.u32 %v1993, 4294901760
      %v3205 = vsub.f32 %v1993, %v3204
      %v3206 = vand.u32 %v3205, 4294901760
      %v3207 = vsub.f32 %v3205, %v3206
      %v3208 = vand.u32 %v3207, 4294901760
      %3209 = vmatpush.msra.mxu0 %v3208
      %v3210 = vand.u32 %v1989, 4294901760
      %v3211 = vsub.f32 %v1989, %v3210
      %v3212 = vand.u32 %v3211, 4294901760
      %v3213 = vsub.f32 %v3211, %v3212
      %v3214 = vand.u32 %v3213, 4294901760
      %3215 = vmatpush.msra.mxu0 %v3214
      %v3216 = vand.u32 %v1985, 4294901760
      %v3217 = vsub.f32 %v1985, %v3216
      %v3218 = vand.u32 %v3217, 4294901760
      %v3219 = vsub.f32 %v3217, %v3218
      %v3220 = vand.u32 %v3219, 4294901760
      %3221 = vmatpush.msra.mxu0 %v3220
      %v3222 = vand.u32 %v2113, 4294901760
      %3223 = vmatmul.f32.gmra.mxu0 %v3222
      %v3224 = vpop.f32.mrf.mxu0
      %v3225 = vadd.f32 %v3108, %v3224
      %v3226 = vand.u32 %v2116, 4294901760
      %3227 = vmatmul.f32.gmra.mxu0 %v3226
      %v3228 = vpop.f32.mrf.mxu0
      %v3229 = vadd.f32 %v3116, %v3228
      %v3230 = vand.u32 %v2119, 4294901760
      %3231 = vmatmul.f32.gmra.mxu0 %v3230
      %v3232 = vpop.f32.mrf.mxu0
      %v3233 = vadd.f32 %v3124, %v3232
      %v3234 = vand.u32 %v2122, 4294901760
      %3235 = vmatmul.f32.gmra.mxu0 %v3234
      %v3236 = vpop.f32.mrf.mxu0
      %v3237 = vadd.f32 %v3132, %v3236
      %v3238 = vand.u32 %v2125, 4294901760
      %3239 = vmatmul.f32.gmra.mxu0 %v3238
      %v3240 = vpop.f32.mrf.mxu0
      %v3241 = vadd.f32 %v3140, %v3240
      %v3242 = vand.u32 %v2128, 4294901760
      %3243 = vmatmul.f32.gmra.mxu0 %v3242
      %v3244 = vpop.f32.mrf.mxu0
      %v3245 = vadd.f32 %v3148, %v3244
      %v3246 = vand.u32 %v2131, 4294901760
      %3247 = vmatmul.f32.gmra.mxu0 %v3246
      %v3248 = vpop.f32.mrf.mxu0
      %v3249 = vadd.f32 %v3156, %v3248
      %v3250 = vand.u32 %v2134, 4294901760
      %3251 = vmatmul.f32.gmra.mxu0 %v3250
      %v3252 = vpop.f32.mrf.mxu0
      %v3253 = vadd.f32 %v3164, %v3252
      %3254 = vdwg.mxu0
      %3255 = vmatpush.msra.mxu0 0.0
      %3256 = vmatpush.msra.mxu0 0.0
      %3257 = vmatpush.msra.mxu0 0.0
      %3258 = vmatpush.msra.mxu0 0.0
      %3259 = vmatpush.msra.mxu0 0.0
      %3260 = vmatpush.msra.mxu0 0.0
      %3261 = vmatpush.msra.mxu0 0.0
      %3262 = vmatpush.msra.mxu0 0.0
      %v3263 = vand.u32 %v2013, 4294901760
      %v3264 = vsub.f32 %v2013, %v3263
      %3265 = vmatpush.msra.mxu0 %v3264
      %v3266 = vand.u32 %v2009, 4294901760
      %v3267 = vsub.f32 %v2009, %v3266
      %3268 = vmatpush.msra.mxu0 %v3267
      %v3269 = vand.u32 %v2005, 4294901760
      %v3270 = vsub.f32 %v2005, %v3269
      %3271 = vmatpush.msra.mxu0 %v3270
      %v3272 = vand.u32 %v2001, 4294901760
      %v3273 = vsub.f32 %v2001, %v3272
      %3274 = vmatpush.msra.mxu0 %v3273
      %v3275 = vand.u32 %v1997, 4294901760
      %v3276 = vsub.f32 %v1997, %v3275
      %3277 = vmatpush.msra.mxu0 %v3276
      %v3278 = vand.u32 %v1993, 4294901760
      %v3279 = vsub.f32 %v1993, %v3278
      %3280 = vmatpush.msra.mxu0 %v3279
      %v3281 = vand.u32 %v1989, 4294901760
      %v3282 = vsub.f32 %v1989, %v3281
      %3283 = vmatpush.msra.mxu0 %v3282
      %v3284 = vand.u32 %v1985, 4294901760
      %v3285 = vsub.f32 %v1985, %v3284
      %3286 = vmatpush.msra.mxu0 %v3285
      %v3287 = vand.u32 %v2113, 4294901760
      %v3288 = vsub.f32 %v2113, %v3287
      %3289 = vmatmul.f32.gmra.mxu0 %v3288
      %v3290 = vpop.f32.mrf.mxu0
      %v3291 = vadd.f32 %v3225, %v3290
      %v3292 = vand.u32 %v2116, 4294901760
      %v3293 = vsub.f32 %v2116, %v3292
      %3294 = vmatmul.f32.gmra.mxu0 %v3293
      %v3295 = vpop.f32.mrf.mxu0
      %v3296 = vadd.f32 %v3229, %v3295
      %v3297 = vand.u32 %v2119, 4294901760
      %v3298 = vsub.f32 %v2119, %v3297
      %3299 = vmatmul.f32.gmra.mxu0 %v3298
      %v3300 = vpop.f32.mrf.mxu0
      %v3301 = vadd.f32 %v3233, %v3300
      %v3302 = vand.u32 %v2122, 4294901760
      %v3303 = vsub.f32 %v2122, %v3302
      %3304 = vmatmul.f32.gmra.mxu0 %v3303
      %v3305 = vpop.f32.mrf.mxu0
      %v3306 = vadd.f32 %v3237, %v3305
      %v3307 = vand.u32 %v2125, 4294901760
      %v3308 = vsub.f32 %v2125, %v3307
      %3309 = vmatmul.f32.gmra.mxu0 %v3308
      %v3310 = vpop.f32.mrf.mxu0
      %v3311 = vadd.f32 %v3241, %v3310
      %v3312 = vand.u32 %v2128, 4294901760
      %v3313 = vsub.f32 %v2128, %v3312
      %3314 = vmatmul.f32.gmra.mxu0 %v3313
      %v3315 = vpop.f32.mrf.mxu0
      %v3316 = vadd.f32 %v3245, %v3315
      %v3317 = vand.u32 %v2131, 4294901760
      %v3318 = vsub.f32 %v2131, %v3317
      %3319 = vmatmul.f32.gmra.mxu0 %v3318
      %v3320 = vpop.f32.mrf.mxu0
      %v3321 = vadd.f32 %v3249, %v3320
      %v3322 = vand.u32 %v2134, 4294901760
      %v3323 = vsub.f32 %v2134, %v3322
      %3324 = vmatmul.f32.gmra.mxu0 %v3323
      %v3325 = vpop.f32.mrf.mxu0
      %v3326 = vadd.f32 %v3253, %v3325
      %3327 = vdwg.mxu0
      %3328 = vmatpush.msra.mxu0 0.0
      %3329 = vmatpush.msra.mxu0 0.0
      %3330 = vmatpush.msra.mxu0 0.0
      %3331 = vmatpush.msra.mxu0 0.0
      %3332 = vmatpush.msra.mxu0 0.0
      %3333 = vmatpush.msra.mxu0 0.0
      %3334 = vmatpush.msra.mxu0 0.0
      %3335 = vmatpush.msra.mxu0 0.0
      %v3336 = vand.u32 %v2013, 4294901760
      %3337 = vmatpush.msra.mxu0 %v3336
      %v3338 = vand.u32 %v2009, 4294901760
      %3339 = vmatpush.msra.mxu0 %v3338
      %v3340 = vand.u32 %v2005, 4294901760
      %3341 = vmatpush.msra.mxu0 %v3340
      %v3342 = vand.u32 %v2001, 4294901760
      %3343 = vmatpush.msra.mxu0 %v3342
      %v3344 = vand.u32 %v1997, 4294901760
      %3345 = vmatpush.msra.mxu0 %v3344
      %v3346 = vand.u32 %v1993, 4294901760
      %3347 = vmatpush.msra.mxu0 %v3346
      %v3348 = vand.u32 %v1989, 4294901760
      %3349 = vmatpush.msra.mxu0 %v3348
      %v3350 = vand.u32 %v1985, 4294901760
      %3351 = vmatpush.msra.mxu0 %v3350
      %v3352 = vand.u32 %v2113, 4294901760
      %v3353 = vsub.f32 %v2113, %v3352
      %v3354 = vand.u32 %v3353, 4294901760
      %3355 = vmatmul.f32.gmra.mxu0 %v3354
      %v3356 = vpop.f32.mrf.mxu0
      %v3357 = vadd.f32 %v3291, %v3356
      %v3358 = vand.u32 %v2116, 4294901760
      %v3359 = vsub.f32 %v2116, %v3358
      %v3360 = vand.u32 %v3359, 4294901760
      %3361 = vmatmul.f32.gmra.mxu0 %v3360
      %v3362 = vpop.f32.mrf.mxu0
      %v3363 = vadd.f32 %v3296, %v3362
      %v3364 = vand.u32 %v2119, 4294901760
      %v3365 = vsub.f32 %v2119, %v3364
      %v3366 = vand.u32 %v3365, 4294901760
      %3367 = vmatmul.f32.gmra.mxu0 %v3366
      %v3368 = vpop.f32.mrf.mxu0
      %v3369 = vadd.f32 %v3301, %v3368
      %v3370 = vand.u32 %v2122, 4294901760
      %v3371 = vsub.f32 %v2122, %v3370
      %v3372 = vand.u32 %v3371, 4294901760
      %3373 = vmatmul.f32.gmra.mxu0 %v3372
      %v3374 = vpop.f32.mrf.mxu0
      %v3375 = vadd.f32 %v3306, %v3374
      %v3376 = vand.u32 %v2125, 4294901760
      %v3377 = vsub.f32 %v2125, %v3376
      %v3378 = vand.u32 %v3377, 4294901760
      %3379 = vmatmul.f32.gmra.mxu0 %v3378
      %v3380 = vpop.f32.mrf.mxu0
      %v3381 = vadd.f32 %v3311, %v3380
      %v3382 = vand.u32 %v2128, 4294901760
      %v3383 = vsub.f32 %v2128, %v3382
      %v3384 = vand.u32 %v3383, 4294901760
      %3385 = vmatmul.f32.gmra.mxu0 %v3384
      %v3386 = vpop.f32.mrf.mxu0
      %v3387 = vadd.f32 %v3316, %v3386
      %v3388 = vand.u32 %v2131, 4294901760
      %v3389 = vsub.f32 %v2131, %v3388
      %v3390 = vand.u32 %v3389, 4294901760
      %3391 = vmatmul.f32.gmra.mxu0 %v3390
      %v3392 = vpop.f32.mrf.mxu0
      %v3393 = vadd.f32 %v3321, %v3392
      %v3394 = vand.u32 %v2134, 4294901760
      %v3395 = vsub.f32 %v2134, %v3394
      %v3396 = vand.u32 %v3395, 4294901760
      %3397 = vmatmul.f32.gmra.mxu0 %v3396
      %v3398 = vpop.f32.mrf.mxu0
      %v3399 = vadd.f32 %v3326, %v3398
      %3400 = vdwg.mxu0
      %3401 = vmatpush.msra.mxu0 0.0
      %3402 = vmatpush.msra.mxu0 0.0
      %3403 = vmatpush.msra.mxu0 0.0
      %3404 = vmatpush.msra.mxu0 0.0
      %3405 = vmatpush.msra.mxu0 0.0
      %3406 = vmatpush.msra.mxu0 0.0
      %3407 = vmatpush.msra.mxu0 0.0
      %3408 = vmatpush.msra.mxu0 0.0
      %v3409 = vand.u32 %v2013, 4294901760
      %v3410 = vsub.f32 %v2013, %v3409
      %v3411 = vand.u32 %v3410, 4294901760
      %3412 = vmatpush.msra.mxu0 %v3411
      %v3413 = vand.u32 %v2009, 4294901760
      %v3414 = vsub.f32 %v2009, %v3413
      %v3415 = vand.u32 %v3414, 4294901760
      %3416 = vmatpush.msra.mxu0 %v3415
      %v3417 = vand.u32 %v2005, 4294901760
      %v3418 = vsub.f32 %v2005, %v3417
      %v3419 = vand.u32 %v3418, 4294901760
      %3420 = vmatpush.msra.mxu0 %v3419
      %v3421 = vand.u32 %v2001, 4294901760
      %v3422 = vsub.f32 %v2001, %v3421
      %v3423 = vand.u32 %v3422, 4294901760
      %3424 = vmatpush.msra.mxu0 %v3423
      %v3425 = vand.u32 %v1997, 4294901760
      %v3426 = vsub.f32 %v1997, %v3425
      %v3427 = vand.u32 %v3426, 4294901760
      %3428 = vmatpush.msra.mxu0 %v3427
      %v3429 = vand.u32 %v1993, 4294901760
      %v3430 = vsub.f32 %v1993, %v3429
      %v3431 = vand.u32 %v3430, 4294901760
      %3432 = vmatpush.msra.mxu0 %v3431
      %v3433 = vand.u32 %v1989, 4294901760
      %v3434 = vsub.f32 %v1989, %v3433
      %v3435 = vand.u32 %v3434, 4294901760
      %3436 = vmatpush.msra.mxu0 %v3435
      %v3437 = vand.u32 %v1985, 4294901760
      %v3438 = vsub.f32 %v1985, %v3437
      %v3439 = vand.u32 %v3438, 4294901760
      %3440 = vmatpush.msra.mxu0 %v3439
      %v3441 = vand.u32 %v2113, 4294901760
      %3442 = vmatmul.f32.gmra.mxu0 %v3441
      %v3443 = vpop.f32.mrf.mxu0
      %v3444 = vadd.f32 %v3357, %v3443
      %v3445 = vand.u32 %v2116, 4294901760
      %3446 = vmatmul.f32.gmra.mxu0 %v3445
      %v3447 = vpop.f32.mrf.mxu0
      %v3448 = vadd.f32 %v3363, %v3447
      %v3449 = vand.u32 %v2119, 4294901760
      %3450 = vmatmul.f32.gmra.mxu0 %v3449
      %v3451 = vpop.f32.mrf.mxu0
      %v3452 = vadd.f32 %v3369, %v3451
      %v3453 = vand.u32 %v2122, 4294901760
      %3454 = vmatmul.f32.gmra.mxu0 %v3453
      %v3455 = vpop.f32.mrf.mxu0
      %v3456 = vadd.f32 %v3375, %v3455
      %v3457 = vand.u32 %v2125, 4294901760
      %3458 = vmatmul.f32.gmra.mxu0 %v3457
      %v3459 = vpop.f32.mrf.mxu0
      %v3460 = vadd.f32 %v3381, %v3459
      %v3461 = vand.u32 %v2128, 4294901760
      %3462 = vmatmul.f32.gmra.mxu0 %v3461
      %v3463 = vpop.f32.mrf.mxu0
      %v3464 = vadd.f32 %v3387, %v3463
      %v3465 = vand.u32 %v2131, 4294901760
      %3466 = vmatmul.f32.gmra.mxu0 %v3465
      %v3467 = vpop.f32.mrf.mxu0
      %v3468 = vadd.f32 %v3393, %v3467
      %v3469 = vand.u32 %v2134, 4294901760
      %3470 = vmatmul.f32.gmra.mxu0 %v3469
      %v3471 = vpop.f32.mrf.mxu0
      %v3472 = vadd.f32 %v3399, %v3471
      %3473 = vdwg.mxu0
      %3474 = vmatpush.msra.mxu0 0.0
      %3475 = vmatpush.msra.mxu0 0.0
      %3476 = vmatpush.msra.mxu0 0.0
      %3477 = vmatpush.msra.mxu0 0.0
      %3478 = vmatpush.msra.mxu0 0.0
      %3479 = vmatpush.msra.mxu0 0.0
      %3480 = vmatpush.msra.mxu0 0.0
      %3481 = vmatpush.msra.mxu0 0.0
      %v3482 = vand.u32 %v2013, 4294901760
      %3483 = vmatpush.msra.mxu0 %v3482
      %v3484 = vand.u32 %v2009, 4294901760
      %3485 = vmatpush.msra.mxu0 %v3484
      %v3486 = vand.u32 %v2005, 4294901760
      %3487 = vmatpush.msra.mxu0 %v3486
      %v3488 = vand.u32 %v2001, 4294901760
      %3489 = vmatpush.msra.mxu0 %v3488
      %v3490 = vand.u32 %v1997, 4294901760
      %3491 = vmatpush.msra.mxu0 %v3490
      %v3492 = vand.u32 %v1993, 4294901760
      %3493 = vmatpush.msra.mxu0 %v3492
      %v3494 = vand.u32 %v1989, 4294901760
      %3495 = vmatpush.msra.mxu0 %v3494
      %v3496 = vand.u32 %v1985, 4294901760
      %3497 = vmatpush.msra.mxu0 %v3496
      %v3498 = vand.u32 %v2113, 4294901760
      %3499 = vmatmul.f32.gmra.mxu0 %v3498
      %v3500 = vpop.f32.mrf.mxu0
      %v3501 = vadd.f32 %v3444, %v3500
      %v3502 = vand.u32 %v2116, 4294901760
      %3503 = vmatmul.f32.gmra.mxu0 %v3502
      %v3504 = vpop.f32.mrf.mxu0
      %v3505 = vadd.f32 %v3448, %v3504
      %v3506 = vand.u32 %v2119, 4294901760
      %3507 = vmatmul.f32.gmra.mxu0 %v3506
      %v3508 = vpop.f32.mrf.mxu0
      %v3509 = vadd.f32 %v3452, %v3508
      %v3510 = vand.u32 %v2122, 4294901760
      %3511 = vmatmul.f32.gmra.mxu0 %v3510
      %v3512 = vpop.f32.mrf.mxu0
      %v3513 = vadd.f32 %v3456, %v3512
      %v3514 = vand.u32 %v2125, 4294901760
      %3515 = vmatmul.f32.gmra.mxu0 %v3514
      %v3516 = vpop.f32.mrf.mxu0
      %v3517 = vadd.f32 %v3460, %v3516
      %v3518 = vand.u32 %v2128, 4294901760
      %3519 = vmatmul.f32.gmra.mxu0 %v3518
      %v3520 = vpop.f32.mrf.mxu0
      %v3521 = vadd.f32 %v3464, %v3520
      %v3522 = vand.u32 %v2131, 4294901760
      %3523 = vmatmul.f32.gmra.mxu0 %v3522
      %v3524 = vpop.f32.mrf.mxu0
      %v3525 = vadd.f32 %v3468, %v3524
      %v3526 = vand.u32 %v2134, 4294901760
      %3527 = vmatmul.f32.gmra.mxu0 %v3526
      %v3528 = vpop.f32.mrf.mxu0
      %v3529 = vadd.f32 %v3472, %v3528
      %3530 = vdwg.mxu0
      %v3531 = vsub.f32 %v3501, %v2111
      %v3532 = vsub.f32 %v3505, %v2111
      %v3533 = vsub.f32 %v3509, %v2111
      %v3534 = vsub.f32 %v3513, %v2111
      %v3535 = vsub.f32 %v3517, %v2111
      %v3536 = vsub.f32 %v3521, %v2111
      %v3537 = vsub.f32 %v3525, %v2111
      %v3538 = vsub.f32 %v3529, %v2111
      %s3539 = scalar_lea.vmem %s205, 128
      %3540 = vst.msk [vmem:[%s3539] sm:$0xff] %vm272, %v3531
      %3541 = vst.msk [vmem:[%s3539 + $0x8] sm:$0xff] %vm272, %v3532
      %3542 = vst.msk [vmem:[%s3539 + $0x10] sm:$0xff] %vm272, %v3533
      %3543 = vst.msk [vmem:[%s3539 + $0x18] sm:$0xff] %vm272, %v3534
      %3544 = vst.msk [vmem:[%s3539 + $0x20] sm:$0xff] %vm272, %v3535
      %3545 = vst.msk [vmem:[%s3539 + $0x28] sm:$0xff] %vm272, %v3536
      %3546 = vst.msk [vmem:[%s3539 + $0x30] sm:$0xff] %vm272, %v3537
      %3547 = vst.msk [vmem:[%s3539 + $0x38] sm:$0xff] %vm272, %v3538
      %3548 = vmatpush.msra.mxu0 0.0
      %3549 = vmatpush.msra.mxu0 0.0
      %3550 = vmatpush.msra.mxu0 0.0
      %3551 = vmatpush.msra.mxu0 0.0
      %3552 = vmatpush.msra.mxu0 0.0
      %3553 = vmatpush.msra.mxu0 0.0
      %3554 = vmatpush.msra.mxu0 0.0
      %3555 = vmatpush.msra.mxu0 0.0
      %v3556 = vand.u32 %v2045, 4294901760
      %3557 = vmatpush.msra.mxu0 %v3556
      %v3558 = vand.u32 %v2041, 4294901760
      %3559 = vmatpush.msra.mxu0 %v3558
      %v3560 = vand.u32 %v2037, 4294901760
      %3561 = vmatpush.msra.mxu0 %v3560
      %v3562 = vand.u32 %v2033, 4294901760
      %3563 = vmatpush.msra.mxu0 %v3562
      %v3564 = vand.u32 %v2029, 4294901760
      %3565 = vmatpush.msra.mxu0 %v3564
      %v3566 = vand.u32 %v2025, 4294901760
      %3567 = vmatpush.msra.mxu0 %v3566
      %v3568 = vand.u32 %v2021, 4294901760
      %3569 = vmatpush.msra.mxu0 %v3568
      %v3570 = vand.u32 %v2017, 4294901760
      %3571 = vmatpush.msra.mxu0 %v3570
      %v3572 = vand.u32 %v2113, 4294901760
      %v3573 = vsub.f32 %v2113, %v3572
      %v3574 = vand.u32 %v3573, 4294901760
      %v3575 = vsub.f32 %v3573, %v3574
      %v3576 = vand.u32 %v3575, 4294901760
      %3577 = vmatmul.f32.gmra.mxu0 %v3576
      %v3578 = vpop.f32.mrf.mxu0
      %v3579 = vadd.f32 %v2111, %v3578
      %v3580 = vand.u32 %v2116, 4294901760
      %v3581 = vsub.f32 %v2116, %v3580
      %v3582 = vand.u32 %v3581, 4294901760
      %v3583 = vsub.f32 %v3581, %v3582
      %v3584 = vand.u32 %v3583, 4294901760
      %3585 = vmatmul.f32.gmra.mxu0 %v3584
      %v3586 = vpop.f32.mrf.mxu0
      %v3587 = vadd.f32 %v2111, %v3586
      %v3588 = vand.u32 %v2119, 4294901760
      %v3589 = vsub.f32 %v2119, %v3588
      %v3590 = vand.u32 %v3589, 4294901760
      %v3591 = vsub.f32 %v3589, %v3590
      %v3592 = vand.u32 %v3591, 4294901760
      %3593 = vmatmul.f32.gmra.mxu0 %v3592
      %v3594 = vpop.f32.mrf.mxu0
      %v3595 = vadd.f32 %v2111, %v3594
      %v3596 = vand.u32 %v2122, 4294901760
      %v3597 = vsub.f32 %v2122, %v3596
      %v3598 = vand.u32 %v3597, 4294901760
      %v3599 = vsub.f32 %v3597, %v3598
      %v3600 = vand.u32 %v3599, 4294901760
      %3601 = vmatmul.f32.gmra.mxu0 %v3600
      %v3602 = vpop.f32.mrf.mxu0
      %v3603 = vadd.f32 %v2111, %v3602
      %v3604 = vand.u32 %v2125, 4294901760
      %v3605 = vsub.f32 %v2125, %v3604
      %v3606 = vand.u32 %v3605, 4294901760
      %v3607 = vsub.f32 %v3605, %v3606
      %v3608 = vand.u32 %v3607, 4294901760
      %3609 = vmatmul.f32.gmra.mxu0 %v3608
      %v3610 = vpop.f32.mrf.mxu0
      %v3611 = vadd.f32 %v2111, %v3610
      %v3612 = vand.u32 %v2128, 4294901760
      %v3613 = vsub.f32 %v2128, %v3612
      %v3614 = vand.u32 %v3613, 4294901760
      %v3615 = vsub.f32 %v3613, %v3614
      %v3616 = vand.u32 %v3615, 4294901760
      %3617 = vmatmul.f32.gmra.mxu0 %v3616
      %v3618 = vpop.f32.mrf.mxu0
      %v3619 = vadd.f32 %v2111, %v3618
      %v3620 = vand.u32 %v2131, 4294901760
      %v3621 = vsub.f32 %v2131, %v3620
      %v3622 = vand.u32 %v3621, 4294901760
      %v3623 = vsub.f32 %v3621, %v3622
      %v3624 = vand.u32 %v3623, 4294901760
      %3625 = vmatmul.f32.gmra.mxu0 %v3624
      %v3626 = vpop.f32.mrf.mxu0
      %v3627 = vadd.f32 %v2111, %v3626
      %v3628 = vand.u32 %v2134, 4294901760
      %v3629 = vsub.f32 %v2134, %v3628
      %v3630 = vand.u32 %v3629, 4294901760
      %v3631 = vsub.f32 %v3629, %v3630
      %v3632 = vand.u32 %v3631, 4294901760
      %3633 = vmatmul.f32.gmra.mxu0 %v3632
      %v3634 = vpop.f32.mrf.mxu0
      %v3635 = vadd.f32 %v2111, %v3634
      %3636 = vdwg.mxu0
      %3637 = vmatpush.msra.mxu0 0.0
      %3638 = vmatpush.msra.mxu0 0.0
      %3639 = vmatpush.msra.mxu0 0.0
      %3640 = vmatpush.msra.mxu0 0.0
      %3641 = vmatpush.msra.mxu0 0.0
      %3642 = vmatpush.msra.mxu0 0.0
      %3643 = vmatpush.msra.mxu0 0.0
      %3644 = vmatpush.msra.mxu0 0.0
      %v3645 = vand.u32 %v2045, 4294901760
      %v3646 = vsub.f32 %v2045, %v3645
      %v3647 = vand.u32 %v3646, 4294901760
      %v3648 = vsub.f32 %v3646, %v3647
      %v3649 = vand.u32 %v3648, 4294901760
      %3650 = vmatpush.msra.mxu0 %v3649
      %v3651 = vand.u32 %v2041, 4294901760
      %v3652 = vsub.f32 %v2041, %v3651
      %v3653 = vand.u32 %v3652, 4294901760
      %v3654 = vsub.f32 %v3652, %v3653
      %v3655 = vand.u32 %v3654, 4294901760
      %3656 = vmatpush.msra.mxu0 %v3655
      %v3657 = vand.u32 %v2037, 4294901760
      %v3658 = vsub.f32 %v2037, %v3657
      %v3659 = vand.u32 %v3658, 4294901760
      %v3660 = vsub.f32 %v3658, %v3659
      %v3661 = vand.u32 %v3660, 4294901760
      %3662 = vmatpush.msra.mxu0 %v3661
      %v3663 = vand.u32 %v2033, 4294901760
      %v3664 = vsub.f32 %v2033, %v3663
      %v3665 = vand.u32 %v3664, 4294901760
      %v3666 = vsub.f32 %v3664, %v3665
      %v3667 = vand.u32 %v3666, 4294901760
      %3668 = vmatpush.msra.mxu0 %v3667
      %v3669 = vand.u32 %v2029, 4294901760
      %v3670 = vsub.f32 %v2029, %v3669
      %v3671 = vand.u32 %v3670, 4294901760
      %v3672 = vsub.f32 %v3670, %v3671
      %v3673 = vand.u32 %v3672, 4294901760
      %3674 = vmatpush.msra.mxu0 %v3673
      %v3675 = vand.u32 %v2025, 4294901760
      %v3676 = vsub.f32 %v2025, %v3675
      %v3677 = vand.u32 %v3676, 4294901760
      %v3678 = vsub.f32 %v3676, %v3677
      %v3679 = vand.u32 %v3678, 4294901760
      %3680 = vmatpush.msra.mxu0 %v3679
      %v3681 = vand.u32 %v2021, 4294901760
      %v3682 = vsub.f32 %v2021, %v3681
      %v3683 = vand.u32 %v3682, 4294901760
      %v3684 = vsub.f32 %v3682, %v3683
      %v3685 = vand.u32 %v3684, 4294901760
      %3686 = vmatpush.msra.mxu0 %v3685
      %v3687 = vand.u32 %v2017, 4294901760
      %v3688 = vsub.f32 %v2017, %v3687
      %v3689 = vand.u32 %v3688, 4294901760
      %v3690 = vsub.f32 %v3688, %v3689
      %v3691 = vand.u32 %v3690, 4294901760
      %3692 = vmatpush.msra.mxu0 %v3691
      %v3693 = vand.u32 %v2113, 4294901760
      %3694 = vmatmul.f32.gmra.mxu0 %v3693
      %v3695 = vpop.f32.mrf.mxu0
      %v3696 = vadd.f32 %v3579, %v3695
      %v3697 = vand.u32 %v2116, 4294901760
      %3698 = vmatmul.f32.gmra.mxu0 %v3697
      %v3699 = vpop.f32.mrf.mxu0
      %v3700 = vadd.f32 %v3587, %v3699
      %v3701 = vand.u32 %v2119, 4294901760
      %3702 = vmatmul.f32.gmra.mxu0 %v3701
      %v3703 = vpop.f32.mrf.mxu0
      %v3704 = vadd.f32 %v3595, %v3703
      %v3705 = vand.u32 %v2122, 4294901760
      %3706 = vmatmul.f32.gmra.mxu0 %v3705
      %v3707 = vpop.f32.mrf.mxu0
      %v3708 = vadd.f32 %v3603, %v3707
      %v3709 = vand.u32 %v2125, 4294901760
      %3710 = vmatmul.f32.gmra.mxu0 %v3709
      %v3711 = vpop.f32.mrf.mxu0
      %v3712 = vadd.f32 %v3611, %v3711
      %v3713 = vand.u32 %v2128, 4294901760
      %3714 = vmatmul.f32.gmra.mxu0 %v3713
      %v3715 = vpop.f32.mrf.mxu0
      %v3716 = vadd.f32 %v3619, %v3715
      %v3717 = vand.u32 %v2131, 4294901760
      %3718 = vmatmul.f32.gmra.mxu0 %v3717
      %v3719 = vpop.f32.mrf.mxu0
      %v3720 = vadd.f32 %v3627, %v3719
      %v3721 = vand.u32 %v2134, 4294901760
      %3722 = vmatmul.f32.gmra.mxu0 %v3721
      %v3723 = vpop.f32.mrf.mxu0
      %v3724 = vadd.f32 %v3635, %v3723
      %3725 = vdwg.mxu0
      %3726 = vmatpush.msra.mxu0 0.0
      %3727 = vmatpush.msra.mxu0 0.0
      %3728 = vmatpush.msra.mxu0 0.0
      %3729 = vmatpush.msra.mxu0 0.0
      %3730 = vmatpush.msra.mxu0 0.0
      %3731 = vmatpush.msra.mxu0 0.0
      %3732 = vmatpush.msra.mxu0 0.0
      %3733 = vmatpush.msra.mxu0 0.0
      %v3734 = vand.u32 %v2045, 4294901760
      %v3735 = vsub.f32 %v2045, %v3734
      %3736 = vmatpush.msra.mxu0 %v3735
      %v3737 = vand.u32 %v2041, 4294901760
      %v3738 = vsub.f32 %v2041, %v3737
      %3739 = vmatpush.msra.mxu0 %v3738
      %v3740 = vand.u32 %v2037, 4294901760
      %v3741 = vsub.f32 %v2037, %v3740
      %3742 = vmatpush.msra.mxu0 %v3741
      %v3743 = vand.u32 %v2033, 4294901760
      %v3744 = vsub.f32 %v2033, %v3743
      %3745 = vmatpush.msra.mxu0 %v3744
      %v3746 = vand.u32 %v2029, 4294901760
      %v3747 = vsub.f32 %v2029, %v3746
      %3748 = vmatpush.msra.mxu0 %v3747
      %v3749 = vand.u32 %v2025, 4294901760
      %v3750 = vsub.f32 %v2025, %v3749
      %3751 = vmatpush.msra.mxu0 %v3750
      %v3752 = vand.u32 %v2021, 4294901760
      %v3753 = vsub.f32 %v2021, %v3752
      %3754 = vmatpush.msra.mxu0 %v3753
      %v3755 = vand.u32 %v2017, 4294901760
      %v3756 = vsub.f32 %v2017, %v3755
      %3757 = vmatpush.msra.mxu0 %v3756
      %v3758 = vand.u32 %v2113, 4294901760
      %v3759 = vsub.f32 %v2113, %v3758
      %3760 = vmatmul.f32.gmra.mxu0 %v3759
      %v3761 = vpop.f32.mrf.mxu0
      %v3762 = vadd.f32 %v3696, %v3761
      %v3763 = vand.u32 %v2116, 4294901760
      %v3764 = vsub.f32 %v2116, %v3763
      %3765 = vmatmul.f32.gmra.mxu0 %v3764
      %v3766 = vpop.f32.mrf.mxu0
      %v3767 = vadd.f32 %v3700, %v3766
      %v3768 = vand.u32 %v2119, 4294901760
      %v3769 = vsub.f32 %v2119, %v3768
      %3770 = vmatmul.f32.gmra.mxu0 %v3769
      %v3771 = vpop.f32.mrf.mxu0
      %v3772 = vadd.f32 %v3704, %v3771
      %v3773 = vand.u32 %v2122, 4294901760
      %v3774 = vsub.f32 %v2122, %v3773
      %3775 = vmatmul.f32.gmra.mxu0 %v3774
      %v3776 = vpop.f32.mrf.mxu0
      %v3777 = vadd.f32 %v3708, %v3776
      %v3778 = vand.u32 %v2125, 4294901760
      %v3779 = vsub.f32 %v2125, %v3778
      %3780 = vmatmul.f32.gmra.mxu0 %v3779
      %v3781 = vpop.f32.mrf.mxu0
      %v3782 = vadd.f32 %v3712, %v3781
      %v3783 = vand.u32 %v2128, 4294901760
      %v3784 = vsub.f32 %v2128, %v3783
      %3785 = vmatmul.f32.gmra.mxu0 %v3784
      %v3786 = vpop.f32.mrf.mxu0
      %v3787 = vadd.f32 %v3716, %v3786
      %v3788 = vand.u32 %v2131, 4294901760
      %v3789 = vsub.f32 %v2131, %v3788
      %3790 = vmatmul.f32.gmra.mxu0 %v3789
      %v3791 = vpop.f32.mrf.mxu0
      %v3792 = vadd.f32 %v3720, %v3791
      %v3793 = vand.u32 %v2134, 4294901760
      %v3794 = vsub.f32 %v2134, %v3793
      %3795 = vmatmul.f32.gmra.mxu0 %v3794
      %v3796 = vpop.f32.mrf.mxu0
      %v3797 = vadd.f32 %v3724, %v3796
      %3798 = vdwg.mxu0
      %3799 = vmatpush.msra.mxu0 0.0
      %3800 = vmatpush.msra.mxu0 0.0
      %3801 = vmatpush.msra.mxu0 0.0
      %3802 = vmatpush.msra.mxu0 0.0
      %3803 = vmatpush.msra.mxu0 0.0
      %3804 = vmatpush.msra.mxu0 0.0
      %3805 = vmatpush.msra.mxu0 0.0
      %3806 = vmatpush.msra.mxu0 0.0
      %v3807 = vand.u32 %v2045, 4294901760
      %3808 = vmatpush.msra.mxu0 %v3807
      %v3809 = vand.u32 %v2041, 4294901760
      %3810 = vmatpush.msra.mxu0 %v3809
      %v3811 = vand.u32 %v2037, 4294901760
      %3812 = vmatpush.msra.mxu0 %v3811
      %v3813 = vand.u32 %v2033, 4294901760
      %3814 = vmatpush.msra.mxu0 %v3813
      %v3815 = vand.u32 %v2029, 4294901760
      %3816 = vmatpush.msra.mxu0 %v3815
      %v3817 = vand.u32 %v2025, 4294901760
      %3818 = vmatpush.msra.mxu0 %v3817
      %v3819 = vand.u32 %v2021, 4294901760
      %3820 = vmatpush.msra.mxu0 %v3819
      %v3821 = vand.u32 %v2017, 4294901760
      %3822 = vmatpush.msra.mxu0 %v3821
      %v3823 = vand.u32 %v2113, 4294901760
      %v3824 = vsub.f32 %v2113, %v3823
      %v3825 = vand.u32 %v3824, 4294901760
      %3826 = vmatmul.f32.gmra.mxu0 %v3825
      %v3827 = vpop.f32.mrf.mxu0
      %v3828 = vadd.f32 %v3762, %v3827
      %v3829 = vand.u32 %v2116, 4294901760
      %v3830 = vsub.f32 %v2116, %v3829
      %v3831 = vand.u32 %v3830, 4294901760
      %3832 = vmatmul.f32.gmra.mxu0 %v3831
      %v3833 = vpop.f32.mrf.mxu0
      %v3834 = vadd.f32 %v3767, %v3833
      %v3835 = vand.u32 %v2119, 4294901760
      %v3836 = vsub.f32 %v2119, %v3835
      %v3837 = vand.u32 %v3836, 4294901760
      %3838 = vmatmul.f32.gmra.mxu0 %v3837
      %v3839 = vpop.f32.mrf.mxu0
      %v3840 = vadd.f32 %v3772, %v3839
      %v3841 = vand.u32 %v2122, 4294901760
      %v3842 = vsub.f32 %v2122, %v3841
      %v3843 = vand.u32 %v3842, 4294901760
      %3844 = vmatmul.f32.gmra.mxu0 %v3843
      %v3845 = vpop.f32.mrf.mxu0
      %v3846 = vadd.f32 %v3777, %v3845
      %v3847 = vand.u32 %v2125, 4294901760
      %v3848 = vsub.f32 %v2125, %v3847
      %v3849 = vand.u32 %v3848, 4294901760
      %3850 = vmatmul.f32.gmra.mxu0 %v3849
      %v3851 = vpop.f32.mrf.mxu0
      %v3852 = vadd.f32 %v3782, %v3851
      %v3853 = vand.u32 %v2128, 4294901760
      %v3854 = vsub.f32 %v2128, %v3853
      %v3855 = vand.u32 %v3854, 4294901760
      %3856 = vmatmul.f32.gmra.mxu0 %v3855
      %v3857 = vpop.f32.mrf.mxu0
      %v3858 = vadd.f32 %v3787, %v3857
      %v3859 = vand.u32 %v2131, 4294901760
      %v3860 = vsub.f32 %v2131, %v3859
      %v3861 = vand.u32 %v3860, 4294901760
      %3862 = vmatmul.f32.gmra.mxu0 %v3861
      %v3863 = vpop.f32.mrf.mxu0
      %v3864 = vadd.f32 %v3792, %v3863
      %v3865 = vand.u32 %v2134, 4294901760
      %v3866 = vsub.f32 %v2134, %v3865
      %v3867 = vand.u32 %v3866, 4294901760
      %3868 = vmatmul.f32.gmra.mxu0 %v3867
      %v3869 = vpop.f32.mrf.mxu0
      %v3870 = vadd.f32 %v3797, %v3869
      %3871 = vdwg.mxu0
      %3872 = vmatpush.msra.mxu0 0.0
      %3873 = vmatpush.msra.mxu0 0.0
      %3874 = vmatpush.msra.mxu0 0.0
      %3875 = vmatpush.msra.mxu0 0.0
      %3876 = vmatpush.msra.mxu0 0.0
      %3877 = vmatpush.msra.mxu0 0.0
      %3878 = vmatpush.msra.mxu0 0.0
      %3879 = vmatpush.msra.mxu0 0.0
      %v3880 = vand.u32 %v2045, 4294901760
      %v3881 = vsub.f32 %v2045, %v3880
      %v3882 = vand.u32 %v3881, 4294901760
      %3883 = vmatpush.msra.mxu0 %v3882
      %v3884 = vand.u32 %v2041, 4294901760
      %v3885 = vsub.f32 %v2041, %v3884
      %v3886 = vand.u32 %v3885, 4294901760
      %3887 = vmatpush.msra.mxu0 %v3886
      %v3888 = vand.u32 %v2037, 4294901760
      %v3889 = vsub.f32 %v2037, %v3888
      %v3890 = vand.u32 %v3889, 4294901760
      %3891 = vmatpush.msra.mxu0 %v3890
      %v3892 = vand.u32 %v2033, 4294901760
      %v3893 = vsub.f32 %v2033, %v3892
      %v3894 = vand.u32 %v3893, 4294901760
      %3895 = vmatpush.msra.mxu0 %v3894
      %v3896 = vand.u32 %v2029, 4294901760
      %v3897 = vsub.f32 %v2029, %v3896
      %v3898 = vand.u32 %v3897, 4294901760
      %3899 = vmatpush.msra.mxu0 %v3898
      %v3900 = vand.u32 %v2025, 4294901760
      %v3901 = vsub.f32 %v2025, %v3900
      %v3902 = vand.u32 %v3901, 4294901760
      %3903 = vmatpush.msra.mxu0 %v3902
      %v3904 = vand.u32 %v2021, 4294901760
      %v3905 = vsub.f32 %v2021, %v3904
      %v3906 = vand.u32 %v3905, 4294901760
      %3907 = vmatpush.msra.mxu0 %v3906
      %v3908 = vand.u32 %v2017, 4294901760
      %v3909 = vsub.f32 %v2017, %v3908
      %v3910 = vand.u32 %v3909, 4294901760
      %3911 = vmatpush.msra.mxu0 %v3910
      %v3912 = vand.u32 %v2113, 4294901760
      %3913 = vmatmul.f32.gmra.mxu0 %v3912
      %v3914 = vpop.f32.mrf.mxu0
      %v3915 = vadd.f32 %v3828, %v3914
      %v3916 = vand.u32 %v2116, 4294901760
      %3917 = vmatmul.f32.gmra.mxu0 %v3916
      %v3918 = vpop.f32.mrf.mxu0
      %v3919 = vadd.f32 %v3834, %v3918
      %v3920 = vand.u32 %v2119, 4294901760
      %3921 = vmatmul.f32.gmra.mxu0 %v3920
      %v3922 = vpop.f32.mrf.mxu0
      %v3923 = vadd.f32 %v3840, %v3922
      %v3924 = vand.u32 %v2122, 4294901760
      %3925 = vmatmul.f32.gmra.mxu0 %v3924
      %v3926 = vpop.f32.mrf.mxu0
      %v3927 = vadd.f32 %v3846, %v3926
      %v3928 = vand.u32 %v2125, 4294901760
      %3929 = vmatmul.f32.gmra.mxu0 %v3928
      %v3930 = vpop.f32.mrf.mxu0
      %v3931 = vadd.f32 %v3852, %v3930
      %v3932 = vand.u32 %v2128, 4294901760
      %3933 = vmatmul.f32.gmra.mxu0 %v3932
      %v3934 = vpop.f32.mrf.mxu0
      %v3935 = vadd.f32 %v3858, %v3934
      %v3936 = vand.u32 %v2131, 4294901760
      %3937 = vmatmul.f32.gmra.mxu0 %v3936
      %v3938 = vpop.f32.mrf.mxu0
      %v3939 = vadd.f32 %v3864, %v3938
      %v3940 = vand.u32 %v2134, 4294901760
      %3941 = vmatmul.f32.gmra.mxu0 %v3940
      %v3942 = vpop.f32.mrf.mxu0
      %v3943 = vadd.f32 %v3870, %v3942
      %3944 = vdwg.mxu0
      %3945 = vmatpush.msra.mxu0 0.0
      %3946 = vmatpush.msra.mxu0 0.0
      %3947 = vmatpush.msra.mxu0 0.0
      %3948 = vmatpush.msra.mxu0 0.0
      %3949 = vmatpush.msra.mxu0 0.0
      %3950 = vmatpush.msra.mxu0 0.0
      %3951 = vmatpush.msra.mxu0 0.0
      %3952 = vmatpush.msra.mxu0 0.0
      %v3953 = vand.u32 %v2045, 4294901760
      %3954 = vmatpush.msra.mxu0 %v3953
      %v3955 = vand.u32 %v2041, 4294901760
      %3956 = vmatpush.msra.mxu0 %v3955
      %v3957 = vand.u32 %v2037, 4294901760
      %3958 = vmatpush.msra.mxu0 %v3957
      %v3959 = vand.u32 %v2033, 4294901760
      %3960 = vmatpush.msra.mxu0 %v3959
      %v3961 = vand.u32 %v2029, 4294901760
      %3962 = vmatpush.msra.mxu0 %v3961
      %v3963 = vand.u32 %v2025, 4294901760
      %3964 = vmatpush.msra.mxu0 %v3963
      %v3965 = vand.u32 %v2021, 4294901760
      %3966 = vmatpush.msra.mxu0 %v3965
      %v3967 = vand.u32 %v2017, 4294901760
      %3968 = vmatpush.msra.mxu0 %v3967
      %v3969 = vand.u32 %v2113, 4294901760
      %3970 = vmatmul.f32.gmra.mxu0 %v3969
      %v3971 = vpop.f32.mrf.mxu0
      %v3972 = vadd.f32 %v3915, %v3971
      %v3973 = vand.u32 %v2116, 4294901760
      %3974 = vmatmul.f32.gmra.mxu0 %v3973
      %v3975 = vpop.f32.mrf.mxu0
      %v3976 = vadd.f32 %v3919, %v3975
      %v3977 = vand.u32 %v2119, 4294901760
      %3978 = vmatmul.f32.gmra.mxu0 %v3977
      %v3979 = vpop.f32.mrf.mxu0
      %v3980 = vadd.f32 %v3923, %v3979
      %v3981 = vand.u32 %v2122, 4294901760
      %3982 = vmatmul.f32.gmra.mxu0 %v3981
      %v3983 = vpop.f32.mrf.mxu0
      %v3984 = vadd.f32 %v3927, %v3983
      %v3985 = vand.u32 %v2125, 4294901760
      %3986 = vmatmul.f32.gmra.mxu0 %v3985
      %v3987 = vpop.f32.mrf.mxu0
      %v3988 = vadd.f32 %v3931, %v3987
      %v3989 = vand.u32 %v2128, 4294901760
      %3990 = vmatmul.f32.gmra.mxu0 %v3989
      %v3991 = vpop.f32.mrf.mxu0
      %v3992 = vadd.f32 %v3935, %v3991
      %v3993 = vand.u32 %v2131, 4294901760
      %3994 = vmatmul.f32.gmra.mxu0 %v3993
      %v3995 = vpop.f32.mrf.mxu0
      %v3996 = vadd.f32 %v3939, %v3995
      %v3997 = vand.u32 %v2134, 4294901760
      %3998 = vmatmul.f32.gmra.mxu0 %v3997
      %v3999 = vpop.f32.mrf.mxu0
      %v4000 = vadd.f32 %v3943, %v3999
      %4001 = vdwg.mxu0
      %v4002 = vsub.f32 %v3972, %v2111
      %v4003 = vsub.f32 %v3976, %v2111
      %v4004 = vsub.f32 %v3980, %v2111
      %v4005 = vsub.f32 %v3984, %v2111
      %v4006 = vsub.f32 %v3988, %v2111
      %v4007 = vsub.f32 %v3992, %v2111
      %v4008 = vsub.f32 %v3996, %v2111
      %v4009 = vsub.f32 %v4000, %v2111
      %s4010 = scalar_lea.vmem %s205, 192
      %4011 = vst.msk [vmem:[%s4010] sm:$0xff] %vm272, %v4002
      %4012 = vst.msk [vmem:[%s4010 + $0x8] sm:$0xff] %vm272, %v4003
      %4013 = vst.msk [vmem:[%s4010 + $0x10] sm:$0xff] %vm272, %v4004
      %4014 = vst.msk [vmem:[%s4010 + $0x18] sm:$0xff] %vm272, %v4005
      %4015 = vst.msk [vmem:[%s4010 + $0x20] sm:$0xff] %vm272, %v4006
      %4016 = vst.msk [vmem:[%s4010 + $0x28] sm:$0xff] %vm272, %v4007
      %4017 = vst.msk [vmem:[%s4010 + $0x30] sm:$0xff] %vm272, %v4008
      %4018 = vst.msk [vmem:[%s4010 + $0x38] sm:$0xff] %vm272, %v4009
      %4019 = vmatpush.msra.mxu0 0.0
      %4020 = vmatpush.msra.mxu0 0.0
      %4021 = vmatpush.msra.mxu0 0.0
      %4022 = vmatpush.msra.mxu0 0.0
      %4023 = vmatpush.msra.mxu0 0.0
      %4024 = vmatpush.msra.mxu0 0.0
      %4025 = vmatpush.msra.mxu0 0.0
      %4026 = vmatpush.msra.mxu0 0.0
      %v4027 = vand.u32 %v2077, 4294901760
      %4028 = vmatpush.msra.mxu0 %v4027
      %v4029 = vand.u32 %v2073, 4294901760
      %4030 = vmatpush.msra.mxu0 %v4029
      %v4031 = vand.u32 %v2069, 4294901760
      %4032 = vmatpush.msra.mxu0 %v4031
      %v4033 = vand.u32 %v2065, 4294901760
      %4034 = vmatpush.msra.mxu0 %v4033
      %v4035 = vand.u32 %v2061, 4294901760
      %4036 = vmatpush.msra.mxu0 %v4035
      %v4037 = vand.u32 %v2057, 4294901760
      %4038 = vmatpush.msra.mxu0 %v4037
      %v4039 = vand.u32 %v2053, 4294901760
      %4040 = vmatpush.msra.mxu0 %v4039
      %v4041 = vand.u32 %v2049, 4294901760
      %4042 = vmatpush.msra.mxu0 %v4041
      %v4043 = vand.u32 %v2113, 4294901760
      %v4044 = vsub.f32 %v2113, %v4043
      %v4045 = vand.u32 %v4044, 4294901760
      %v4046 = vsub.f32 %v4044, %v4045
      %v4047 = vand.u32 %v4046, 4294901760
      %4048 = vmatmul.f32.gmra.mxu0 %v4047
      %v4049 = vpop.f32.mrf.mxu0
      %v4050 = vadd.f32 %v2111, %v4049
      %v4051 = vand.u32 %v2116, 4294901760
      %v4052 = vsub.f32 %v2116, %v4051
      %v4053 = vand.u32 %v4052, 4294901760
      %v4054 = vsub.f32 %v4052, %v4053
      %v4055 = vand.u32 %v4054, 4294901760
      %4056 = vmatmul.f32.gmra.mxu0 %v4055
      %v4057 = vpop.f32.mrf.mxu0
      %v4058 = vadd.f32 %v2111, %v4057
      %v4059 = vand.u32 %v2119, 4294901760
      %v4060 = vsub.f32 %v2119, %v4059
      %v4061 = vand.u32 %v4060, 4294901760
      %v4062 = vsub.f32 %v4060, %v4061
      %v4063 = vand.u32 %v4062, 4294901760
      %4064 = vmatmul.f32.gmra.mxu0 %v4063
      %v4065 = vpop.f32.mrf.mxu0
      %v4066 = vadd.f32 %v2111, %v4065
      %v4067 = vand.u32 %v2122, 4294901760
      %v4068 = vsub.f32 %v2122, %v4067
      %v4069 = vand.u32 %v4068, 4294901760
      %v4070 = vsub.f32 %v4068, %v4069
      %v4071 = vand.u32 %v4070, 4294901760
      %4072 = vmatmul.f32.gmra.mxu0 %v4071
      %v4073 = vpop.f32.mrf.mxu0
      %v4074 = vadd.f32 %v2111, %v4073
      %v4075 = vand.u32 %v2125, 4294901760
      %v4076 = vsub.f32 %v2125, %v4075
      %v4077 = vand.u32 %v4076, 4294901760
      %v4078 = vsub.f32 %v4076, %v4077
      %v4079 = vand.u32 %v4078, 4294901760
      %4080 = vmatmul.f32.gmra.mxu0 %v4079
      %v4081 = vpop.f32.mrf.mxu0
      %v4082 = vadd.f32 %v2111, %v4081
      %v4083 = vand.u32 %v2128, 4294901760
      %v4084 = vsub.f32 %v2128, %v4083
      %v4085 = vand.u32 %v4084, 4294901760
      %v4086 = vsub.f32 %v4084, %v4085
      %v4087 = vand.u32 %v4086, 4294901760
      %4088 = vmatmul.f32.gmra.mxu0 %v4087
      %v4089 = vpop.f32.mrf.mxu0
      %v4090 = vadd.f32 %v2111, %v4089
      %v4091 = vand.u32 %v2131, 4294901760
      %v4092 = vsub.f32 %v2131, %v4091
      %v4093 = vand.u32 %v4092, 4294901760
      %v4094 = vsub.f32 %v4092, %v4093
      %v4095 = vand.u32 %v4094, 4294901760
      %4096 = vmatmul.f32.gmra.mxu0 %v4095
      %v4097 = vpop.f32.mrf.mxu0
      %v4098 = vadd.f32 %v2111, %v4097
      %v4099 = vand.u32 %v2134, 4294901760
      %v4100 = vsub.f32 %v2134, %v4099
      %v4101 = vand.u32 %v4100, 4294901760
      %v4102 = vsub.f32 %v4100, %v4101
      %v4103 = vand.u32 %v4102, 4294901760
      %4104 = vmatmul.f32.gmra.mxu0 %v4103
      %v4105 = vpop.f32.mrf.mxu0
      %v4106 = vadd.f32 %v2111, %v4105
      %4107 = vdwg.mxu0
      %4108 = vmatpush.msra.mxu0 0.0
      %4109 = vmatpush.msra.mxu0 0.0
      %4110 = vmatpush.msra.mxu0 0.0
      %4111 = vmatpush.msra.mxu0 0.0
      %4112 = vmatpush.msra.mxu0 0.0
      %4113 = vmatpush.msra.mxu0 0.0
      %4114 = vmatpush.msra.mxu0 0.0
      %4115 = vmatpush.msra.mxu0 0.0
      %v4116 = vand.u32 %v2077, 4294901760
      %v4117 = vsub.f32 %v2077, %v4116
      %v4118 = vand.u32 %v4117, 4294901760
      %v4119 = vsub.f32 %v4117, %v4118
      %v4120 = vand.u32 %v4119, 4294901760
      %4121 = vmatpush.msra.mxu0 %v4120
      %v4122 = vand.u32 %v2073, 4294901760
      %v4123 = vsub.f32 %v2073, %v4122
      %v4124 = vand.u32 %v4123, 4294901760
      %v4125 = vsub.f32 %v4123, %v4124
      %v4126 = vand.u32 %v4125, 4294901760
      %4127 = vmatpush.msra.mxu0 %v4126
      %v4128 = vand.u32 %v2069, 4294901760
      %v4129 = vsub.f32 %v2069, %v4128
      %v4130 = vand.u32 %v4129, 4294901760
      %v4131 = vsub.f32 %v4129, %v4130
      %v4132 = vand.u32 %v4131, 4294901760
      %4133 = vmatpush.msra.mxu0 %v4132
      %v4134 = vand.u32 %v2065, 4294901760
      %v4135 = vsub.f32 %v2065, %v4134
      %v4136 = vand.u32 %v4135, 4294901760
      %v4137 = vsub.f32 %v4135, %v4136
      %v4138 = vand.u32 %v4137, 4294901760
      %4139 = vmatpush.msra.mxu0 %v4138
      %v4140 = vand.u32 %v2061, 4294901760
      %v4141 = vsub.f32 %v2061, %v4140
      %v4142 = vand.u32 %v4141, 4294901760
      %v4143 = vsub.f32 %v4141, %v4142
      %v4144 = vand.u32 %v4143, 4294901760
      %4145 = vmatpush.msra.mxu0 %v4144
      %v4146 = vand.u32 %v2057, 4294901760
      %v4147 = vsub.f32 %v2057, %v4146
      %v4148 = vand.u32 %v4147, 4294901760
      %v4149 = vsub.f32 %v4147, %v4148
      %v4150 = vand.u32 %v4149, 4294901760
      %4151 = vmatpush.msra.mxu0 %v4150
      %v4152 = vand.u32 %v2053, 4294901760
      %v4153 = vsub.f32 %v2053, %v4152
      %v4154 = vand.u32 %v4153, 4294901760
      %v4155 = vsub.f32 %v4153, %v4154
      %v4156 = vand.u32 %v4155, 4294901760
      %4157 = vmatpush.msra.mxu0 %v4156
      %v4158 = vand.u32 %v2049, 4294901760
      %v4159 = vsub.f32 %v2049, %v4158
      %v4160 = vand.u32 %v4159, 4294901760
      %v4161 = vsub.f32 %v4159, %v4160
      %v4162 = vand.u32 %v4161, 4294901760
      %4163 = vmatpush.msra.mxu0 %v4162
      %v4164 = vand.u32 %v2113, 4294901760
      %4165 = vmatmul.f32.gmra.mxu0 %v4164
      %v4166 = vpop.f32.mrf.mxu0
      %v4167 = vadd.f32 %v4050, %v4166
      %v4168 = vand.u32 %v2116, 4294901760
      %4169 = vmatmul.f32.gmra.mxu0 %v4168
      %v4170 = vpop.f32.mrf.mxu0
      %v4171 = vadd.f32 %v4058, %v4170
      %v4172 = vand.u32 %v2119, 4294901760
      %4173 = vmatmul.f32.gmra.mxu0 %v4172
      %v4174 = vpop.f32.mrf.mxu0
      %v4175 = vadd.f32 %v4066, %v4174
      %v4176 = vand.u32 %v2122, 4294901760
      %4177 = vmatmul.f32.gmra.mxu0 %v4176
      %v4178 = vpop.f32.mrf.mxu0
      %v4179 = vadd.f32 %v4074, %v4178
      %v4180 = vand.u32 %v2125, 4294901760
      %4181 = vmatmul.f32.gmra.mxu0 %v4180
      %v4182 = vpop.f32.mrf.mxu0
      %v4183 = vadd.f32 %v4082, %v4182
      %v4184 = vand.u32 %v2128, 4294901760
      %4185 = vmatmul.f32.gmra.mxu0 %v4184
      %v4186 = vpop.f32.mrf.mxu0
      %v4187 = vadd.f32 %v4090, %v4186
      %v4188 = vand.u32 %v2131, 4294901760
      %4189 = vmatmul.f32.gmra.mxu0 %v4188
      %v4190 = vpop.f32.mrf.mxu0
      %v4191 = vadd.f32 %v4098, %v4190
      %v4192 = vand.u32 %v2134, 4294901760
      %4193 = vmatmul.f32.gmra.mxu0 %v4192
      %v4194 = vpop.f32.mrf.mxu0
      %v4195 = vadd.f32 %v4106, %v4194
      %4196 = vdwg.mxu0
      %4197 = vmatpush.msra.mxu0 0.0
      %4198 = vmatpush.msra.mxu0 0.0
      %4199 = vmatpush.msra.mxu0 0.0
      %4200 = vmatpush.msra.mxu0 0.0
      %4201 = vmatpush.msra.mxu0 0.0
      %4202 = vmatpush.msra.mxu0 0.0
      %4203 = vmatpush.msra.mxu0 0.0
      %4204 = vmatpush.msra.mxu0 0.0
      %v4205 = vand.u32 %v2077, 4294901760
      %v4206 = vsub.f32 %v2077, %v4205
      %4207 = vmatpush.msra.mxu0 %v4206
      %v4208 = vand.u32 %v2073, 4294901760
      %v4209 = vsub.f32 %v2073, %v4208
      %4210 = vmatpush.msra.mxu0 %v4209
      %v4211 = vand.u32 %v2069, 4294901760
      %v4212 = vsub.f32 %v2069, %v4211
      %4213 = vmatpush.msra.mxu0 %v4212
      %v4214 = vand.u32 %v2065, 4294901760
      %v4215 = vsub.f32 %v2065, %v4214
      %4216 = vmatpush.msra.mxu0 %v4215
      %v4217 = vand.u32 %v2061, 4294901760
      %v4218 = vsub.f32 %v2061, %v4217
      %4219 = vmatpush.msra.mxu0 %v4218
      %v4220 = vand.u32 %v2057, 4294901760
      %v4221 = vsub.f32 %v2057, %v4220
      %4222 = vmatpush.msra.mxu0 %v4221
      %v4223 = vand.u32 %v2053, 4294901760
      %v4224 = vsub.f32 %v2053, %v4223
      %4225 = vmatpush.msra.mxu0 %v4224
      %v4226 = vand.u32 %v2049, 4294901760
      %v4227 = vsub.f32 %v2049, %v4226
      %4228 = vmatpush.msra.mxu0 %v4227
      %v4229 = vand.u32 %v2113, 4294901760
      %v4230 = vsub.f32 %v2113, %v4229
      %4231 = vmatmul.f32.gmra.mxu0 %v4230
      %v4232 = vpop.f32.mrf.mxu0
      %v4233 = vadd.f32 %v4167, %v4232
      %v4234 = vand.u32 %v2116, 4294901760
      %v4235 = vsub.f32 %v2116, %v4234
      %4236 = vmatmul.f32.gmra.mxu0 %v4235
      %v4237 = vpop.f32.mrf.mxu0
      %v4238 = vadd.f32 %v4171, %v4237
      %v4239 = vand.u32 %v2119, 4294901760
      %v4240 = vsub.f32 %v2119, %v4239
      %4241 = vmatmul.f32.gmra.mxu0 %v4240
      %v4242 = vpop.f32.mrf.mxu0
      %v4243 = vadd.f32 %v4175, %v4242
      %v4244 = vand.u32 %v2122, 4294901760
      %v4245 = vsub.f32 %v2122, %v4244
      %4246 = vmatmul.f32.gmra.mxu0 %v4245
      %v4247 = vpop.f32.mrf.mxu0
      %v4248 = vadd.f32 %v4179, %v4247
      %v4249 = vand.u32 %v2125, 4294901760
      %v4250 = vsub.f32 %v2125, %v4249
      %4251 = vmatmul.f32.gmra.mxu0 %v4250
      %v4252 = vpop.f32.mrf.mxu0
      %v4253 = vadd.f32 %v4183, %v4252
      %v4254 = vand.u32 %v2128, 4294901760
      %v4255 = vsub.f32 %v2128, %v4254
      %4256 = vmatmul.f32.gmra.mxu0 %v4255
      %v4257 = vpop.f32.mrf.mxu0
      %v4258 = vadd.f32 %v4187, %v4257
      %v4259 = vand.u32 %v2131, 4294901760
      %v4260 = vsub.f32 %v2131, %v4259
      %4261 = vmatmul.f32.gmra.mxu0 %v4260
      %v4262 = vpop.f32.mrf.mxu0
      %v4263 = vadd.f32 %v4191, %v4262
      %v4264 = vand.u32 %v2134, 4294901760
      %v4265 = vsub.f32 %v2134, %v4264
      %4266 = vmatmul.f32.gmra.mxu0 %v4265
      %v4267 = vpop.f32.mrf.mxu0
      %v4268 = vadd.f32 %v4195, %v4267
      %4269 = vdwg.mxu0
      %4270 = vmatpush.msra.mxu0 0.0
      %4271 = vmatpush.msra.mxu0 0.0
      %4272 = vmatpush.msra.mxu0 0.0
      %4273 = vmatpush.msra.mxu0 0.0
      %4274 = vmatpush.msra.mxu0 0.0
      %4275 = vmatpush.msra.mxu0 0.0
      %4276 = vmatpush.msra.mxu0 0.0
      %4277 = vmatpush.msra.mxu0 0.0
      %v4278 = vand.u32 %v2077, 4294901760
      %4279 = vmatpush.msra.mxu0 %v4278
      %v4280 = vand.u32 %v2073, 4294901760
      %4281 = vmatpush.msra.mxu0 %v4280
      %v4282 = vand.u32 %v2069, 4294901760
      %4283 = vmatpush.msra.mxu0 %v4282
      %v4284 = vand.u32 %v2065, 4294901760
      %4285 = vmatpush.msra.mxu0 %v4284
      %v4286 = vand.u32 %v2061, 4294901760
      %4287 = vmatpush.msra.mxu0 %v4286
      %v4288 = vand.u32 %v2057, 4294901760
      %4289 = vmatpush.msra.mxu0 %v4288
      %v4290 = vand.u32 %v2053, 4294901760
      %4291 = vmatpush.msra.mxu0 %v4290
      %v4292 = vand.u32 %v2049, 4294901760
      %4293 = vmatpush.msra.mxu0 %v4292
      %v4294 = vand.u32 %v2113, 4294901760
      %v4295 = vsub.f32 %v2113, %v4294
      %v4296 = vand.u32 %v4295, 4294901760
      %4297 = vmatmul.f32.gmra.mxu0 %v4296
      %v4298 = vpop.f32.mrf.mxu0
      %v4299 = vadd.f32 %v4233, %v4298
      %v4300 = vand.u32 %v2116, 4294901760
      %v4301 = vsub.f32 %v2116, %v4300
      %v4302 = vand.u32 %v4301, 4294901760
      %4303 = vmatmul.f32.gmra.mxu0 %v4302
      %v4304 = vpop.f32.mrf.mxu0
      %v4305 = vadd.f32 %v4238, %v4304
      %v4306 = vand.u32 %v2119, 4294901760
      %v4307 = vsub.f32 %v2119, %v4306
      %v4308 = vand.u32 %v4307, 4294901760
      %4309 = vmatmul.f32.gmra.mxu0 %v4308
      %v4310 = vpop.f32.mrf.mxu0
      %v4311 = vadd.f32 %v4243, %v4310
      %v4312 = vand.u32 %v2122, 4294901760
      %v4313 = vsub.f32 %v2122, %v4312
      %v4314 = vand.u32 %v4313, 4294901760
      %4315 = vmatmul.f32.gmra.mxu0 %v4314
      %v4316 = vpop.f32.mrf.mxu0
      %v4317 = vadd.f32 %v4248, %v4316
      %v4318 = vand.u32 %v2125, 4294901760
      %v4319 = vsub.f32 %v2125, %v4318
      %v4320 = vand.u32 %v4319, 4294901760
      %4321 = vmatmul.f32.gmra.mxu0 %v4320
      %v4322 = vpop.f32.mrf.mxu0
      %v4323 = vadd.f32 %v4253, %v4322
      %v4324 = vand.u32 %v2128, 4294901760
      %v4325 = vsub.f32 %v2128, %v4324
      %v4326 = vand.u32 %v4325, 4294901760
      %4327 = vmatmul.f32.gmra.mxu0 %v4326
      %v4328 = vpop.f32.mrf.mxu0
      %v4329 = vadd.f32 %v4258, %v4328
      %v4330 = vand.u32 %v2131, 4294901760
      %v4331 = vsub.f32 %v2131, %v4330
      %v4332 = vand.u32 %v4331, 4294901760
      %4333 = vmatmul.f32.gmra.mxu0 %v4332
      %v4334 = vpop.f32.mrf.mxu0
      %v4335 = vadd.f32 %v4263, %v4334
      %v4336 = vand.u32 %v2134, 4294901760
      %v4337 = vsub.f32 %v2134, %v4336
      %v4338 = vand.u32 %v4337, 4294901760
      %4339 = vmatmul.f32.gmra.mxu0 %v4338
      %v4340 = vpop.f32.mrf.mxu0
      %v4341 = vadd.f32 %v4268, %v4340
      %4342 = vdwg.mxu0
      %4343 = vmatpush.msra.mxu0 0.0
      %4344 = vmatpush.msra.mxu0 0.0
      %4345 = vmatpush.msra.mxu0 0.0
      %4346 = vmatpush.msra.mxu0 0.0
      %4347 = vmatpush.msra.mxu0 0.0
      %4348 = vmatpush.msra.mxu0 0.0
      %4349 = vmatpush.msra.mxu0 0.0
      %4350 = vmatpush.msra.mxu0 0.0
      %v4351 = vand.u32 %v2077, 4294901760
      %v4352 = vsub.f32 %v2077, %v4351
      %v4353 = vand.u32 %v4352, 4294901760
      %4354 = vmatpush.msra.mxu0 %v4353
      %v4355 = vand.u32 %v2073, 4294901760
      %v4356 = vsub.f32 %v2073, %v4355
      %v4357 = vand.u32 %v4356, 4294901760
      %4358 = vmatpush.msra.mxu0 %v4357
      %v4359 = vand.u32 %v2069, 4294901760
      %v4360 = vsub.f32 %v2069, %v4359
      %v4361 = vand.u32 %v4360, 4294901760
      %4362 = vmatpush.msra.mxu0 %v4361
      %v4363 = vand.u32 %v2065, 4294901760
      %v4364 = vsub.f32 %v2065, %v4363
      %v4365 = vand.u32 %v4364, 4294901760
      %4366 = vmatpush.msra.mxu0 %v4365
      %v4367 = vand.u32 %v2061, 4294901760
      %v4368 = vsub.f32 %v2061, %v4367
      %v4369 = vand.u32 %v4368, 4294901760
      %4370 = vmatpush.msra.mxu0 %v4369
      %v4371 = vand.u32 %v2057, 4294901760
      %v4372 = vsub.f32 %v2057, %v4371
      %v4373 = vand.u32 %v4372, 4294901760
      %4374 = vmatpush.msra.mxu0 %v4373
      %v4375 = vand.u32 %v2053, 4294901760
      %v4376 = vsub.f32 %v2053, %v4375
      %v4377 = vand.u32 %v4376, 4294901760
      %4378 = vmatpush.msra.mxu0 %v4377
      %v4379 = vand.u32 %v2049, 4294901760
      %v4380 = vsub.f32 %v2049, %v4379
      %v4381 = vand.u32 %v4380, 4294901760
      %4382 = vmatpush.msra.mxu0 %v4381
      %v4383 = vand.u32 %v2113, 4294901760
      %4384 = vmatmul.f32.gmra.mxu0 %v4383
      %v4385 = vpop.f32.mrf.mxu0
      %v4386 = vadd.f32 %v4299, %v4385
      %v4387 = vand.u32 %v2116, 4294901760
      %4388 = vmatmul.f32.gmra.mxu0 %v4387
      %v4389 = vpop.f32.mrf.mxu0
      %v4390 = vadd.f32 %v4305, %v4389
      %v4391 = vand.u32 %v2119, 4294901760
      %4392 = vmatmul.f32.gmra.mxu0 %v4391
      %v4393 = vpop.f32.mrf.mxu0
      %v4394 = vadd.f32 %v4311, %v4393
      %v4395 = vand.u32 %v2122, 4294901760
      %4396 = vmatmul.f32.gmra.mxu0 %v4395
      %v4397 = vpop.f32.mrf.mxu0
      %v4398 = vadd.f32 %v4317, %v4397
      %v4399 = vand.u32 %v2125, 4294901760
      %4400 = vmatmul.f32.gmra.mxu0 %v4399
      %v4401 = vpop.f32.mrf.mxu0
      %v4402 = vadd.f32 %v4323, %v4401
      %v4403 = vand.u32 %v2128, 4294901760
      %4404 = vmatmul.f32.gmra.mxu0 %v4403
      %v4405 = vpop.f32.mrf.mxu0
      %v4406 = vadd.f32 %v4329, %v4405
      %v4407 = vand.u32 %v2131, 4294901760
      %4408 = vmatmul.f32.gmra.mxu0 %v4407
      %v4409 = vpop.f32.mrf.mxu0
      %v4410 = vadd.f32 %v4335, %v4409
      %v4411 = vand.u32 %v2134, 4294901760
      %4412 = vmatmul.f32.gmra.mxu0 %v4411
      %v4413 = vpop.f32.mrf.mxu0
      %v4414 = vadd.f32 %v4341, %v4413
      %4415 = vdwg.mxu0
      %4416 = vmatpush.msra.mxu0 0.0
      %4417 = vmatpush.msra.mxu0 0.0
      %4418 = vmatpush.msra.mxu0 0.0
      %4419 = vmatpush.msra.mxu0 0.0
      %4420 = vmatpush.msra.mxu0 0.0
      %4421 = vmatpush.msra.mxu0 0.0
      %4422 = vmatpush.msra.mxu0 0.0
      %4423 = vmatpush.msra.mxu0 0.0
      %v4424 = vand.u32 %v2077, 4294901760
      %4425 = vmatpush.msra.mxu0 %v4424
      %v4426 = vand.u32 %v2073, 4294901760
      %4427 = vmatpush.msra.mxu0 %v4426
      %v4428 = vand.u32 %v2069, 4294901760
      %4429 = vmatpush.msra.mxu0 %v4428
      %v4430 = vand.u32 %v2065, 4294901760
      %4431 = vmatpush.msra.mxu0 %v4430
      %v4432 = vand.u32 %v2061, 4294901760
      %4433 = vmatpush.msra.mxu0 %v4432
      %v4434 = vand.u32 %v2057, 4294901760
      %4435 = vmatpush.msra.mxu0 %v4434
      %v4436 = vand.u32 %v2053, 4294901760
      %4437 = vmatpush.msra.mxu0 %v4436
      %v4438 = vand.u32 %v2049, 4294901760
      %4439 = vmatpush.msra.mxu0 %v4438
      %v4440 = vand.u32 %v2113, 4294901760
      %4441 = vmatmul.f32.gmra.mxu0 %v4440
      %v4442 = vpop.f32.mrf.mxu0
      %v4443 = vadd.f32 %v4386, %v4442
      %v4444 = vand.u32 %v2116, 4294901760
      %4445 = vmatmul.f32.gmra.mxu0 %v4444
      %v4446 = vpop.f32.mrf.mxu0
      %v4447 = vadd.f32 %v4390, %v4446
      %v4448 = vand.u32 %v2119, 4294901760
      %4449 = vmatmul.f32.gmra.mxu0 %v4448
      %v4450 = vpop.f32.mrf.mxu0
      %v4451 = vadd.f32 %v4394, %v4450
      %v4452 = vand.u32 %v2122, 4294901760
      %4453 = vmatmul.f32.gmra.mxu0 %v4452
      %v4454 = vpop.f32.mrf.mxu0
      %v4455 = vadd.f32 %v4398, %v4454
      %v4456 = vand.u32 %v2125, 4294901760
      %4457 = vmatmul.f32.gmra.mxu0 %v4456
      %v4458 = vpop.f32.mrf.mxu0
      %v4459 = vadd.f32 %v4402, %v4458
      %v4460 = vand.u32 %v2128, 4294901760
      %4461 = vmatmul.f32.gmra.mxu0 %v4460
      %v4462 = vpop.f32.mrf.mxu0
      %v4463 = vadd.f32 %v4406, %v4462
      %v4464 = vand.u32 %v2131, 4294901760
      %4465 = vmatmul.f32.gmra.mxu0 %v4464
      %v4466 = vpop.f32.mrf.mxu0
      %v4467 = vadd.f32 %v4410, %v4466
      %v4468 = vand.u32 %v2134, 4294901760
      %4469 = vmatmul.f32.gmra.mxu0 %v4468
      %v4470 = vpop.f32.mrf.mxu0
      %v4471 = vadd.f32 %v4414, %v4470
      %4472 = vdwg.mxu0
      %v4473 = vsub.f32 %v4443, %v2111
      %v4474 = vsub.f32 %v4447, %v2111
      %v4475 = vsub.f32 %v4451, %v2111
      %v4476 = vsub.f32 %v4455, %v2111
      %v4477 = vsub.f32 %v4459, %v2111
      %v4478 = vsub.f32 %v4463, %v2111
      %v4479 = vsub.f32 %v4467, %v2111
      %v4480 = vsub.f32 %v4471, %v2111
      %s4481 = scalar_lea.vmem %s205, 256
      %4482 = vst.msk [vmem:[%s4481] sm:$0xff] %vm272, %v4473
      %4483 = vst.msk [vmem:[%s4481 + $0x8] sm:$0xff] %vm272, %v4474
      %4484 = vst.msk [vmem:[%s4481 + $0x10] sm:$0xff] %vm272, %v4475
      %4485 = vst.msk [vmem:[%s4481 + $0x18] sm:$0xff] %vm272, %v4476
      %4486 = vst.msk [vmem:[%s4481 + $0x20] sm:$0xff] %vm272, %v4477
      %4487 = vst.msk [vmem:[%s4481 + $0x28] sm:$0xff] %vm272, %v4478
      %4488 = vst.msk [vmem:[%s4481 + $0x30] sm:$0xff] %vm272, %v4479
      %4489 = vst.msk [vmem:[%s4481 + $0x38] sm:$0xff] %vm272, %v4480
      %4490 = vmatpush.msra.mxu0 0.0
      %4491 = vmatpush.msra.mxu0 0.0
      %4492 = vmatpush.msra.mxu0 0.0
      %4493 = vmatpush.msra.mxu0 0.0
      %4494 = vmatpush.msra.mxu0 0.0
      %4495 = vmatpush.msra.mxu0 0.0
      %4496 = vmatpush.msra.mxu0 0.0
      %4497 = vmatpush.msra.mxu0 0.0
      %v4498 = vand.u32 %v2109, 4294901760
      %4499 = vmatpush.msra.mxu0 %v4498
      %v4500 = vand.u32 %v2105, 4294901760
      %4501 = vmatpush.msra.mxu0 %v4500
      %v4502 = vand.u32 %v2101, 4294901760
      %4503 = vmatpush.msra.mxu0 %v4502
      %v4504 = vand.u32 %v2097, 4294901760
      %4505 = vmatpush.msra.mxu0 %v4504
      %v4506 = vand.u32 %v2093, 4294901760
      %4507 = vmatpush.msra.mxu0 %v4506
      %v4508 = vand.u32 %v2089, 4294901760
      %4509 = vmatpush.msra.mxu0 %v4508
      %v4510 = vand.u32 %v2085, 4294901760
      %4511 = vmatpush.msra.mxu0 %v4510
      %v4512 = vand.u32 %v2081, 4294901760
      %4513 = vmatpush.msra.mxu0 %v4512
      %v4514 = vand.u32 %v2113, 4294901760
      %v4515 = vsub.f32 %v2113, %v4514
      %v4516 = vand.u32 %v4515, 4294901760
      %v4517 = vsub.f32 %v4515, %v4516
      %v4518 = vand.u32 %v4517, 4294901760
      %4519 = vmatmul.f32.gmra.mxu0 %v4518
      %v4520 = vpop.f32.mrf.mxu0
      %v4521 = vadd.f32 %v2111, %v4520
      %v4522 = vand.u32 %v2116, 4294901760
      %v4523 = vsub.f32 %v2116, %v4522
      %v4524 = vand.u32 %v4523, 4294901760
      %v4525 = vsub.f32 %v4523, %v4524
      %v4526 = vand.u32 %v4525, 4294901760
      %4527 = vmatmul.f32.gmra.mxu0 %v4526
      %v4528 = vpop.f32.mrf.mxu0
      %v4529 = vadd.f32 %v2111, %v4528
      %v4530 = vand.u32 %v2119, 4294901760
      %v4531 = vsub.f32 %v2119, %v4530
      %v4532 = vand.u32 %v4531, 4294901760
      %v4533 = vsub.f32 %v4531, %v4532
      %v4534 = vand.u32 %v4533, 4294901760
      %4535 = vmatmul.f32.gmra.mxu0 %v4534
      %v4536 = vpop.f32.mrf.mxu0
      %v4537 = vadd.f32 %v2111, %v4536
      %v4538 = vand.u32 %v2122, 4294901760
      %v4539 = vsub.f32 %v2122, %v4538
      %v4540 = vand.u32 %v4539, 4294901760
      %v4541 = vsub.f32 %v4539, %v4540
      %v4542 = vand.u32 %v4541, 4294901760
      %4543 = vmatmul.f32.gmra.mxu0 %v4542
      %v4544 = vpop.f32.mrf.mxu0
      %v4545 = vadd.f32 %v2111, %v4544
      %v4546 = vand.u32 %v2125, 4294901760
      %v4547 = vsub.f32 %v2125, %v4546
      %v4548 = vand.u32 %v4547, 4294901760
      %v4549 = vsub.f32 %v4547, %v4548
      %v4550 = vand.u32 %v4549, 4294901760
      %4551 = vmatmul.f32.gmra.mxu0 %v4550
      %v4552 = vpop.f32.mrf.mxu0
      %v4553 = vadd.f32 %v2111, %v4552
      %v4554 = vand.u32 %v2128, 4294901760
      %v4555 = vsub.f32 %v2128, %v4554
      %v4556 = vand.u32 %v4555, 4294901760
      %v4557 = vsub.f32 %v4555, %v4556
      %v4558 = vand.u32 %v4557, 4294901760
      %4559 = vmatmul.f32.gmra.mxu0 %v4558
      %v4560 = vpop.f32.mrf.mxu0
      %v4561 = vadd.f32 %v2111, %v4560
      %v4562 = vand.u32 %v2131, 4294901760
      %v4563 = vsub.f32 %v2131, %v4562
      %v4564 = vand.u32 %v4563, 4294901760
      %v4565 = vsub.f32 %v4563, %v4564
      %v4566 = vand.u32 %v4565, 4294901760
      %4567 = vmatmul.f32.gmra.mxu0 %v4566
      %v4568 = vpop.f32.mrf.mxu0
      %v4569 = vadd.f32 %v2111, %v4568
      %v4570 = vand.u32 %v2134, 4294901760
      %v4571 = vsub.f32 %v2134, %v4570
      %v4572 = vand.u32 %v4571, 4294901760
      %v4573 = vsub.f32 %v4571, %v4572
      %v4574 = vand.u32 %v4573, 4294901760
      %4575 = vmatmul.f32.gmra.mxu0 %v4574
      %v4576 = vpop.f32.mrf.mxu0
      %v4577 = vadd.f32 %v2111, %v4576
      %4578 = vdwg.mxu0
      %4579 = vmatpush.msra.mxu0 0.0
      %4580 = vmatpush.msra.mxu0 0.0
      %4581 = vmatpush.msra.mxu0 0.0
      %4582 = vmatpush.msra.mxu0 0.0
      %4583 = vmatpush.msra.mxu0 0.0
      %4584 = vmatpush.msra.mxu0 0.0
      %4585 = vmatpush.msra.mxu0 0.0
      %4586 = vmatpush.msra.mxu0 0.0
      %v4587 = vand.u32 %v2109, 4294901760
      %v4588 = vsub.f32 %v2109, %v4587
      %v4589 = vand.u32 %v4588, 4294901760
      %v4590 = vsub.f32 %v4588, %v4589
      %v4591 = vand.u32 %v4590, 4294901760
      %4592 = vmatpush.msra.mxu0 %v4591
      %v4593 = vand.u32 %v2105, 4294901760
      %v4594 = vsub.f32 %v2105, %v4593
      %v4595 = vand.u32 %v4594, 4294901760
      %v4596 = vsub.f32 %v4594, %v4595
      %v4597 = vand.u32 %v4596, 4294901760
      %4598 = vmatpush.msra.mxu0 %v4597
      %v4599 = vand.u32 %v2101, 4294901760
      %v4600 = vsub.f32 %v2101, %v4599
      %v4601 = vand.u32 %v4600, 4294901760
      %v4602 = vsub.f32 %v4600, %v4601
      %v4603 = vand.u32 %v4602, 4294901760
      %4604 = vmatpush.msra.mxu0 %v4603
      %v4605 = vand.u32 %v2097, 4294901760
      %v4606 = vsub.f32 %v2097, %v4605
      %v4607 = vand.u32 %v4606, 4294901760
      %v4608 = vsub.f32 %v4606, %v4607
      %v4609 = vand.u32 %v4608, 4294901760
      %4610 = vmatpush.msra.mxu0 %v4609
      %v4611 = vand.u32 %v2093, 4294901760
      %v4612 = vsub.f32 %v2093, %v4611
      %v4613 = vand.u32 %v4612, 4294901760
      %v4614 = vsub.f32 %v4612, %v4613
      %v4615 = vand.u32 %v4614, 4294901760
      %4616 = vmatpush.msra.mxu0 %v4615
      %v4617 = vand.u32 %v2089, 4294901760
      %v4618 = vsub.f32 %v2089, %v4617
      %v4619 = vand.u32 %v4618, 4294901760
      %v4620 = vsub.f32 %v4618, %v4619
      %v4621 = vand.u32 %v4620, 4294901760
      %4622 = vmatpush.msra.mxu0 %v4621
      %v4623 = vand.u32 %v2085, 4294901760
      %v4624 = vsub.f32 %v2085, %v4623
      %v4625 = vand.u32 %v4624, 4294901760
      %v4626 = vsub.f32 %v4624, %v4625
      %v4627 = vand.u32 %v4626, 4294901760
      %4628 = vmatpush.msra.mxu0 %v4627
      %v4629 = vand.u32 %v2081, 4294901760
      %v4630 = vsub.f32 %v2081, %v4629
      %v4631 = vand.u32 %v4630, 4294901760
      %v4632 = vsub.f32 %v4630, %v4631
      %v4633 = vand.u32 %v4632, 4294901760
      %4634 = vmatpush.msra.mxu0 %v4633
      %v4635 = vand.u32 %v2113, 4294901760
      %4636 = vmatmul.f32.gmra.mxu0 %v4635
      %v4637 = vpop.f32.mrf.mxu0
      %v4638 = vadd.f32 %v4521, %v4637
      %v4639 = vand.u32 %v2116, 4294901760
      %4640 = vmatmul.f32.gmra.mxu0 %v4639
      %v4641 = vpop.f32.mrf.mxu0
      %v4642 = vadd.f32 %v4529, %v4641
      %v4643 = vand.u32 %v2119, 4294901760
      %4644 = vmatmul.f32.gmra.mxu0 %v4643
      %v4645 = vpop.f32.mrf.mxu0
      %v4646 = vadd.f32 %v4537, %v4645
      %v4647 = vand.u32 %v2122, 4294901760
      %4648 = vmatmul.f32.gmra.mxu0 %v4647
      %v4649 = vpop.f32.mrf.mxu0
      %v4650 = vadd.f32 %v4545, %v4649
      %v4651 = vand.u32 %v2125, 4294901760
      %4652 = vmatmul.f32.gmra.mxu0 %v4651
      %v4653 = vpop.f32.mrf.mxu0
      %v4654 = vadd.f32 %v4553, %v4653
      %v4655 = vand.u32 %v2128, 4294901760
      %4656 = vmatmul.f32.gmra.mxu0 %v4655
      %v4657 = vpop.f32.mrf.mxu0
      %v4658 = vadd.f32 %v4561, %v4657
      %v4659 = vand.u32 %v2131, 4294901760
      %4660 = vmatmul.f32.gmra.mxu0 %v4659
      %v4661 = vpop.f32.mrf.mxu0
      %v4662 = vadd.f32 %v4569, %v4661
      %v4663 = vand.u32 %v2134, 4294901760
      %4664 = vmatmul.f32.gmra.mxu0 %v4663
      %v4665 = vpop.f32.mrf.mxu0
      %v4666 = vadd.f32 %v4577, %v4665
      %4667 = vdwg.mxu0
      %4668 = vmatpush.msra.mxu0 0.0
      %4669 = vmatpush.msra.mxu0 0.0
      %4670 = vmatpush.msra.mxu0 0.0
      %4671 = vmatpush.msra.mxu0 0.0
      %4672 = vmatpush.msra.mxu0 0.0
      %4673 = vmatpush.msra.mxu0 0.0
      %4674 = vmatpush.msra.mxu0 0.0
      %4675 = vmatpush.msra.mxu0 0.0
      %v4676 = vand.u32 %v2109, 4294901760
      %v4677 = vsub.f32 %v2109, %v4676
      %4678 = vmatpush.msra.mxu0 %v4677
      %v4679 = vand.u32 %v2105, 4294901760
      %v4680 = vsub.f32 %v2105, %v4679
      %4681 = vmatpush.msra.mxu0 %v4680
      %v4682 = vand.u32 %v2101, 4294901760
      %v4683 = vsub.f32 %v2101, %v4682
      %4684 = vmatpush.msra.mxu0 %v4683
      %v4685 = vand.u32 %v2097, 4294901760
      %v4686 = vsub.f32 %v2097, %v4685
      %4687 = vmatpush.msra.mxu0 %v4686
      %v4688 = vand.u32 %v2093, 4294901760
      %v4689 = vsub.f32 %v2093, %v4688
      %4690 = vmatpush.msra.mxu0 %v4689
      %v4691 = vand.u32 %v2089, 4294901760
      %v4692 = vsub.f32 %v2089, %v4691
      %4693 = vmatpush.msra.mxu0 %v4692
      %v4694 = vand.u32 %v2085, 4294901760
      %v4695 = vsub.f32 %v2085, %v4694
      %4696 = vmatpush.msra.mxu0 %v4695
      %v4697 = vand.u32 %v2081, 4294901760
      %v4698 = vsub.f32 %v2081, %v4697
      %4699 = vmatpush.msra.mxu0 %v4698
      %v4700 = vand.u32 %v2113, 4294901760
      %v4701 = vsub.f32 %v2113, %v4700
      %4702 = vmatmul.f32.gmra.mxu0 %v4701
      %v4703 = vpop.f32.mrf.mxu0
      %v4704 = vadd.f32 %v4638, %v4703
      %v4705 = vand.u32 %v2116, 4294901760
      %v4706 = vsub.f32 %v2116, %v4705
      %4707 = vmatmul.f32.gmra.mxu0 %v4706
      %v4708 = vpop.f32.mrf.mxu0
      %v4709 = vadd.f32 %v4642, %v4708
      %v4710 = vand.u32 %v2119, 4294901760
      %v4711 = vsub.f32 %v2119, %v4710
      %4712 = vmatmul.f32.gmra.mxu0 %v4711
      %v4713 = vpop.f32.mrf.mxu0
      %v4714 = vadd.f32 %v4646, %v4713
      %v4715 = vand.u32 %v2122, 4294901760
      %v4716 = vsub.f32 %v2122, %v4715
      %4717 = vmatmul.f32.gmra.mxu0 %v4716
      %v4718 = vpop.f32.mrf.mxu0
      %v4719 = vadd.f32 %v4650, %v4718
      %v4720 = vand.u32 %v2125, 4294901760
      %v4721 = vsub.f32 %v2125, %v4720
      %4722 = vmatmul.f32.gmra.mxu0 %v4721
      %v4723 = vpop.f32.mrf.mxu0
      %v4724 = vadd.f32 %v4654, %v4723
      %v4725 = vand.u32 %v2128, 4294901760
      %v4726 = vsub.f32 %v2128, %v4725
      %4727 = vmatmul.f32.gmra.mxu0 %v4726
      %v4728 = vpop.f32.mrf.mxu0
      %v4729 = vadd.f32 %v4658, %v4728
      %v4730 = vand.u32 %v2131, 4294901760
      %v4731 = vsub.f32 %v2131, %v4730
      %4732 = vmatmul.f32.gmra.mxu0 %v4731
      %v4733 = vpop.f32.mrf.mxu0
      %v4734 = vadd.f32 %v4662, %v4733
      %v4735 = vand.u32 %v2134, 4294901760
      %v4736 = vsub.f32 %v2134, %v4735
      %4737 = vmatmul.f32.gmra.mxu0 %v4736
      %v4738 = vpop.f32.mrf.mxu0
      %v4739 = vadd.f32 %v4666, %v4738
      %4740 = vdwg.mxu0
      %4741 = vmatpush.msra.mxu0 0.0
      %4742 = vmatpush.msra.mxu0 0.0
      %4743 = vmatpush.msra.mxu0 0.0
      %4744 = vmatpush.msra.mxu0 0.0
      %4745 = vmatpush.msra.mxu0 0.0
      %4746 = vmatpush.msra.mxu0 0.0
      %4747 = vmatpush.msra.mxu0 0.0
      %4748 = vmatpush.msra.mxu0 0.0
      %v4749 = vand.u32 %v2109, 4294901760
      %4750 = vmatpush.msra.mxu0 %v4749
      %v4751 = vand.u32 %v2105, 4294901760
      %4752 = vmatpush.msra.mxu0 %v4751
      %v4753 = vand.u32 %v2101, 4294901760
      %4754 = vmatpush.msra.mxu0 %v4753
      %v4755 = vand.u32 %v2097, 4294901760
      %4756 = vmatpush.msra.mxu0 %v4755
      %v4757 = vand.u32 %v2093, 4294901760
      %4758 = vmatpush.msra.mxu0 %v4757
      %v4759 = vand.u32 %v2089, 4294901760
      %4760 = vmatpush.msra.mxu0 %v4759
      %v4761 = vand.u32 %v2085, 4294901760
      %4762 = vmatpush.msra.mxu0 %v4761
      %v4763 = vand.u32 %v2081, 4294901760
      %4764 = vmatpush.msra.mxu0 %v4763
      %v4765 = vand.u32 %v2113, 4294901760
      %v4766 = vsub.f32 %v2113, %v4765
      %v4767 = vand.u32 %v4766, 4294901760
      %4768 = vmatmul.f32.gmra.mxu0 %v4767
      %v4769 = vpop.f32.mrf.mxu0
      %v4770 = vadd.f32 %v4704, %v4769
      %v4771 = vand.u32 %v2116, 4294901760
      %v4772 = vsub.f32 %v2116, %v4771
      %v4773 = vand.u32 %v4772, 4294901760
      %4774 = vmatmul.f32.gmra.mxu0 %v4773
      %v4775 = vpop.f32.mrf.mxu0
      %v4776 = vadd.f32 %v4709, %v4775
      %v4777 = vand.u32 %v2119, 4294901760
      %v4778 = vsub.f32 %v2119, %v4777
      %v4779 = vand.u32 %v4778, 4294901760
      %4780 = vmatmul.f32.gmra.mxu0 %v4779
      %v4781 = vpop.f32.mrf.mxu0
      %v4782 = vadd.f32 %v4714, %v4781
      %v4783 = vand.u32 %v2122, 4294901760
      %v4784 = vsub.f32 %v2122, %v4783
      %v4785 = vand.u32 %v4784, 4294901760
      %4786 = vmatmul.f32.gmra.mxu0 %v4785
      %v4787 = vpop.f32.mrf.mxu0
      %v4788 = vadd.f32 %v4719, %v4787
      %v4789 = vand.u32 %v2125, 4294901760
      %v4790 = vsub.f32 %v2125, %v4789
      %v4791 = vand.u32 %v4790, 4294901760
      %4792 = vmatmul.f32.gmra.mxu0 %v4791
      %v4793 = vpop.f32.mrf.mxu0
      %v4794 = vadd.f32 %v4724, %v4793
      %v4795 = vand.u32 %v2128, 4294901760
      %v4796 = vsub.f32 %v2128, %v4795
      %v4797 = vand.u32 %v4796, 4294901760
      %4798 = vmatmul.f32.gmra.mxu0 %v4797
      %v4799 = vpop.f32.mrf.mxu0
      %v4800 = vadd.f32 %v4729, %v4799
      %v4801 = vand.u32 %v2131, 4294901760
      %v4802 = vsub.f32 %v2131, %v4801
      %v4803 = vand.u32 %v4802, 4294901760
      %4804 = vmatmul.f32.gmra.mxu0 %v4803
      %v4805 = vpop.f32.mrf.mxu0
      %v4806 = vadd.f32 %v4734, %v4805
      %v4807 = vand.u32 %v2134, 4294901760
      %v4808 = vsub.f32 %v2134, %v4807
      %v4809 = vand.u32 %v4808, 4294901760
      %4810 = vmatmul.f32.gmra.mxu0 %v4809
      %v4811 = vpop.f32.mrf.mxu0
      %v4812 = vadd.f32 %v4739, %v4811
      %4813 = vdwg.mxu0
      %4814 = vmatpush.msra.mxu0 0.0
      %4815 = vmatpush.msra.mxu0 0.0
      %4816 = vmatpush.msra.mxu0 0.0
      %4817 = vmatpush.msra.mxu0 0.0
      %4818 = vmatpush.msra.mxu0 0.0
      %4819 = vmatpush.msra.mxu0 0.0
      %4820 = vmatpush.msra.mxu0 0.0
      %4821 = vmatpush.msra.mxu0 0.0
      %v4822 = vand.u32 %v2109, 4294901760
      %v4823 = vsub.f32 %v2109, %v4822
      %v4824 = vand.u32 %v4823, 4294901760
      %4825 = vmatpush.msra.mxu0 %v4824
      %v4826 = vand.u32 %v2105, 4294901760
      %v4827 = vsub.f32 %v2105, %v4826
      %v4828 = vand.u32 %v4827, 4294901760
      %4829 = vmatpush.msra.mxu0 %v4828
      %v4830 = vand.u32 %v2101, 4294901760
      %v4831 = vsub.f32 %v2101, %v4830
      %v4832 = vand.u32 %v4831, 4294901760
      %4833 = vmatpush.msra.mxu0 %v4832
      %v4834 = vand.u32 %v2097, 4294901760
      %v4835 = vsub.f32 %v2097, %v4834
      %v4836 = vand.u32 %v4835, 4294901760
      %4837 = vmatpush.msra.mxu0 %v4836
      %v4838 = vand.u32 %v2093, 4294901760
      %v4839 = vsub.f32 %v2093, %v4838
      %v4840 = vand.u32 %v4839, 4294901760
      %4841 = vmatpush.msra.mxu0 %v4840
      %v4842 = vand.u32 %v2089, 4294901760
      %v4843 = vsub.f32 %v2089, %v4842
      %v4844 = vand.u32 %v4843, 4294901760
      %4845 = vmatpush.msra.mxu0 %v4844
      %v4846 = vand.u32 %v2085, 4294901760
      %v4847 = vsub.f32 %v2085, %v4846
      %v4848 = vand.u32 %v4847, 4294901760
      %4849 = vmatpush.msra.mxu0 %v4848
      %v4850 = vand.u32 %v2081, 4294901760
      %v4851 = vsub.f32 %v2081, %v4850
      %v4852 = vand.u32 %v4851, 4294901760
      %4853 = vmatpush.msra.mxu0 %v4852
      %v4854 = vand.u32 %v2113, 4294901760
      %4855 = vmatmul.f32.gmra.mxu0 %v4854
      %v4856 = vpop.f32.mrf.mxu0
      %v4857 = vadd.f32 %v4770, %v4856
      %v4858 = vand.u32 %v2116, 4294901760
      %4859 = vmatmul.f32.gmra.mxu0 %v4858
      %v4860 = vpop.f32.mrf.mxu0
      %v4861 = vadd.f32 %v4776, %v4860
      %v4862 = vand.u32 %v2119, 4294901760
      %4863 = vmatmul.f32.gmra.mxu0 %v4862
      %v4864 = vpop.f32.mrf.mxu0
      %v4865 = vadd.f32 %v4782, %v4864
      %v4866 = vand.u32 %v2122, 4294901760
      %4867 = vmatmul.f32.gmra.mxu0 %v4866
      %v4868 = vpop.f32.mrf.mxu0
      %v4869 = vadd.f32 %v4788, %v4868
      %v4870 = vand.u32 %v2125, 4294901760
      %4871 = vmatmul.f32.gmra.mxu0 %v4870
      %v4872 = vpop.f32.mrf.mxu0
      %v4873 = vadd.f32 %v4794, %v4872
      %v4874 = vand.u32 %v2128, 4294901760
      %4875 = vmatmul.f32.gmra.mxu0 %v4874
      %v4876 = vpop.f32.mrf.mxu0
      %v4877 = vadd.f32 %v4800, %v4876
      %v4878 = vand.u32 %v2131, 4294901760
      %4879 = vmatmul.f32.gmra.mxu0 %v4878
      %v4880 = vpop.f32.mrf.mxu0
      %v4881 = vadd.f32 %v4806, %v4880
      %v4882 = vand.u32 %v2134, 4294901760
      %4883 = vmatmul.f32.gmra.mxu0 %v4882
      %v4884 = vpop.f32.mrf.mxu0
      %v4885 = vadd.f32 %v4812, %v4884
      %4886 = vdwg.mxu0
      %4887 = vmatpush.msra.mxu0 0.0
      %4888 = vmatpush.msra.mxu0 0.0
      %4889 = vmatpush.msra.mxu0 0.0
      %4890 = vmatpush.msra.mxu0 0.0
      %4891 = vmatpush.msra.mxu0 0.0
      %4892 = vmatpush.msra.mxu0 0.0
      %4893 = vmatpush.msra.mxu0 0.0
      %4894 = vmatpush.msra.mxu0 0.0
      %v4895 = vand.u32 %v2109, 4294901760
      %4896 = vmatpush.msra.mxu0 %v4895
      %v4897 = vand.u32 %v2105, 4294901760
      %4898 = vmatpush.msra.mxu0 %v4897
      %v4899 = vand.u32 %v2101, 4294901760
      %4900 = vmatpush.msra.mxu0 %v4899
      %v4901 = vand.u32 %v2097, 4294901760
      %4902 = vmatpush.msra.mxu0 %v4901
      %v4903 = vand.u32 %v2093, 4294901760
      %4904 = vmatpush.msra.mxu0 %v4903
      %v4905 = vand.u32 %v2089, 4294901760
      %4906 = vmatpush.msra.mxu0 %v4905
      %v4907 = vand.u32 %v2085, 4294901760
      %4908 = vmatpush.msra.mxu0 %v4907
      %v4909 = vand.u32 %v2081, 4294901760
      %4910 = vmatpush.msra.mxu0 %v4909
      %v4911 = vand.u32 %v2113, 4294901760
      %4912 = vmatmul.f32.gmra.mxu0 %v4911
      %v4913 = vpop.f32.mrf.mxu0
      %v4914 = vadd.f32 %v4857, %v4913
      %v4915 = vand.u32 %v2116, 4294901760
      %4916 = vmatmul.f32.gmra.mxu0 %v4915
      %v4917 = vpop.f32.mrf.mxu0
      %v4918 = vadd.f32 %v4861, %v4917
      %v4919 = vand.u32 %v2119, 4294901760
      %4920 = vmatmul.f32.gmra.mxu0 %v4919
      %v4921 = vpop.f32.mrf.mxu0
      %v4922 = vadd.f32 %v4865, %v4921
      %v4923 = vand.u32 %v2122, 4294901760
      %4924 = vmatmul.f32.gmra.mxu0 %v4923
      %v4925 = vpop.f32.mrf.mxu0
      %v4926 = vadd.f32 %v4869, %v4925
      %v4927 = vand.u32 %v2125, 4294901760
      %4928 = vmatmul.f32.gmra.mxu0 %v4927
      %v4929 = vpop.f32.mrf.mxu0
      %v4930 = vadd.f32 %v4873, %v4929
      %v4931 = vand.u32 %v2128, 4294901760
      %4932 = vmatmul.f32.gmra.mxu0 %v4931
      %v4933 = vpop.f32.mrf.mxu0
      %v4934 = vadd.f32 %v4877, %v4933
      %v4935 = vand.u32 %v2131, 4294901760
      %4936 = vmatmul.f32.gmra.mxu0 %v4935
      %v4937 = vpop.f32.mrf.mxu0
      %v4938 = vadd.f32 %v4881, %v4937
      %v4939 = vand.u32 %v2134, 4294901760
      %4940 = vmatmul.f32.gmra.mxu0 %v4939
      %v4941 = vpop.f32.mrf.mxu0
      %v4942 = vadd.f32 %v4885, %v4941
      %4943 = vdwg.mxu0
      %v4944 = vsub.f32 %v4914, %v2111
      %v4945 = vsub.f32 %v4918, %v2111
      %v4946 = vsub.f32 %v4922, %v2111
      %v4947 = vsub.f32 %v4926, %v2111
      %v4948 = vsub.f32 %v4930, %v2111
      %v4949 = vsub.f32 %v4934, %v2111
      %v4950 = vsub.f32 %v4938, %v2111
      %v4951 = vsub.f32 %v4942, %v2111
      %s4952 = scalar_lea.vmem %s205, 320
      %4953 = vst.msk [vmem:[%s4952] sm:$0xff] %vm272, %v4944
      %4954 = vst.msk [vmem:[%s4952 + $0x8] sm:$0xff] %vm272, %v4945
      %4955 = vst.msk [vmem:[%s4952 + $0x10] sm:$0xff] %vm272, %v4946
      %4956 = vst.msk [vmem:[%s4952 + $0x18] sm:$0xff] %vm272, %v4947
      %4957 = vst.msk [vmem:[%s4952 + $0x20] sm:$0xff] %vm272, %v4948
      %4958 = vst.msk [vmem:[%s4952 + $0x28] sm:$0xff] %vm272, %v4949
      %4959 = vst.msk [vmem:[%s4952 + $0x30] sm:$0xff] %vm272, %v4950
      %4960 = vst.msk [vmem:[%s4952 + $0x38] sm:$0xff] %vm272, %v4951
      %s4961 = smul.u32 6, %s16
      %p4962 = scmp.lt.s32.totalorder %s4961, 11
      %s4963 = scalar_select %p4962, %s4961, 11
      %s4964 = smul.addr %s4963, 8
      %s4965 = smul.addr %s4964, 8
      %s4966 = scalar_lea.vmem %s4, %s4965
      // Predicated region
      $region37: #{model_forward.1} parent=35 // pred_check
        %p4967 = pneg %p123
      $region38: #{model_forward.1} parent=35 // pred_check_branch
        %4969 = sbr.rel (%p4967) target = $region40
      $region39: #{model_forward.1} parent=35 // pred_region
        %s4970 = smul.u32 6, %s16
      $region40: #{model_forward.1} parent=35 // pred_fallthru
        _
    $region36: #{model_forward.1} parent=5 // pred_fallthru
      _
    %p4971 = scmp.le.s32.totalorder 2, %s11
    // Predicated region
    $region41: #{model_forward.1} parent=5 // pred_check
      %p4972 = pneg %p4971
    $region42: #{model_forward.1} parent=5 // pred_check_branch
      %4974 = sbr.rel (%p4972) target = $region44
    $region43: #{model_forward.1} parent=5 // pred_region
      %s4975 = ssub.s32 %s11, 2
      // Predicated region
      $region45: #{model_forward.1} parent=43 // pred_check
        %p4976 = pneg %p129
      $region46: #{model_forward.1} parent=43 // pred_check_branch
        %4978 = sbr.rel (%p4976) target = $region48
      $region47: #{model_forward.1} parent=43 // pred_region
        %s4979 = smul.u32 6, %s17
        %p4980 = scmp.lt.s32.totalorder %s4979, 11
        %s4981 = scalar_select %p4980, %s4979, 11
        %s4982 = smul.addr %s4981, 8
        %s4983 = smul.addr %s4982, 8
        %s4984 = scalar_lea.vmem %s4, %s4983
      $region48: #{model_forward.1} parent=43 // pred_fallthru
        _
    $region44: #{model_forward.1} parent=5 // pred_fallthru
      _
  $region6: #{model_forward.1} parent=0 // loop_footer
    %s15 = sadd.s32 1, %s11
  $region7: #{model_forward.1} parent=0 // loop_footer_branch
    %10 = sbr.rel target = $region3
  $region8: #{model_forward.1} parent=0 // loop_exit
    _

</llo_original>
